<compile_context>
chip_gen: v7x
topology: tpu7x:2x2x1
jax: 0.10.0
libtpu: 0.0.40
codegen_flags: <defaults>
</compile_context>

<pallas_src>
import jax
import jax.numpy as jnp
from jax import lax
from jax.experimental import pallas as pl
from jax.experimental.pallas import tpu as pltpu


def _basic_block_kernel(x_ref, w1_ref, w2_ref, b1_ref, b2_ref, out_ref, ypad):
    # x_ref  : (NB, H+2, W+2, Cp) bf16   1-px spatially padded, channel-padded
    # w1_ref : (9*Cp, Cp) bf16   conv1 weights (bn1 scale folded), im2col layout
    # w2_ref : (9*Cp, Cp) bf16   conv2 weights (bn2 scale folded), im2col layout
    # b1_ref : (1, Cp) f32, b2_ref: (1, Cp) f32   folded BN biases
    # out_ref: (NB, H, W, Cp) bf16
    # ypad   : VMEM (NB, H+2, 16 + W + 16, Cp) bf16   conv2 input with zero halo
    NB, Hp, Wp, Cp = x_ref.shape
    H, W = Hp - 2, Wp - 2
    WS = ypad.shape[2]
    LH = 16                       # left halo width (bf16 sublane tile)
    M = NB * H * W

    # ---- conv1 (+ folded bn1 scale): one K=9*Cp MXU contraction ---------------
    # im2col staging: taps ordered (dh, dw) row-major to match the host-side
    # weight reshape (3,3,Cp,Cp) -> (9*Cp, Cp).
    cols1 = []
    for dh in range(3):
        for dw in range(3):
            cols1.append(x_ref[:, dh:dh + H, dw:dw + W, :])
    patches1 = jnp.concatenate(cols1, axis=-1).reshape(M, 9 * Cp)
    acc1 = jnp.dot(patches1, w1_ref[...], preferred_element_type=jnp.float32)

    # ---- bn1 bias + relu, single cast to bf16 ---------------------------------
    y = jnp.maximum(acc1 + b1_ref[...], 0.0).astype(jnp.bfloat16)      # (M, Cp)

    # ---- stage y into the bf16 zero-halo frame for conv2 ----------------------
    # Interior store (cols [LH, LH+W)) and both 16-wide column strips are
    # sublane-tile aligned -> full unmasked vst.  Strips are re-zeroed each
    # step (megacore-safe; see header note).
    ypad[:, 1:1 + H, LH:LH + W, :] = y.reshape(NB, H, W, Cp)
    zrow = jnp.zeros((NB, 1, WS, Cp), jnp.bfloat16)
    ypad[:, 0:1, :, :] = zrow
    ypad[:, Hp - 1:Hp, :, :] = zrow
    zcol = jnp.zeros((NB, Hp, LH, Cp), jnp.bfloat16)
    ypad[:, :, 0:LH, :] = zcol
    ypad[:, :, LH + W:LH + W + LH, :] = zcol

    # ---- conv2 (+ folded bn2 scale): one K=9*Cp MXU contraction ---------------
    cols2 = []
    for dh in range(3):
        for dw in range(3):
            c0 = LH - 1 + dw      # padded col dw maps to scratch col LH-1+dw
            cols2.append(ypad[:, dh:dh + H, c0:c0 + W, :])
    patches2 = jnp.concatenate(cols2, axis=-1).reshape(M, 9 * Cp)
    acc2 = jnp.dot(patches2, w2_ref[...], preferred_element_type=jnp.float32)

    # ---- bn2 bias + residual add + relu, bf16 output ---------------------------
    identity = x_ref[:, 1:1 + H, 1:1 + W, :].astype(jnp.float32).reshape(M, Cp)
    out = jnp.maximum(acc2 + b2_ref[...] + identity, 0.0)
    out_ref[...] = out.reshape(NB, H, W, Cp).astype(out_ref.dtype)


def basic_block_forward(x_nchw, w1, w2, g1, be1, rm1, rv1, g2, be2, rm2, rv2,
                        eps=1e-5, block_images=None):
    """x_nchw: (N, C, H, W) f32.  Conv weights are HWIO.  Returns (N, C, H, W) f32."""
    N, C, H, W = x_nchw.shape
    Cout = w1.shape[-1]
    assert C == Cout, "identity add requires Cin == Cout (no downsample branch)"

    LANE = 128
    Cp = ((Cout + LANE - 1) // LANE) * LANE       # lane-dense channel dim
    Hp, Wp = H + 2, W + 2
    LH = 16                                       # bf16 sublane tile
    WS = LH + W + LH                              # conv2 halo scratch width

    # ---- fold eval-mode BN into conv weights + per-channel bias (host side) ---
    inv1 = g1 / jnp.sqrt(rv1 + eps)
    inv2 = g2 / jnp.sqrt(rv2 + eps)
    b1 = be1 - rm1 * inv1
    b2 = be2 - rm2 * inv2
    w1f = w1.astype(jnp.float32) * inv1           # scale over Cout (last axis)
    w2f = w2.astype(jnp.float32) * inv2

    # ---- channel-pad to 128 lanes; reshape to (9*Cp, Cp) im2col weight layout --
    # TODO(synk): for tiny channel counts (C=4) the 128-lane pad dominates HBM
    # traffic; a W-on-lanes / K=9*C layout would avoid it, at the cost of a
    # different (non-lane-dense-output) store pattern.
    w1p = jnp.pad(w1f, ((0, 0), (0, 0), (0, Cp - C), (0, Cp - Cout))
                  ).astype(jnp.bfloat16).reshape(9 * Cp, Cp)
    w2p = jnp.pad(w2f, ((0, 0), (0, 0), (0, Cp - Cout), (0, Cp - Cout))
                  ).astype(jnp.bfloat16).reshape(9 * Cp, Cp)
    b1p = jnp.pad(b1, (0, Cp - Cout)).reshape(1, Cp).astype(jnp.float32)
    b2p = jnp.pad(b2, (0, Cp - Cout)).reshape(1, Cp).astype(jnp.float32)

    # NCHW -> NHWC; 1-px spatial halo + channel pad in one jnp.pad; bf16 input.
    x = jnp.transpose(x_nchw, (0, 2, 3, 1))
    xpad = jnp.pad(x, ((0, 0), (1, 1), (1, 1), (0, Cp - C))).astype(jnp.bfloat16)

    # ---- honest per-image VMEM footprint (conservative flat sum) --------------
    bytes_x    = 2 * Hp * Wp * Cp * 2          # input block, double-buffered, bf16
    bytes_out  = 2 * H * W * Cp * 2            # output block, double-buffered, bf16
    bytes_ypad = Hp * WS * Cp * 2              # halo scratch, bf16
    bytes_vals = (2 * 9 * H * W * Cp * 2       # two im2col operands, bf16
                  + 2 * H * W * Cp * 4         # two f32 accumulators
                  + H * W * Cp * 2             # y (bf16)
                  + H * W * Cp * 4)            # identity (f32)
    per_img = bytes_x + bytes_out + bytes_ypad + bytes_vals
    fixed = 2 * (9 * Cp * Cp * 2) * 2 + 2 * (Cp * 4) * 2   # weights + biases, 2x buffered

    budget = 20 * 1024 * 1024                  # leaves headroom inside v7x's 64 MiB VMEM
    nb = block_images
    if nb is None:
        nb = 1
        cap = max(1, N // 2)                   # keep >= 2 grid steps (both v7x TCs busy)
        for cand in range(1, cap + 1):
            if N % cand == 0 and fixed + cand * per_img <= budget:
                nb = cand
    assert N % nb == 0
    grid = (N // nb,)

    out = pl.pallas_call(
        _basic_block_kernel,
        out_shape=jax.ShapeDtypeStruct((N, H, W, Cp), jnp.bfloat16),
        grid_spec=pltpu.PrefetchScalarGridSpec(
            num_scalar_prefetch=0,
            grid=grid,
            in_specs=[
                pl.BlockSpec((nb, Hp, Wp, Cp), lambda n: (n, 0, 0, 0)),
                pl.BlockSpec((9 * Cp, Cp), lambda n: (0, 0)),
                pl.BlockSpec((9 * Cp, Cp), lambda n: (0, 0)),
                pl.BlockSpec((1, Cp), lambda n: (0, 0)),
                pl.BlockSpec((1, Cp), lambda n: (0, 0)),
            ],
            out_specs=pl.BlockSpec((nb, H, W, Cp), lambda n: (n, 0, 0, 0)),
            scratch_shapes=[pltpu.VMEM((nb, Hp, WS, Cp), jnp.bfloat16)],
        ),
        compiler_params=pltpu.CompilerParams(
            dimension_semantics=("parallel",),          # image blocks are independent
            vmem_limit_bytes=40 * 1024 * 1024),
    )(xpad, w1p, w2p, b1p, b2p)

    # drop channel pad, back to f32 NCHW
    return jnp.transpose(out[..., :Cout].astype(jnp.float32), (0, 3, 1, 2))


def _reference_forward(x_nchw, w1, w2, g1, be1, rm1, rv1, g2, be2, rm2, rv2,
                       eps=1e-5):
    """Exact f32 module math (lax.conv), for a loose sanity check."""
    x = jnp.transpose(x_nchw, (0, 2, 3, 1))
    dn = ("NHWC", "HWIO", "NHWC")
    hp = lax.Precision.HIGHEST
    y = lax.conv_general_dilated(x, w1, (1, 1), "SAME", dimension_numbers=dn,
                                 precision=hp)
    y = (y - rm1) / jnp.sqrt(rv1 + eps) * g1 + be1
    y = jnp.maximum(y, 0.0)
    z = lax.conv_general_dilated(y, w2, (1, 1), "SAME", dimension_numbers=dn,
                                 precision=hp)
    z = (z - rm2) / jnp.sqrt(rv2 + eps) * g2 + be2
    z = jnp.maximum(z + x, 0.0)
    return jnp.transpose(z, (0, 3, 1, 2))


def _matched_precision_reference(x_nchw, w1, w2, g1, be1, rm1, rv1, g2, be2,
                                 rm2, rv2, eps=1e-5):
    """Reference with the same bf16 rounding points the kernel uses (tight check)."""
    x = jnp.transpose(x_nchw, (0, 2, 3, 1)).astype(jnp.float32)
    inv1 = g1 / jnp.sqrt(rv1 + eps)
    inv2 = g2 / jnp.sqrt(rv2 + eps)
    b1 = be1 - rm1 * inv1
    b2 = be2 - rm2 * inv2
    w1q = (w1 * inv1).astype(jnp.bfloat16).astype(jnp.float32)
    w2q = (w2 * inv2).astype(jnp.bfloat16).astype(jnp.float32)
    xq = x.astype(jnp.bfloat16).astype(jnp.float32)
    dn = ("NHWC", "HWIO", "NHWC")
    hp = lax.Precision.HIGHEST
    y = lax.conv_general_dilated(xq, w1q, (1, 1), "SAME", dimension_numbers=dn,
                                 precision=hp)
    y = jnp.maximum(y + b1, 0.0)
    yq = y.astype(jnp.bfloat16).astype(jnp.float32)
    z = lax.conv_general_dilated(yq, w2q, (1, 1), "SAME", dimension_numbers=dn,
                                 precision=hp)
    z = jnp.maximum(z + b2 + xq, 0.0)
    zq = z.astype(jnp.bfloat16).astype(jnp.float32)     # kernel output is bf16
    return jnp.transpose(zq, (0, 3, 1, 2))


if __name__ == "__main__":
    # BasicBlock(in_channels=4, out_channels=4, stride=1, expansion=1,
    #            downsample=None)
    N, C, H, W = 2, 4, 16, 16
    key = jax.random.PRNGKey(0)
    ks = jax.random.split(key, 10)

    x = jax.random.normal(ks[0], (N, C, H, W), dtype=jnp.float32)

    # Conv weights in HWIO layout (kH, kW, Cin, Cout), no bias.
    w1 = jax.random.normal(ks[1], (3, 3, C, C), dtype=jnp.float32) * 0.2
    w2 = jax.random.normal(ks[2], (3, 3, C, C), dtype=jnp.float32) * 0.2

    # BatchNorm parameters / running stats (eval mode).
    g1 = jax.random.uniform(ks[3], (C,), jnp.float32, 0.5, 1.5)
    be1 = jax.random.normal(ks[4], (C,), jnp.float32) * 0.1
    rm1 = jax.random.normal(ks[5], (C,), jnp.float32) * 0.1
    rv1 = jax.random.uniform(ks[6], (C,), jnp.float32, 0.5, 1.5)
    g2 = jax.random.uniform(ks[7], (C,), jnp.float32, 0.5, 1.5)
    be2 = jax.random.normal(ks[8], (C,), jnp.float32) * 0.1
    rm2 = jax.random.normal(ks[9], (C,), jnp.float32) * 0.1
    rv2 = jnp.ones((C,), jnp.float32) * 0.9

    args = (x, w1, w2, g1, be1, rm1, rv1, g2, be2, rm2, rv2)

    out = basic_block_forward(*args)
    out = jax.block_until_ready(out)
    assert out.shape == (N, C, H, W)

    # Tight check vs. a reference with the same bf16 rounding points.
    ref_q = _matched_precision_reference(*args)
    assert jnp.allclose(out, ref_q, atol=1e-2, rtol=1e-2), \
        "mismatch vs bf16-matched reference"

    # Loose sanity check vs. exact f32 module math (bf16 operands => looser tol).
    ref = _reference_forward(*args)
    assert jnp.allclose(out, ref, atol=1e-1, rtol=1e-1), \
        "mismatch vs f32 reference"

    print("KERNEL_OK")
</pallas_src>

<mosaic_0001>
module attributes {stable_mosaic.version = 11 : i64} {
  func.func @_basic_block_kernel(%arg0: i32, %arg1: memref<1x18x18x128xbf16, #tpu.memory_space<vmem>>, %arg2: memref<1152x128xbf16, #tpu.memory_space<vmem>>, %arg3: memref<1152x128xbf16, #tpu.memory_space<vmem>>, %arg4: memref<1x128xf32, #tpu.memory_space<vmem>>, %arg5: memref<1x128xf32, #tpu.memory_space<vmem>>, %arg6: memref<1x16x16x128xbf16, #tpu.memory_space<vmem>>, %arg7: memref<1x18x48x128xbf16, #tpu.memory_space<vmem>>) attributes {dimension_semantics = [#tpu.dimension_semantics<parallel>], iteration_bounds = array<i64: 2>, scalar_prefetch = 0 : i64, scratch_operands = 1 : i64, tpu.core_type = #tpu.core_type<tc>, window_params = [{transform_indices = @transform_0, window_bounds = array<i64: 1, 18, 18, 128>}, {pipeline_mode = #tpu.pipeline_mode<synchronous>, transform_indices = @transform_1, window_bounds = array<i64: 1152, 128>}, {pipeline_mode = #tpu.pipeline_mode<synchronous>, transform_indices = @transform_2, window_bounds = array<i64: 1152, 128>}, {pipeline_mode = #tpu.pipeline_mode<synchronous>, transform_indices = @transform_3, window_bounds = array<i64: 1, 128>}, {pipeline_mode = #tpu.pipeline_mode<synchronous>, transform_indices = @transform_4, window_bounds = array<i64: 1, 128>}, {transform_indices = @transform_5, window_bounds = array<i64: 1, 16, 16, 128>}]} {
    %c0 = arith.constant 0 : index
    %c0_0 = arith.constant 0 : index
    %c0_1 = arith.constant 0 : index
    %c0_2 = arith.constant 0 : index
    %0 = vector.load %arg1[%c0, %c0_0, %c0_1, %c0_2] : memref<1x18x18x128xbf16, #tpu.memory_space<vmem>>, vector<1x16x16x128xbf16>
    %c0_3 = arith.constant 0 : index
    %c0_4 = arith.constant 0 : index
    %c1 = arith.constant 1 : index
    %c0_5 = arith.constant 0 : index
    %1 = vector.load %arg1[%c0_3, %c0_4, %c1, %c0_5] : memref<1x18x18x128xbf16, #tpu.memory_space<vmem>>, vector<1x16x16x128xbf16>
    %c0_6 = arith.constant 0 : index
    %c0_7 = arith.constant 0 : index
    %c2 = arith.constant 2 : index
    %c0_8 = arith.constant 0 : index
    %2 = vector.load %arg1[%c0_6, %c0_7, %c2, %c0_8] : memref<1x18x18x128xbf16, #tpu.memory_space<vmem>>, vector<1x16x16x128xbf16>
    %c0_9 = arith.constant 0 : index
    %c1_10 = arith.constant 1 : index
    %c0_11 = arith.constant 0 : index
    %c0_12 = arith.constant 0 : index
    %3 = vector.load %arg1[%c0_9, %c1_10, %c0_11, %c0_12] : memref<1x18x18x128xbf16, #tpu.memory_space<vmem>>, vector<1x16x16x128xbf16>
    %c0_13 = arith.constant 0 : index
    %c1_14 = arith.constant 1 : index
    %c1_15 = arith.constant 1 : index
    %c0_16 = arith.constant 0 : index
    %4 = vector.load %arg1[%c0_13, %c1_14, %c1_15, %c0_16] : memref<1x18x18x128xbf16, #tpu.memory_space<vmem>>, vector<1x16x16x128xbf16>
    %c0_17 = arith.constant 0 : index
    %c1_18 = arith.constant 1 : index
    %c2_19 = arith.constant 2 : index
    %c0_20 = arith.constant 0 : index
    %5 = vector.load %arg1[%c0_17, %c1_18, %c2_19, %c0_20] : memref<1x18x18x128xbf16, #tpu.memory_space<vmem>>, vector<1x16x16x128xbf16>
    %c0_21 = arith.constant 0 : index
    %c2_22 = arith.constant 2 : index
    %c0_23 = arith.constant 0 : index
    %c0_24 = arith.constant 0 : index
    %6 = vector.load %arg1[%c0_21, %c2_22, %c0_23, %c0_24] : memref<1x18x18x128xbf16, #tpu.memory_space<vmem>>, vector<1x16x16x128xbf16>
    %c0_25 = arith.constant 0 : index
    %c2_26 = arith.constant 2 : index
    %c1_27 = arith.constant 1 : index
    %c0_28 = arith.constant 0 : index
    %7 = vector.load %arg1[%c0_25, %c2_26, %c1_27, %c0_28] : memref<1x18x18x128xbf16, #tpu.memory_space<vmem>>, vector<1x16x16x128xbf16>
    %c0_29 = arith.constant 0 : index
    %c2_30 = arith.constant 2 : index
    %c2_31 = arith.constant 2 : index
    %c0_32 = arith.constant 0 : index
    %8 = vector.load %arg1[%c0_29, %c2_30, %c2_31, %c0_32] : memref<1x18x18x128xbf16, #tpu.memory_space<vmem>>, vector<1x16x16x128xbf16>
    %9 = tpu.concatenate %0, %1, %2, %3, %4, %5, %6, %7, %8 in 3 : vector<1x16x16x128xbf16>, vector<1x16x16x128xbf16>, vector<1x16x16x128xbf16>, vector<1x16x16x128xbf16>, vector<1x16x16x128xbf16>, vector<1x16x16x128xbf16>, vector<1x16x16x128xbf16>, vector<1x16x16x128xbf16>, vector<1x16x16x128xbf16> -> vector<1x16x16x1152xbf16>
    %10 = vector.shape_cast %9 : vector<1x16x16x1152xbf16> to vector<256x1152xbf16>
    %c0_33 = arith.constant 0 : index
    %c0_34 = arith.constant 0 : index
    %11 = vector.load %arg2[%c0_33, %c0_34] : memref<1152x128xbf16, #tpu.memory_space<vmem>>, vector<1152x128xbf16>
    %cst = arith.constant dense<0.000000e+00> : vector<256x128xf32>
    %12 = tpu.matmul %10, %11, %cst {dimension_numbers = #tpu.dot_dimension_numbers<[1], [0], [0], [1], [0, 0, 1, 1], [], []>} : vector<256x1152xbf16>, vector<1152x128xbf16>, vector<256x128xf32> -> vector<256x128xf32>
    %c0_35 = arith.constant 0 : index
    %c0_36 = arith.constant 0 : index
    %13 = vector.load %arg4[%c0_35, %c0_36] : memref<1x128xf32, #tpu.memory_space<vmem>>, vector<1x128xf32>
    %14 = vector.broadcast %13 : vector<1x128xf32> to vector<256x128xf32>
    %15 = arith.addf %12, %14 : vector<256x128xf32>
    %cst_37 = arith.constant 0.000000e+00 : f32
    %16 = vector.broadcast %cst_37 : f32 to vector<256x128xf32>
    %17 = arith.maximumf %15, %16 : vector<256x128xf32>
    %18 = arith.truncf %17 : vector<256x128xf32> to vector<256x128xbf16>
    %19 = vector.shape_cast %18 : vector<256x128xbf16> to vector<1x16x16x128xbf16>
    %c0_38 = arith.constant 0 : index
    %c1_39 = arith.constant 1 : index
    %c16 = arith.constant 16 : index
    %c0_40 = arith.constant 0 : index
    %20 = vector.load %arg7[%c0_38, %c1_39, %c16, %c0_40] : memref<1x18x48x128xbf16, #tpu.memory_space<vmem>>, vector<1x16x16x128xbf16>
    tpu.vector_store %arg7[%c0_38, %c1_39, %c16, %c0_40], %19 {strides = array<i32>} : memref<1x18x48x128xbf16, #tpu.memory_space<vmem>>, vector<1x16x16x128xbf16>,
    %cst_41 = arith.constant 0.000000e+00 : bf16
    %21 = vector.broadcast %cst_41 : bf16 to vector<1x1x48x128xbf16>
    %c0_42 = arith.constant 0 : index
    %c0_43 = arith.constant 0 : index
    %c0_44 = arith.constant 0 : index
    %c0_45 = arith.constant 0 : index
    %22 = vector.load %arg7[%c0_42, %c0_43, %c0_44, %c0_45] : memref<1x18x48x128xbf16, #tpu.memory_space<vmem>>, vector<1x1x48x128xbf16>
    tpu.vector_store %arg7[%c0_42, %c0_43, %c0_44, %c0_45], %21 {strides = array<i32>} : memref<1x18x48x128xbf16, #tpu.memory_space<vmem>>, vector<1x1x48x128xbf16>,
    %c0_46 = arith.constant 0 : index
    %c17 = arith.constant 17 : index
    %c0_47 = arith.constant 0 : index
    %c0_48 = arith.constant 0 : index
    %23 = vector.load %arg7[%c0_46, %c17, %c0_47, %c0_48] : memref<1x18x48x128xbf16, #tpu.memory_space<vmem>>, vector<1x1x48x128xbf16>
    tpu.vector_store %arg7[%c0_46, %c17, %c0_47, %c0_48], %21 {strides = array<i32>} : memref<1x18x48x128xbf16, #tpu.memory_space<vmem>>, vector<1x1x48x128xbf16>,
    %cst_49 = arith.constant 0.000000e+00 : bf16
    %24 = vector.broadcast %cst_49 : bf16 to vector<1x18x16x128xbf16>
    %c0_50 = arith.constant 0 : index
    %c0_51 = arith.constant 0 : index
    %c0_52 = arith.constant 0 : index
    %c0_53 = arith.constant 0 : index
    %25 = vector.load %arg7[%c0_50, %c0_51, %c0_52, %c0_53] : memref<1x18x48x128xbf16, #tpu.memory_space<vmem>>, vector<1x18x16x128xbf16>
    tpu.vector_store %arg7[%c0_50, %c0_51, %c0_52, %c0_53], %24 {strides = array<i32>} : memref<1x18x48x128xbf16, #tpu.memory_space<vmem>>, vector<1x18x16x128xbf16>,
    %c0_54 = arith.constant 0 : index
    %c0_55 = arith.constant 0 : index
    %c32 = arith.constant 32 : index
    %c0_56 = arith.constant 0 : index
    %26 = vector.load %arg7[%c0_54, %c0_55, %c32, %c0_56] : memref<1x18x48x128xbf16, #tpu.memory_space<vmem>>, vector<1x18x16x128xbf16>
    tpu.vector_store %arg7[%c0_54, %c0_55, %c32, %c0_56], %24 {strides = array<i32>} : memref<1x18x48x128xbf16, #tpu.memory_space<vmem>>, vector<1x18x16x128xbf16>,
    %c0_57 = arith.constant 0 : index
    %c0_58 = arith.constant 0 : index
    %c15 = arith.constant 15 : index
    %c0_59 = arith.constant 0 : index
    %27 = vector.load %arg7[%c0_57, %c0_58, %c15, %c0_59] : memref<1x18x48x128xbf16, #tpu.memory_space<vmem>>, vector<1x16x16x128xbf16>
    %c0_60 = arith.constant 0 : index
    %c0_61 = arith.constant 0 : index
    %c16_62 = arith.constant 16 : index
    %c0_63 = arith.constant 0 : index
    %28 = vector.load %arg7[%c0_60, %c0_61, %c16_62, %c0_63] : memref<1x18x48x128xbf16, #tpu.memory_space<vmem>>, vector<1x16x16x128xbf16>
    %c0_64 = arith.constant 0 : index
    %c0_65 = arith.constant 0 : index
    %c17_66 = arith.constant 17 : index
    %c0_67 = arith.constant 0 : index
    %29 = vector.load %arg7[%c0_64, %c0_65, %c17_66, %c0_67] : memref<1x18x48x128xbf16, #tpu.memory_space<vmem>>, vector<1x16x16x128xbf16>
    %c0_68 = arith.constant 0 : index
    %c1_69 = arith.constant 1 : index
    %c15_70 = arith.constant 15 : index
    %c0_71 = arith.constant 0 : index
    %30 = vector.load %arg7[%c0_68, %c1_69, %c15_70, %c0_71] : memref<1x18x48x128xbf16, #tpu.memory_space<vmem>>, vector<1x16x16x128xbf16>
    %c0_72 = arith.constant 0 : index
    %c1_73 = arith.constant 1 : index
    %c16_74 = arith.constant 16 : index
    %c0_75 = arith.constant 0 : index
    %31 = vector.load %arg7[%c0_72, %c1_73, %c16_74, %c0_75] : memref<1x18x48x128xbf16, #tpu.memory_space<vmem>>, vector<1x16x16x128xbf16>
    %c0_76 = arith.constant 0 : index
    %c1_77 = arith.constant 1 : index
    %c17_78 = arith.constant 17 : index
    %c0_79 = arith.constant 0 : index
    %32 = vector.load %arg7[%c0_76, %c1_77, %c17_78, %c0_79] : memref<1x18x48x128xbf16, #tpu.memory_space<vmem>>, vector<1x16x16x128xbf16>
    %c0_80 = arith.constant 0 : index
    %c2_81 = arith.constant 2 : index
    %c15_82 = arith.constant 15 : index
    %c0_83 = arith.constant 0 : index
    %33 = vector.load %arg7[%c0_80, %c2_81, %c15_82, %c0_83] : memref<1x18x48x128xbf16, #tpu.memory_space<vmem>>, vector<1x16x16x128xbf16>
    %c0_84 = arith.constant 0 : index
    %c2_85 = arith.constant 2 : index
    %c16_86 = arith.constant 16 : index
    %c0_87 = arith.constant 0 : index
    %34 = vector.load %arg7[%c0_84, %c2_85, %c16_86, %c0_87] : memref<1x18x48x128xbf16, #tpu.memory_space<vmem>>, vector<1x16x16x128xbf16>
    %c0_88 = arith.constant 0 : index
    %c2_89 = arith.constant 2 : index
    %c17_90 = arith.constant 17 : index
    %c0_91 = arith.constant 0 : index
    %35 = vector.load %arg7[%c0_88, %c2_89, %c17_90, %c0_91] : memref<1x18x48x128xbf16, #tpu.memory_space<vmem>>, vector<1x16x16x128xbf16>
    %36 = tpu.concatenate %27, %28, %29, %30, %31, %32, %33, %34, %35 in 3 : vector<1x16x16x128xbf16>, vector<1x16x16x128xbf16>, vector<1x16x16x128xbf16>, vector<1x16x16x128xbf16>, vector<1x16x16x128xbf16>, vector<1x16x16x128xbf16>, vector<1x16x16x128xbf16>, vector<1x16x16x128xbf16>, vector<1x16x16x128xbf16> -> vector<1x16x16x1152xbf16>
    %37 = vector.shape_cast %36 : vector<1x16x16x1152xbf16> to vector<256x1152xbf16>
    %c0_92 = arith.constant 0 : index
    %c0_93 = arith.constant 0 : index
    %38 = vector.load %arg3[%c0_92, %c0_93] : memref<1152x128xbf16, #tpu.memory_space<vmem>>, vector<1152x128xbf16>
    %cst_94 = arith.constant dense<0.000000e+00> : vector<256x128xf32>
    %39 = tpu.matmul %37, %38, %cst_94 {dimension_numbers = #tpu.dot_dimension_numbers<[1], [0], [0], [1], [0, 0, 1, 1], [], []>} : vector<256x1152xbf16>, vector<1152x128xbf16>, vector<256x128xf32> -> vector<256x128xf32>
    %c0_95 = arith.constant 0 : index
    %c1_96 = arith.constant 1 : index
    %c1_97 = arith.constant 1 : index
    %c0_98 = arith.constant 0 : index
    %40 = vector.load %arg1[%c0_95, %c1_96, %c1_97, %c0_98] : memref<1x18x18x128xbf16, #tpu.memory_space<vmem>>, vector<1x16x16x128xbf16>
    %41 = arith.extf %40 : vector<1x16x16x128xbf16> to vector<1x16x16x128xf32>
    %42 = vector.shape_cast %41 : vector<1x16x16x128xf32> to vector<256x128xf32>
    %c0_99 = arith.constant 0 : index
    %c0_100 = arith.constant 0 : index
    %43 = vector.load %arg5[%c0_99, %c0_100] : memref<1x128xf32, #tpu.memory_space<vmem>>, vector<1x128xf32>
    %44 = vector.broadcast %43 : vector<1x128xf32> to vector<256x128xf32>
    %45 = arith.addf %39, %44 : vector<256x128xf32>
    %46 = arith.addf %45, %42 : vector<256x128xf32>
    %cst_101 = arith.constant 0.000000e+00 : f32
    %47 = vector.broadcast %cst_101 : f32 to vector<256x128xf32>
    %48 = arith.maximumf %46, %47 : vector<256x128xf32>
    %49 = vector.shape_cast %48 : vector<256x128xf32> to vector<1x16x16x128xf32>
    %50 = arith.truncf %49 : vector<1x16x16x128xf32> to vector<1x16x16x128xbf16>
    %c0_102 = arith.constant 0 : index
    %c0_103 = arith.constant 0 : index
    %c0_104 = arith.constant 0 : index
    %c0_105 = arith.constant 0 : index
    %51 = vector.load %arg6[%c0_102, %c0_103, %c0_104, %c0_105] : memref<1x16x16x128xbf16, #tpu.memory_space<vmem>>, vector<1x16x16x128xbf16>
    tpu.vector_store %arg6[%c0_102, %c0_103, %c0_104, %c0_105], %50 {strides = array<i32>} : memref<1x16x16x128xbf16, #tpu.memory_space<vmem>>, vector<1x16x16x128xbf16>,
    return
  }
  func.func @transform_0(%arg0: i32) -> (i32, i32, i32, i32) {
    %c0_i32 = arith.constant 0 : i32
    %c0_i32_0 = arith.constant 0 : i32
    %c0_i32_1 = arith.constant 0 : i32
    %c0_i32_2 = arith.constant 0 : i32
    return %arg0, %c0_i32, %c0_i32_0, %c0_i32_1 : i32, i32, i32, i32
  }
  func.func @transform_1(%arg0: i32) -> (i32, i32) {
    %c0_i32 = arith.constant 0 : i32
    %c0_i32_0 = arith.constant 0 : i32
    %c0_i32_1 = arith.constant 0 : i32
    return %c0_i32, %c0_i32_0 : i32, i32
  }
  func.func @transform_2(%arg0: i32) -> (i32, i32) {
    %c0_i32 = arith.constant 0 : i32
    %c0_i32_0 = arith.constant 0 : i32
    %c0_i32_1 = arith.constant 0 : i32
    return %c0_i32, %c0_i32_0 : i32, i32
  }
  func.func @transform_3(%arg0: i32) -> (i32, i32) {
    %c0_i32 = arith.constant 0 : i32
    %c0_i32_0 = arith.constant 0 : i32
    %c0_i32_1 = arith.constant 0 : i32
    return %c0_i32, %c0_i32_0 : i32, i32
  }
  func.func @transform_4(%arg0: i32) -> (i32, i32) {
    %c0_i32 = arith.constant 0 : i32
    %c0_i32_0 = arith.constant 0 : i32
    %c0_i32_1 = arith.constant 0 : i32
    return %c0_i32, %c0_i32_0 : i32, i32
  }
  func.func @transform_5(%arg0: i32) -> (i32, i32, i32, i32) {
    %c0_i32 = arith.constant 0 : i32
    %c0_i32_0 = arith.constant 0 : i32
    %c0_i32_1 = arith.constant 0 : i32
    %c0_i32_2 = arith.constant 0 : i32
    return %arg0, %c0_i32, %c0_i32_0, %c0_i32_1 : i32, i32, i32, i32
  }
}

</mosaic_0001>

<llo_original>
// kernel: tpu_custom_call.1
$region0: #{tpu_custom_call.1}
  #allocation0 [shape = 'u32[]', space=smem, size = 0x4, offset = 0x4, fixed_abs, tag = 'smem constant byte address 0x4 - core index']
  #allocation1 [shape = 'u32[144,128]{1,0:T(1,128)}', space=vmem, size = 0x12000, scoped, tag = 'internal scratch']
  #allocation2 [shape = 'bf16[1,18,48,128]{3,2,1,0:T(16,128)(2,1)}', space=vmem, size = 0x36000, scoped, tag = 'scratch operand']
  %s0 = inlined_call_operand.vmem [shape: bf16[2,18,18,128], index: 0, kind: input, shape index: {}]
  %s1 = inlined_call_operand.vmem [shape: bf16[1152,128], index: 1, kind: input, shape index: {}]
  %s2 = inlined_call_operand.hbm [shape: bf16[1152,128], index: 2, kind: input, shape index: {}]
  %s3 = inlined_call_operand.vmem [shape: f32[1,128], index: 3, kind: input, shape index: {}]
  %s4 = inlined_call_operand.vmem [shape: f32[1,128], index: 4, kind: input, shape index: {}]
  %s5 = inlined_call_operand.hbm [shape: bf16[2,16,16,128], index: 5, kind: output, shape index: {}]
  %s6 = sld [smem:[#allocation0]]
  $region57: #{tpu_custom_call.1} parent=0
    _
  %s8 = ssub.s32 1, %s6
  %s9 = scalar_select 0, %s8, %s6
  $region1: #{tpu_custom_call.1} parent=0
    #allocation3 [shape = 'u8[294912]{0}', space=vmem, size = 0x48000, scoped, tag = 'input window, operand 2, single buffered']
    #allocation4 [shape = 's32[2]{0}', space=sflag, size = 0x8, scoped, tag = 'scoped memory for tpu_custom_call.1']
    #allocation5 [shape = 's32[2]{0}', space=sflag, size = 0x8, scoped, tag = 'scoped memory for tpu_custom_call.1']
    #allocation6 [shape = 'u8[131072]{0}', space=vmem, size = 0x20000, scoped, tag = 'output window, operand 0']
    %10 = vsyncpa [#allocation4], 0
    %11 = vsyncpa [#allocation5], 0
    %s12 = scalar_lea.sflag [#allocation5], 1
    %13 = vsyncpa %s12, 0
    loop: start=0, step=1, limit=4
    $region2: #{tpu_custom_call.1} parent=1 // loop_pre_header
      _
    $region3: #{tpu_custom_call.1} parent=1 // loop_header
      %s15 = sphi 0, %s19
      %p16 = scmp.ge.s32.totalorder %s15, 4
      %s25 = sphi 0, %s27
      %s28 = sphi 0, %s25
      %s29 = sphi 0, %s28
      %s45 = sphi 0, %s29
      %s49 = sphi 0, %s49
      %s51 = sphi 0, %s49
      %s52 = sphi 0, %s51
      %s66 = sphi 0, %s52
      %s70 = sphi 0, %s70
      %s72 = sphi 0, %s70
      %s73 = sphi 0, %s72
      %s87 = sphi 0, %s73
      %s91 = sphi 0, %s91
      %s93 = sphi 0, %s91
      %s94 = sphi 0, %s93
      %s108 = sphi 0, %s94
      %s112 = sphi 0, %s112
      %s114 = sphi 0, %s112
      %s115 = sphi 0, %s114
      %s129 = sphi 0, %s115
      %s135 = sphi 0, %s137
      %s138 = sphi 0, %s135
      %s139 = sphi 0, %s138
      %s155 = sphi 0, %s139
    $region4: #{tpu_custom_call.1} parent=1 // loop_header_branch
      %18 = sbr.rel (%p16) target = $region8
    $region5: #{tpu_custom_call.1} parent=1 // loop_body
      %s20 = ssub.s32 %s15, 1
      %s21 = ssub.s32 %s15, 2
      %s22 = sadd.s32 %s15, 1
      %s23 = ssub.s32 %s15, %s22
      %p24 = scmp.eq.s32.totalorder %s23, 0
      %s26 = sadd.s32 %s25, 1
      %s27 = scalar_select %p24, %s25, %s26
      %p30 = pneg %p24
      %p31 = scmp.eq.s32.totalorder %s15, 1
      %p32 = por %p30, %p31
      %p33 = scmp.ne.s32.totalorder %s25, %s28
      %p34 = scmp.eq.s32.totalorder %s15, 0
      %p35 = por %p33, %p34
      %p36 = scmp.ne.s32.totalorder %s25, %s28
      %p37 = scmp.eq.s32.totalorder %s20, 1
      %p38 = por %p36, %p37
      %p39 = scmp.ne.s32.totalorder %s28, %s29
      %p40 = scmp.eq.s32.totalorder %s20, 0
      %p41 = por %p39, %p40
      %p42 = scmp.ne.s32.totalorder %s28, %s29
      %p43 = scmp.eq.s32.totalorder %s21, 1
      %p44 = por %p42, %p43
      %p46 = scmp.ne.s32.totalorder %s29, %s45
      %p47 = scmp.eq.s32.totalorder %s21, 0
      %p48 = por %p46, %p47
      %s50 = sadd.s32 %s49, 1
      %p53 = scmp.eq.s32.totalorder %s15, 1
      %p54 = scmp.ne.s32.totalorder %s49, %s51
      %p55 = scmp.eq.s32.totalorder %s15, 0
      %p56 = por %p54, %p55
      %p57 = scmp.ne.s32.totalorder %s49, %s51
      %p58 = scmp.eq.s32.totalorder %s20, 1
      %p59 = por %p57, %p58
      %p60 = scmp.ne.s32.totalorder %s51, %s52
      %p61 = scmp.eq.s32.totalorder %s20, 0
      %p62 = por %p60, %p61
      %p63 = scmp.ne.s32.totalorder %s51, %s52
      %p64 = scmp.eq.s32.totalorder %s21, 1
      %p65 = por %p63, %p64
      %p67 = scmp.ne.s32.totalorder %s52, %s66
      %p68 = scmp.eq.s32.totalorder %s21, 0
      %p69 = por %p67, %p68
      %s71 = sadd.s32 %s70, 1
      %p74 = scmp.eq.s32.totalorder %s15, 1
      %p75 = scmp.ne.s32.totalorder %s70, %s72
      %p76 = scmp.eq.s32.totalorder %s15, 0
      %p77 = por %p75, %p76
      %p78 = scmp.ne.s32.totalorder %s70, %s72
      %p79 = scmp.eq.s32.totalorder %s20, 1
      %p80 = por %p78, %p79
      %p81 = scmp.ne.s32.totalorder %s72, %s73
      %p82 = scmp.eq.s32.totalorder %s20, 0
      %p83 = por %p81, %p82
      %p84 = scmp.ne.s32.totalorder %s72, %s73
      %p85 = scmp.eq.s32.totalorder %s21, 1
      %p86 = por %p84, %p85
      %p88 = scmp.ne.s32.totalorder %s73, %s87
      %p89 = scmp.eq.s32.totalorder %s21, 0
      %p90 = por %p88, %p89
      %s92 = sadd.s32 %s91, 1
      %p95 = scmp.eq.s32.totalorder %s15, 1
      %p96 = scmp.ne.s32.totalorder %s91, %s93
      %p97 = scmp.eq.s32.totalorder %s15, 0
      %p98 = por %p96, %p97
      %p99 = scmp.ne.s32.totalorder %s91, %s93
      %p100 = scmp.eq.s32.totalorder %s20, 1
      %p101 = por %p99, %p100
      %p102 = scmp.ne.s32.totalorder %s93, %s94
      %p103 = scmp.eq.s32.totalorder %s20, 0
      %p104 = por %p102, %p103
      %p105 = scmp.ne.s32.totalorder %s93, %s94
      %p106 = scmp.eq.s32.totalorder %s21, 1
      %p107 = por %p105, %p106
      %p109 = scmp.ne.s32.totalorder %s94, %s108
      %p110 = scmp.eq.s32.totalorder %s21, 0
      %p111 = por %p109, %p110
      %s113 = sadd.s32 %s112, 1
      %p116 = scmp.eq.s32.totalorder %s15, 1
      %p117 = scmp.ne.s32.totalorder %s112, %s114
      %p118 = scmp.eq.s32.totalorder %s15, 0
      %p119 = por %p117, %p118
      %p120 = scmp.ne.s32.totalorder %s112, %s114
      %p121 = scmp.eq.s32.totalorder %s20, 1
      %p122 = por %p120, %p121
      %p123 = scmp.ne.s32.totalorder %s114, %s115
      %p124 = scmp.eq.s32.totalorder %s20, 0
      %p125 = por %p123, %p124
      %p126 = scmp.ne.s32.totalorder %s114, %s115
      %p127 = scmp.eq.s32.totalorder %s21, 1
      %p128 = por %p126, %p127
      %p130 = scmp.ne.s32.totalorder %s115, %s129
      %p131 = scmp.eq.s32.totalorder %s21, 0
      %p132 = por %p130, %p131
      %s133 = ssub.s32 %s15, %s22
      %p134 = scmp.eq.s32.totalorder %s133, 0
      %s136 = sadd.s32 %s135, 1
      %s137 = scalar_select %p134, %s135, %s136
      %p140 = pneg %p134
      %p141 = scmp.eq.s32.totalorder %s15, 1
      %p142 = por %p140, %p141
      %p143 = scmp.ne.s32.totalorder %s135, %s138
      %p144 = scmp.eq.s32.totalorder %s15, 0
      %p145 = por %p143, %p144
      %p146 = scmp.ne.s32.totalorder %s135, %s138
      %p147 = scmp.eq.s32.totalorder %s20, 1
      %p148 = por %p146, %p147
      %p149 = scmp.ne.s32.totalorder %s138, %s139
      %p150 = scmp.eq.s32.totalorder %s20, 0
      %p151 = por %p149, %p150
      %p152 = scmp.ne.s32.totalorder %s138, %s139
      %p153 = scmp.eq.s32.totalorder %s21, 1
      %p154 = por %p152, %p153
      %p156 = scmp.ne.s32.totalorder %s139, %s155
      %p157 = scmp.eq.s32.totalorder %s21, 0
      %p158 = por %p156, %p157
      %p159 = scmp.le.s32.totalorder 1, %s15
      %p160 = scmp.lt.s32.totalorder %s15, 3
      %p161 = pnand %p159, %p160
      %p162 = pneg %p161
      // Predicated region
      $region9: #{tpu_custom_call.1} parent=5 // pred_check
        _
      $region10: #{tpu_custom_call.1} parent=5 // pred_check_branch
        %164 = sbr.rel (%p161) target = $region12
      $region11: #{tpu_custom_call.1} parent=5 // pred_region
        %s165 = ssub.s32 %s15, 1
        // Predicated region
        $region13: #{tpu_custom_call.1} parent=11 // pred_check
          %p166 = pneg %p62
        $region14: #{tpu_custom_call.1} parent=11 // pred_check_branch
          %168 = sbr.rel (%p166) target = $region16
        $region15: #{tpu_custom_call.1} parent=11 // pred_region
          _
        $region16: #{tpu_custom_call.1} parent=11 // pred_fallthru
          _
        // Predicated region
        $region17: #{tpu_custom_call.1} parent=11 // pred_check
          %p169 = pneg %p83
        $region18: #{tpu_custom_call.1} parent=11 // pred_check_branch
          %171 = sbr.rel (%p169) target = $region20
        $region19: #{tpu_custom_call.1} parent=11 // pred_region
          %s173 = ssub.s32 9216, 9216
          %174 = vsyncadd [#allocation4], %s173
          %s175 = sshll.u32 [#allocation3], 4
          %s176 = int_to_ptr.vmem [resolvable:$true] %s175
          %181 = dma.hbm_to_vmem [thread:$0]  %s2, 9216, %s176, [#allocation4], 64, 64, 4
        $region20: #{tpu_custom_call.1} parent=11 // pred_fallthru
          _
        // Predicated region
        $region21: #{tpu_custom_call.1} parent=11 // pred_check
          %p182 = pneg %p104
        $region22: #{tpu_custom_call.1} parent=11 // pred_check_branch
          %184 = sbr.rel (%p182) target = $region24
        $region23: #{tpu_custom_call.1} parent=11 // pred_region
          _
        $region24: #{tpu_custom_call.1} parent=11 // pred_fallthru
          _
        // Predicated region
        $region25: #{tpu_custom_call.1} parent=11 // pred_check
          %p185 = pneg %p125
        $region26: #{tpu_custom_call.1} parent=11 // pred_check_branch
          %187 = sbr.rel (%p185) target = $region28
        $region27: #{tpu_custom_call.1} parent=11 // pred_region
          _
        $region28: #{tpu_custom_call.1} parent=11 // pred_fallthru
          _
      $region12: #{tpu_custom_call.1} parent=5 // pred_fallthru
        _
      %p188 = scmp.lt.s32.totalorder %s15, 2
      // Predicated region
      $region29: #{tpu_custom_call.1} parent=5 // pred_check
        %p189 = pneg %p188
      $region30: #{tpu_custom_call.1} parent=5 // pred_check_branch
        %191 = sbr.rel (%p189) target = $region32
      $region31: #{tpu_custom_call.1} parent=5 // pred_region
        // Predicated region
        $region33: #{tpu_custom_call.1} parent=31 // pred_check
          %p192 = pneg %p35
        $region34: #{tpu_custom_call.1} parent=31 // pred_check_branch
          %194 = sbr.rel (%p192) target = $region36
        $region35: #{tpu_custom_call.1} parent=31 // pred_region
          %p195 = scmp.lt.s32.totalorder %s15, 1
          %s196 = scalar_select %p195, %s15, 1
          %s197 = smul.addr %s196, 54
          %s198 = smul.addr %s197, 4
          %s199 = scalar_lea.vmem %s0, %s198
        $region36: #{tpu_custom_call.1} parent=31 // pred_fallthru
          _
      $region32: #{tpu_custom_call.1} parent=5 // pred_fallthru
        _
      %p200 = scmp.le.s32.totalorder 1, %s15
      %p201 = scmp.lt.s32.totalorder %s15, 3
      %p202 = pnand %p200, %p201
      %p203 = pneg %p202
      // Predicated region
      $region37: #{tpu_custom_call.1} parent=5 // pred_check
        _
      $region38: #{tpu_custom_call.1} parent=5 // pred_check_branch
        %205 = sbr.rel (%p202) target = $region40
      $region39: #{tpu_custom_call.1} parent=5 // pred_region
        %s206 = ssub.s32 %s15, 1
        // Predicated region
        $region41: #{tpu_custom_call.1} parent=39 // pred_check
          %p207 = pneg %p83
        $region42: #{tpu_custom_call.1} parent=39 // pred_check_branch
          %209 = sbr.rel (%p207) target = $region44
        $region43: #{tpu_custom_call.1} parent=39 // pred_region
          %210 = dma.done [#allocation4], 9216
        $region44: #{tpu_custom_call.1} parent=39 // pred_fallthru
          _
        %p211 = scmp.lt.s32.totalorder %s20, 1
        %s212 = scalar_select %p211, %s20, 1
        %s213 = smul.addr %s212, 54
        %s214 = smul.addr %s213, 4
        %s215 = scalar_lea.vmem %s0, %s214
        %p216 = pneg %p41
        %p217 = pneg %p38
        %p218 = pneg %p62
        %p219 = pneg %p59
        %p220 = pneg %p83
        %p221 = pneg %p80
        %p222 = pneg %p104
        %p223 = pneg %p101
        %p224 = pneg %p125
        %p225 = pneg %p122
        %p226 = pneg %p151
        %p227 = pneg %p148
        %s228 = sand.u32 %s138, 1
        %s229 = scalar_lea.sflag [#allocation5], %s228
        %s230 = sand.u32 %s138, 1
        %s231 = smul.addr %s230, 128
        %s232 = scalar_lea.vmem [#allocation6], %s231
        %p233 = scmp.lt.s32.totalorder %s20, 1
        %s234 = scalar_select %p233, %s20, 1
        %s235 = smul.addr %s234, 54
        %s236 = smul.addr %s235, 4
        %s237 = scalar_lea.vmem %s0, %s236
        %v239 = vld [vmem:[%s237] sm:$0xf]
        %v240 = vld [vmem:[%s237 + $0x4] sm:$0xf]
        %v241 = vld [vmem:[%s237 + $0xc] sm:$0xf]
        %v242 = vld [vmem:[%s237 + $0x10] sm:$0xf]
        %v243 = vld [vmem:[%s237 + $0x18] sm:$0xf]
        %v244 = vld [vmem:[%s237 + $0x1c] sm:$0xf]
        %v245 = vld [vmem:[%s237 + $0x24] sm:$0xf]
        %v246 = vld [vmem:[%s237 + $0x28] sm:$0xf]
        %v247 = vld [vmem:[%s237 + $0x30] sm:$0xf]
        %v248 = vld [vmem:[%s237 + $0x34] sm:$0xf]
        %v249 = vld [vmem:[%s237 + $0x3c] sm:$0xf]
        %v250 = vld [vmem:[%s237 + $0x40] sm:$0xf]
        %v251 = vld [vmem:[%s237 + $0x48] sm:$0xf]
        %v252 = vld [vmem:[%s237 + $0x4c] sm:$0xf]
        %v253 = vld [vmem:[%s237 + $0x54] sm:$0xf]
        %v254 = vld [vmem:[%s237 + $0x58] sm:$0xf]
        %v255 = vld [vmem:[%s237 + $0x60] sm:$0xf]
        %v256 = vld [vmem:[%s237 + $0x64] sm:$0xf]
        %v257 = vld [vmem:[%s237 + $0x6c] sm:$0xf]
        %v258 = vld [vmem:[%s237 + $0x70] sm:$0xf]
        %v259 = vld [vmem:[%s237 + $0x78] sm:$0xf]
        %v260 = vld [vmem:[%s237 + $0x7c] sm:$0xf]
        %v261 = vld [vmem:[%s237 + $0x84] sm:$0xf]
        %v262 = vld [vmem:[%s237 + $0x88] sm:$0xf]
        %v263 = vld [vmem:[%s237 + $0x90] sm:$0xf]
        %v264 = vld [vmem:[%s237 + $0x94] sm:$0xf]
        %v265 = vld [vmem:[%s237 + $0x9c] sm:$0xf]
        %v266 = vld [vmem:[%s237 + $0xa0] sm:$0xf]
        %v267 = vld [vmem:[%s237 + $0xa8] sm:$0xf]
        %v268 = vld [vmem:[%s237 + $0xac] sm:$0xf]
        %v269 = vld [vmem:[%s237 + $0xb4] sm:$0xf]
        %v270 = vld [vmem:[%s237 + $0xb8] sm:$0xf]
        %v271 = vld [vmem:[%s237 + $0x8] sm:$0x1]
        %v272 = vld [vmem:[%s237 + $0x14] sm:$0x1]
        %v273 = vld [vmem:[%s237 + $0x20] sm:$0x1]
        %v274 = vld [vmem:[%s237 + $0x2c] sm:$0x1]
        %v275 = vld [vmem:[%s237 + $0x38] sm:$0x1]
        %v276 = vld [vmem:[%s237 + $0x44] sm:$0x1]
        %v277 = vld [vmem:[%s237 + $0x50] sm:$0x1]
        %v278 = vld [vmem:[%s237 + $0x5c] sm:$0x1]
        %v279 = vld [vmem:[%s237 + $0x68] sm:$0x1]
        %v280 = vld [vmem:[%s237 + $0x74] sm:$0x1]
        %v281 = vld [vmem:[%s237 + $0x80] sm:$0x1]
        %v282 = vld [vmem:[%s237 + $0x8c] sm:$0x1]
        %v283 = vld [vmem:[%s237 + $0x98] sm:$0x1]
        %v284 = vld [vmem:[%s237 + $0xa4] sm:$0x1]
        %v285 = vld [vmem:[%s237 + $0xb0] sm:$0x1]
        %v286 = vld [vmem:[%s237 + $0xbc] sm:$0x1]
        %v287 = vld [vmem:[%s237] sm:$0xe]
        %v288 = vld [vmem:[%s237 + $0xc] sm:$0xe]
        %v289 = vld [vmem:[%s237 + $0x18] sm:$0xe]
        %v290 = vld [vmem:[%s237 + $0x24] sm:$0xe]
        %v291 = vld [vmem:[%s237 + $0x30] sm:$0xe]
        %v292 = vld [vmem:[%s237 + $0x3c] sm:$0xe]
        %v293 = vld [vmem:[%s237 + $0x48] sm:$0xe]
        %v294 = vld [vmem:[%s237 + $0x54] sm:$0xe]
        %v295 = vld [vmem:[%s237 + $0x60] sm:$0xe]
        %v296 = vld [vmem:[%s237 + $0x6c] sm:$0xe]
        %v297 = vld [vmem:[%s237 + $0x78] sm:$0xe]
        %v298 = vld [vmem:[%s237 + $0x84] sm:$0xe]
        %v299 = vld [vmem:[%s237 + $0x90] sm:$0xe]
        %v300 = vld [vmem:[%s237 + $0x9c] sm:$0xe]
        %v301 = vld [vmem:[%s237 + $0xa8] sm:$0xe]
        %v302 = vld [vmem:[%s237 + $0xb4] sm:$0xe]
        %s303 = scalar_lea.vmem %s237, 12
        %v304 = vld [vmem:[%s303] sm:$0xf]
        %v305 = vld [vmem:[%s303 + $0x4] sm:$0xf]
        %v306 = vld [vmem:[%s303 + $0xc] sm:$0xf]
        %v307 = vld [vmem:[%s303 + $0x10] sm:$0xf]
        %v308 = vld [vmem:[%s303 + $0x18] sm:$0xf]
        %v309 = vld [vmem:[%s303 + $0x1c] sm:$0xf]
        %v310 = vld [vmem:[%s303 + $0x24] sm:$0xf]
        %v311 = vld [vmem:[%s303 + $0x28] sm:$0xf]
        %v312 = vld [vmem:[%s303 + $0x30] sm:$0xf]
        %v313 = vld [vmem:[%s303 + $0x34] sm:$0xf]
        %v314 = vld [vmem:[%s303 + $0x3c] sm:$0xf]
        %v315 = vld [vmem:[%s303 + $0x40] sm:$0xf]
        %v316 = vld [vmem:[%s303 + $0x48] sm:$0xf]
        %v317 = vld [vmem:[%s303 + $0x4c] sm:$0xf]
        %v318 = vld [vmem:[%s303 + $0x54] sm:$0xf]
        %v319 = vld [vmem:[%s303 + $0x58] sm:$0xf]
        %v320 = vld [vmem:[%s303 + $0x60] sm:$0xf]
        %v321 = vld [vmem:[%s303 + $0x64] sm:$0xf]
        %v322 = vld [vmem:[%s303 + $0x6c] sm:$0xf]
        %v323 = vld [vmem:[%s303 + $0x70] sm:$0xf]
        %v324 = vld [vmem:[%s303 + $0x78] sm:$0xf]
        %v325 = vld [vmem:[%s303 + $0x7c] sm:$0xf]
        %v326 = vld [vmem:[%s303 + $0x84] sm:$0xf]
        %v327 = vld [vmem:[%s303 + $0x88] sm:$0xf]
        %v328 = vld [vmem:[%s303 + $0x90] sm:$0xf]
        %v329 = vld [vmem:[%s303 + $0x94] sm:$0xf]
        %v330 = vld [vmem:[%s303 + $0x9c] sm:$0xf]
        %v331 = vld [vmem:[%s303 + $0xa0] sm:$0xf]
        %v332 = vld [vmem:[%s303 + $0xa8] sm:$0xf]
        %v333 = vld [vmem:[%s303 + $0xac] sm:$0xf]
        %v334 = vld [vmem:[%s303 + $0xb4] sm:$0xf]
        %v335 = vld [vmem:[%s303 + $0xb8] sm:$0xf]
        %v336 = vld [vmem:[%s303 + $0x8] sm:$0x1]
        %v337 = vld [vmem:[%s303 + $0x14] sm:$0x1]
        %v338 = vld [vmem:[%s303 + $0x20] sm:$0x1]
        %v339 = vld [vmem:[%s303 + $0x2c] sm:$0x1]
        %v340 = vld [vmem:[%s303 + $0x38] sm:$0x1]
        %v341 = vld [vmem:[%s303 + $0x44] sm:$0x1]
        %v342 = vld [vmem:[%s303 + $0x50] sm:$0x1]
        %v343 = vld [vmem:[%s303 + $0x5c] sm:$0x1]
        %v344 = vld [vmem:[%s303 + $0x68] sm:$0x1]
        %v345 = vld [vmem:[%s303 + $0x74] sm:$0x1]
        %v346 = vld [vmem:[%s303 + $0x80] sm:$0x1]
        %v347 = vld [vmem:[%s303 + $0x8c] sm:$0x1]
        %v348 = vld [vmem:[%s303 + $0x98] sm:$0x1]
        %v349 = vld [vmem:[%s303 + $0xa4] sm:$0x1]
        %v350 = vld [vmem:[%s303 + $0xb0] sm:$0x1]
        %v351 = vld [vmem:[%s303 + $0xbc] sm:$0x1]
        %v352 = vld [vmem:[%s303] sm:$0xe]
        %v353 = vld [vmem:[%s303 + $0xc] sm:$0xe]
        %v354 = vld [vmem:[%s303 + $0x18] sm:$0xe]
        %v355 = vld [vmem:[%s303 + $0x24] sm:$0xe]
        %v356 = vld [vmem:[%s303 + $0x30] sm:$0xe]
        %v357 = vld [vmem:[%s303 + $0x3c] sm:$0xe]
        %v358 = vld [vmem:[%s303 + $0x48] sm:$0xe]
        %v359 = vld [vmem:[%s303 + $0x54] sm:$0xe]
        %v360 = vld [vmem:[%s303 + $0x60] sm:$0xe]
        %v361 = vld [vmem:[%s303 + $0x6c] sm:$0xe]
        %v362 = vld [vmem:[%s303 + $0x78] sm:$0xe]
        %v363 = vld [vmem:[%s303 + $0x84] sm:$0xe]
        %v364 = vld [vmem:[%s303 + $0x90] sm:$0xe]
        %v365 = vld [vmem:[%s303 + $0x9c] sm:$0xe]
        %v366 = vld [vmem:[%s303 + $0xa8] sm:$0xe]
        %v367 = vld [vmem:[%s303 + $0xb4] sm:$0xe]
        %s368 = scalar_lea.vmem %s237, 24
        %v369 = vld [vmem:[%s368] sm:$0xf]
        %v370 = vld [vmem:[%s368 + $0x4] sm:$0xf]
        %v371 = vld [vmem:[%s368 + $0xc] sm:$0xf]
        %v372 = vld [vmem:[%s368 + $0x10] sm:$0xf]
        %v373 = vld [vmem:[%s368 + $0x18] sm:$0xf]
        %v374 = vld [vmem:[%s368 + $0x1c] sm:$0xf]
        %v375 = vld [vmem:[%s368 + $0x24] sm:$0xf]
        %v376 = vld [vmem:[%s368 + $0x28] sm:$0xf]
        %v377 = vld [vmem:[%s368 + $0x30] sm:$0xf]
        %v378 = vld [vmem:[%s368 + $0x34] sm:$0xf]
        %v379 = vld [vmem:[%s368 + $0x3c] sm:$0xf]
        %v380 = vld [vmem:[%s368 + $0x40] sm:$0xf]
        %v381 = vld [vmem:[%s368 + $0x48] sm:$0xf]
        %v382 = vld [vmem:[%s368 + $0x4c] sm:$0xf]
        %v383 = vld [vmem:[%s368 + $0x54] sm:$0xf]
        %v384 = vld [vmem:[%s368 + $0x58] sm:$0xf]
        %v385 = vld [vmem:[%s368 + $0x60] sm:$0xf]
        %v386 = vld [vmem:[%s368 + $0x64] sm:$0xf]
        %v387 = vld [vmem:[%s368 + $0x6c] sm:$0xf]
        %v388 = vld [vmem:[%s368 + $0x70] sm:$0xf]
        %v389 = vld [vmem:[%s368 + $0x78] sm:$0xf]
        %v390 = vld [vmem:[%s368 + $0x7c] sm:$0xf]
        %v391 = vld [vmem:[%s368 + $0x84] sm:$0xf]
        %v392 = vld [vmem:[%s368 + $0x88] sm:$0xf]
        %v393 = vld [vmem:[%s368 + $0x90] sm:$0xf]
        %v394 = vld [vmem:[%s368 + $0x94] sm:$0xf]
        %v395 = vld [vmem:[%s368 + $0x9c] sm:$0xf]
        %v396 = vld [vmem:[%s368 + $0xa0] sm:$0xf]
        %v397 = vld [vmem:[%s368 + $0xa8] sm:$0xf]
        %v398 = vld [vmem:[%s368 + $0xac] sm:$0xf]
        %v399 = vld [vmem:[%s368 + $0xb4] sm:$0xf]
        %v400 = vld [vmem:[%s368 + $0xb8] sm:$0xf]
        %v401 = vld [vmem:[%s368 + $0x8] sm:$0x1]
        %v402 = vld [vmem:[%s368 + $0x14] sm:$0x1]
        %v403 = vld [vmem:[%s368 + $0x20] sm:$0x1]
        %v404 = vld [vmem:[%s368 + $0x2c] sm:$0x1]
        %v405 = vld [vmem:[%s368 + $0x38] sm:$0x1]
        %v406 = vld [vmem:[%s368 + $0x44] sm:$0x1]
        %v407 = vld [vmem:[%s368 + $0x50] sm:$0x1]
        %v408 = vld [vmem:[%s368 + $0x5c] sm:$0x1]
        %v409 = vld [vmem:[%s368 + $0x68] sm:$0x1]
        %v410 = vld [vmem:[%s368 + $0x74] sm:$0x1]
        %v411 = vld [vmem:[%s368 + $0x80] sm:$0x1]
        %v412 = vld [vmem:[%s368 + $0x8c] sm:$0x1]
        %v413 = vld [vmem:[%s368 + $0x98] sm:$0x1]
        %v414 = vld [vmem:[%s368 + $0xa4] sm:$0x1]
        %v415 = vld [vmem:[%s368 + $0xb0] sm:$0x1]
        %v416 = vld [vmem:[%s368 + $0xbc] sm:$0x1]
        %v417 = vld [vmem:[%s368] sm:$0xe]
        %v418 = vld [vmem:[%s368 + $0xc] sm:$0xe]
        %v419 = vld [vmem:[%s368 + $0x18] sm:$0xe]
        %v420 = vld [vmem:[%s368 + $0x24] sm:$0xe]
        %v421 = vld [vmem:[%s368 + $0x30] sm:$0xe]
        %v422 = vld [vmem:[%s368 + $0x3c] sm:$0xe]
        %v423 = vld [vmem:[%s368 + $0x48] sm:$0xe]
        %v424 = vld [vmem:[%s368 + $0x54] sm:$0xe]
        %v425 = vld [vmem:[%s368 + $0x60] sm:$0xe]
        %v426 = vld [vmem:[%s368 + $0x6c] sm:$0xe]
        %v427 = vld [vmem:[%s368 + $0x78] sm:$0xe]
        %v428 = vld [vmem:[%s368 + $0x84] sm:$0xe]
        %v429 = vld [vmem:[%s368 + $0x90] sm:$0xe]
        %v430 = vld [vmem:[%s368 + $0x9c] sm:$0xe]
        %v431 = vld [vmem:[%s368 + $0xa8] sm:$0xe]
        %v432 = vld [vmem:[%s368 + $0xb4] sm:$0xe]
        %v465 = vunpack.c.l.b16 %v239
        %v466 = vunpack.c.l.b16 %v240
        %v467 = vunpack.c.l.b16 %v241
        %v468 = vunpack.c.l.b16 %v242
        %v469 = vunpack.c.l.b16 %v243
        %v470 = vunpack.c.l.b16 %v244
        %v471 = vunpack.c.l.b16 %v245
        %v472 = vunpack.c.l.b16 %v246
        %v473 = vunpack.c.l.b16 %v247
        %v474 = vunpack.c.l.b16 %v248
        %v475 = vunpack.c.l.b16 %v249
        %v476 = vunpack.c.l.b16 %v250
        %v477 = vunpack.c.l.b16 %v251
        %v478 = vunpack.c.l.b16 %v252
        %v479 = vunpack.c.l.b16 %v253
        %v480 = vunpack.c.l.b16 %v254
        %v481 = vunpack.c.l.b16 %v255
        %v482 = vunpack.c.l.b16 %v256
        %v483 = vunpack.c.l.b16 %v257
        %v484 = vunpack.c.l.b16 %v258
        %v485 = vunpack.c.l.b16 %v259
        %v486 = vunpack.c.l.b16 %v260
        %v487 = vunpack.c.l.b16 %v261
        %v488 = vunpack.c.l.b16 %v262
        %v489 = vunpack.c.l.b16 %v263
        %v490 = vunpack.c.l.b16 %v264
        %v491 = vunpack.c.l.b16 %v265
        %v492 = vunpack.c.l.b16 %v266
        %v493 = vunpack.c.l.b16 %v267
        %v494 = vunpack.c.l.b16 %v268
        %v495 = vunpack.c.l.b16 %v269
        %v496 = vunpack.c.l.b16 %v270
        %v497 = vpack.c.b16 %v466, %v465
        %v498 = vpack.c.b16 %v468, %v467
        %v499 = vpack.c.b16 %v470, %v469
        %v500 = vpack.c.b16 %v472, %v471
        %v501 = vpack.c.b16 %v474, %v473
        %v502 = vpack.c.b16 %v476, %v475
        %v503 = vpack.c.b16 %v478, %v477
        %v504 = vpack.c.b16 %v480, %v479
        %v505 = vpack.c.b16 %v482, %v481
        %v506 = vpack.c.b16 %v484, %v483
        %v507 = vpack.c.b16 %v486, %v485
        %v508 = vpack.c.b16 %v488, %v487
        %v509 = vpack.c.b16 %v490, %v489
        %v510 = vpack.c.b16 %v492, %v491
        %v511 = vpack.c.b16 %v494, %v493
        %v512 = vpack.c.b16 %v496, %v495
        %v545 = vunpack.c.l.b16 %v271
        %v546 = vunpack.c.l.b16 %v272
        %v547 = vunpack.c.l.b16 %v273
        %v548 = vunpack.c.l.b16 %v274
        %v549 = vunpack.c.l.b16 %v275
        %v550 = vunpack.c.l.b16 %v276
        %v551 = vunpack.c.l.b16 %v277
        %v552 = vunpack.c.l.b16 %v278
        %v553 = vunpack.c.l.b16 %v279
        %v554 = vunpack.c.l.b16 %v280
        %v555 = vunpack.c.l.b16 %v281
        %v556 = vunpack.c.l.b16 %v282
        %v557 = vunpack.c.l.b16 %v283
        %v558 = vunpack.c.l.b16 %v284
        %v559 = vunpack.c.l.b16 %v285
        %v560 = vunpack.c.l.b16 %v286
        %v561 = vpack.c.b16 %v545, %v545
        %v562 = vpack.c.b16 %v546, %v546
        %v563 = vpack.c.b16 %v547, %v547
        %v564 = vpack.c.b16 %v548, %v548
        %v565 = vpack.c.b16 %v549, %v549
        %v566 = vpack.c.b16 %v550, %v550
        %v567 = vpack.c.b16 %v551, %v551
        %v568 = vpack.c.b16 %v552, %v552
        %v569 = vpack.c.b16 %v553, %v553
        %v570 = vpack.c.b16 %v554, %v554
        %v571 = vpack.c.b16 %v555, %v555
        %v572 = vpack.c.b16 %v556, %v556
        %v573 = vpack.c.b16 %v557, %v557
        %v574 = vpack.c.b16 %v558, %v558
        %v575 = vpack.c.b16 %v559, %v559
        %v576 = vpack.c.b16 %v560, %v560
        %vm577 = vsmask.f32 7424
        %v579 = vshrl.u32 %v497, 16
        %v581 = vshll.u32 %v497, 16
        %v583 = vrot.slane %v581, 1
        %v584 = vor.u32 %v579, %v583
        %v586 = vshll.u32 %v561, 16
        %v588 = vrot.slane %v586, 1
        %v589 = vsel %vm577, %v584, %v588
        %v591 = vshrl.u32 %v498, 16
        %v593 = vshll.u32 %v498, 16
        %v595 = vrot.slane %v593, 1
        %v596 = vor.u32 %v591, %v595
        %v598 = vshll.u32 %v562, 16
        %v600 = vrot.slane %v598, 1
        %v601 = vsel %vm577, %v596, %v600
        %v603 = vshrl.u32 %v499, 16
        %v605 = vshll.u32 %v499, 16
        %v607 = vrot.slane %v605, 1
        %v608 = vor.u32 %v603, %v607
        %v610 = vshll.u32 %v563, 16
        %v612 = vrot.slane %v610, 1
        %v613 = vsel %vm577, %v608, %v612
        %v615 = vshrl.u32 %v500, 16
        %v617 = vshll.u32 %v500, 16
        %v619 = vrot.slane %v617, 1
        %v620 = vor.u32 %v615, %v619
        %v622 = vshll.u32 %v564, 16
        %v624 = vrot.slane %v622, 1
        %v625 = vsel %vm577, %v620, %v624
        %v627 = vshrl.u32 %v501, 16
        %v629 = vshll.u32 %v501, 16
        %v631 = vrot.slane %v629, 1
        %v632 = vor.u32 %v627, %v631
        %v634 = vshll.u32 %v565, 16
        %v636 = vrot.slane %v634, 1
        %v637 = vsel %vm577, %v632, %v636
        %v639 = vshrl.u32 %v502, 16
        %v641 = vshll.u32 %v502, 16
        %v643 = vrot.slane %v641, 1
        %v644 = vor.u32 %v639, %v643
        %v646 = vshll.u32 %v566, 16
        %v648 = vrot.slane %v646, 1
        %v649 = vsel %vm577, %v644, %v648
        %v651 = vshrl.u32 %v503, 16
        %v653 = vshll.u32 %v503, 16
        %v655 = vrot.slane %v653, 1
        %v656 = vor.u32 %v651, %v655
        %v658 = vshll.u32 %v567, 16
        %v660 = vrot.slane %v658, 1
        %v661 = vsel %vm577, %v656, %v660
        %v663 = vshrl.u32 %v504, 16
        %v665 = vshll.u32 %v504, 16
        %v667 = vrot.slane %v665, 1
        %v668 = vor.u32 %v663, %v667
        %v670 = vshll.u32 %v568, 16
        %v672 = vrot.slane %v670, 1
        %v673 = vsel %vm577, %v668, %v672
        %v675 = vshrl.u32 %v505, 16
        %v677 = vshll.u32 %v505, 16
        %v679 = vrot.slane %v677, 1
        %v680 = vor.u32 %v675, %v679
        %v682 = vshll.u32 %v569, 16
        %v684 = vrot.slane %v682, 1
        %v685 = vsel %vm577, %v680, %v684
        %v687 = vshrl.u32 %v506, 16
        %v689 = vshll.u32 %v506, 16
        %v691 = vrot.slane %v689, 1
        %v692 = vor.u32 %v687, %v691
        %v694 = vshll.u32 %v570, 16
        %v696 = vrot.slane %v694, 1
        %v697 = vsel %vm577, %v692, %v696
        %v699 = vshrl.u32 %v507, 16
        %v701 = vshll.u32 %v507, 16
        %v703 = vrot.slane %v701, 1
        %v704 = vor.u32 %v699, %v703
        %v706 = vshll.u32 %v571, 16
        %v708 = vrot.slane %v706, 1
        %v709 = vsel %vm577, %v704, %v708
        %v711 = vshrl.u32 %v508, 16
        %v713 = vshll.u32 %v508, 16
        %v715 = vrot.slane %v713, 1
        %v716 = vor.u32 %v711, %v715
        %v718 = vshll.u32 %v572, 16
        %v720 = vrot.slane %v718, 1
        %v721 = vsel %vm577, %v716, %v720
        %v723 = vshrl.u32 %v509, 16
        %v725 = vshll.u32 %v509, 16
        %v727 = vrot.slane %v725, 1
        %v728 = vor.u32 %v723, %v727
        %v730 = vshll.u32 %v573, 16
        %v732 = vrot.slane %v730, 1
        %v733 = vsel %vm577, %v728, %v732
        %v735 = vshrl.u32 %v510, 16
        %v737 = vshll.u32 %v510, 16
        %v739 = vrot.slane %v737, 1
        %v740 = vor.u32 %v735, %v739
        %v742 = vshll.u32 %v574, 16
        %v744 = vrot.slane %v742, 1
        %v745 = vsel %vm577, %v740, %v744
        %v747 = vshrl.u32 %v511, 16
        %v749 = vshll.u32 %v511, 16
        %v751 = vrot.slane %v749, 1
        %v752 = vor.u32 %v747, %v751
        %v754 = vshll.u32 %v575, 16
        %v756 = vrot.slane %v754, 1
        %v757 = vsel %vm577, %v752, %v756
        %v759 = vshrl.u32 %v512, 16
        %v761 = vshll.u32 %v512, 16
        %v763 = vrot.slane %v761, 1
        %v764 = vor.u32 %v759, %v763
        %v766 = vshll.u32 %v576, 16
        %v768 = vrot.slane %v766, 1
        %v769 = vsel %vm577, %v764, %v768
        %v802 = vunpack.c.l.b16 %v287
        %v803 = vunpack.c.l.b16 %v288
        %v804 = vunpack.c.l.b16 %v289
        %v805 = vunpack.c.l.b16 %v290
        %v806 = vunpack.c.l.b16 %v291
        %v807 = vunpack.c.l.b16 %v292
        %v808 = vunpack.c.l.b16 %v293
        %v809 = vunpack.c.l.b16 %v294
        %v810 = vunpack.c.l.b16 %v295
        %v811 = vunpack.c.l.b16 %v296
        %v812 = vunpack.c.l.b16 %v297
        %v813 = vunpack.c.l.b16 %v298
        %v814 = vunpack.c.l.b16 %v299
        %v815 = vunpack.c.l.b16 %v300
        %v816 = vunpack.c.l.b16 %v301
        %v817 = vunpack.c.l.b16 %v302
        %v818 = vpack.c.b16 %v466, %v802
        %v819 = vpack.c.b16 %v468, %v803
        %v820 = vpack.c.b16 %v470, %v804
        %v821 = vpack.c.b16 %v472, %v805
        %v822 = vpack.c.b16 %v474, %v806
        %v823 = vpack.c.b16 %v476, %v807
        %v824 = vpack.c.b16 %v478, %v808
        %v825 = vpack.c.b16 %v480, %v809
        %v826 = vpack.c.b16 %v482, %v810
        %v827 = vpack.c.b16 %v484, %v811
        %v828 = vpack.c.b16 %v486, %v812
        %v829 = vpack.c.b16 %v488, %v813
        %v830 = vpack.c.b16 %v490, %v814
        %v831 = vpack.c.b16 %v492, %v815
        %v832 = vpack.c.b16 %v494, %v816
        %v833 = vpack.c.b16 %v496, %v817
        %vm834 = vcmask 1046528
        %v835 = vrot.slane %v818, 1
        %v836 = vrot.slane %v561, 1
        %v837 = vsel %vm834, %v835, %v836
        %v838 = vrot.slane %v819, 1
        %v839 = vrot.slane %v562, 1
        %v840 = vsel %vm834, %v838, %v839
        %v841 = vrot.slane %v820, 1
        %v842 = vrot.slane %v563, 1
        %v843 = vsel %vm834, %v841, %v842
        %v844 = vrot.slane %v821, 1
        %v845 = vrot.slane %v564, 1
        %v846 = vsel %vm834, %v844, %v845
        %v847 = vrot.slane %v822, 1
        %v848 = vrot.slane %v565, 1
        %v849 = vsel %vm834, %v847, %v848
        %v850 = vrot.slane %v823, 1
        %v851 = vrot.slane %v566, 1
        %v852 = vsel %vm834, %v850, %v851
        %v853 = vrot.slane %v824, 1
        %v854 = vrot.slane %v567, 1
        %v855 = vsel %vm834, %v853, %v854
        %v856 = vrot.slane %v825, 1
        %v857 = vrot.slane %v568, 1
        %v858 = vsel %vm834, %v856, %v857
        %v859 = vrot.slane %v826, 1
        %v860 = vrot.slane %v569, 1
        %v861 = vsel %vm834, %v859, %v860
        %v862 = vrot.slane %v827, 1
        %v863 = vrot.slane %v570, 1
        %v864 = vsel %vm834, %v862, %v863
        %v865 = vrot.slane %v828, 1
        %v866 = vrot.slane %v571, 1
        %v867 = vsel %vm834, %v865, %v866
        %v868 = vrot.slane %v829, 1
        %v869 = vrot.slane %v572, 1
        %v870 = vsel %vm834, %v868, %v869
        %v871 = vrot.slane %v830, 1
        %v872 = vrot.slane %v573, 1
        %v873 = vsel %vm834, %v871, %v872
        %v874 = vrot.slane %v831, 1
        %v875 = vrot.slane %v574, 1
        %v876 = vsel %vm834, %v874, %v875
        %v877 = vrot.slane %v832, 1
        %v878 = vrot.slane %v575, 1
        %v879 = vsel %vm834, %v877, %v878
        %v880 = vrot.slane %v833, 1
        %v881 = vrot.slane %v576, 1
        %v882 = vsel %vm834, %v880, %v881
        %v931 = vunpack.c.l.b16 %v304
        %v932 = vunpack.c.l.b16 %v305
        %v933 = vunpack.c.l.b16 %v306
        %v934 = vunpack.c.l.b16 %v307
        %v935 = vunpack.c.l.b16 %v308
        %v936 = vunpack.c.l.b16 %v309
        %v937 = vunpack.c.l.b16 %v310
        %v938 = vunpack.c.l.b16 %v311
        %v939 = vunpack.c.l.b16 %v312
        %v940 = vunpack.c.l.b16 %v313
        %v941 = vunpack.c.l.b16 %v314
        %v942 = vunpack.c.l.b16 %v315
        %v943 = vunpack.c.l.b16 %v316
        %v944 = vunpack.c.l.b16 %v317
        %v945 = vunpack.c.l.b16 %v318
        %v946 = vunpack.c.l.b16 %v319
        %v947 = vunpack.c.l.b16 %v320
        %v948 = vunpack.c.l.b16 %v321
        %v949 = vunpack.c.l.b16 %v322
        %v950 = vunpack.c.l.b16 %v323
        %v951 = vunpack.c.l.b16 %v324
        %v952 = vunpack.c.l.b16 %v325
        %v953 = vunpack.c.l.b16 %v326
        %v954 = vunpack.c.l.b16 %v327
        %v955 = vunpack.c.l.b16 %v328
        %v956 = vunpack.c.l.b16 %v329
        %v957 = vunpack.c.l.b16 %v330
        %v958 = vunpack.c.l.b16 %v331
        %v959 = vunpack.c.l.b16 %v332
        %v960 = vunpack.c.l.b16 %v333
        %v961 = vunpack.c.l.b16 %v334
        %v962 = vunpack.c.l.b16 %v335
        %v963 = vpack.c.b16 %v932, %v931
        %v964 = vpack.c.b16 %v934, %v933
        %v965 = vpack.c.b16 %v936, %v935
        %v966 = vpack.c.b16 %v938, %v937
        %v967 = vpack.c.b16 %v940, %v939
        %v968 = vpack.c.b16 %v942, %v941
        %v969 = vpack.c.b16 %v944, %v943
        %v970 = vpack.c.b16 %v946, %v945
        %v971 = vpack.c.b16 %v948, %v947
        %v972 = vpack.c.b16 %v950, %v949
        %v973 = vpack.c.b16 %v952, %v951
        %v974 = vpack.c.b16 %v954, %v953
        %v975 = vpack.c.b16 %v956, %v955
        %v976 = vpack.c.b16 %v958, %v957
        %v977 = vpack.c.b16 %v960, %v959
        %v978 = vpack.c.b16 %v962, %v961
        %v1011 = vunpack.c.l.b16 %v336
        %v1012 = vunpack.c.l.b16 %v337
        %v1013 = vunpack.c.l.b16 %v338
        %v1014 = vunpack.c.l.b16 %v339
        %v1015 = vunpack.c.l.b16 %v340
        %v1016 = vunpack.c.l.b16 %v341
        %v1017 = vunpack.c.l.b16 %v342
        %v1018 = vunpack.c.l.b16 %v343
        %v1019 = vunpack.c.l.b16 %v344
        %v1020 = vunpack.c.l.b16 %v345
        %v1021 = vunpack.c.l.b16 %v346
        %v1022 = vunpack.c.l.b16 %v347
        %v1023 = vunpack.c.l.b16 %v348
        %v1024 = vunpack.c.l.b16 %v349
        %v1025 = vunpack.c.l.b16 %v350
        %v1026 = vunpack.c.l.b16 %v351
        %v1027 = vpack.c.b16 %v1011, %v1011
        %v1028 = vpack.c.b16 %v1012, %v1012
        %v1029 = vpack.c.b16 %v1013, %v1013
        %v1030 = vpack.c.b16 %v1014, %v1014
        %v1031 = vpack.c.b16 %v1015, %v1015
        %v1032 = vpack.c.b16 %v1016, %v1016
        %v1033 = vpack.c.b16 %v1017, %v1017
        %v1034 = vpack.c.b16 %v1018, %v1018
        %v1035 = vpack.c.b16 %v1019, %v1019
        %v1036 = vpack.c.b16 %v1020, %v1020
        %v1037 = vpack.c.b16 %v1021, %v1021
        %v1038 = vpack.c.b16 %v1022, %v1022
        %v1039 = vpack.c.b16 %v1023, %v1023
        %v1040 = vpack.c.b16 %v1024, %v1024
        %v1041 = vpack.c.b16 %v1025, %v1025
        %v1042 = vpack.c.b16 %v1026, %v1026
        %v1044 = vshrl.u32 %v963, 16
        %v1046 = vshll.u32 %v963, 16
        %v1048 = vrot.slane %v1046, 1
        %v1049 = vor.u32 %v1044, %v1048
        %v1051 = vshll.u32 %v1027, 16
        %v1053 = vrot.slane %v1051, 1
        %v1054 = vsel %vm577, %v1049, %v1053
        %v1056 = vshrl.u32 %v964, 16
        %v1058 = vshll.u32 %v964, 16
        %v1060 = vrot.slane %v1058, 1
        %v1061 = vor.u32 %v1056, %v1060
        %v1063 = vshll.u32 %v1028, 16
        %v1065 = vrot.slane %v1063, 1
        %v1066 = vsel %vm577, %v1061, %v1065
        %v1068 = vshrl.u32 %v965, 16
        %v1070 = vshll.u32 %v965, 16
        %v1072 = vrot.slane %v1070, 1
        %v1073 = vor.u32 %v1068, %v1072
        %v1075 = vshll.u32 %v1029, 16
        %v1077 = vrot.slane %v1075, 1
        %v1078 = vsel %vm577, %v1073, %v1077
        %v1080 = vshrl.u32 %v966, 16
        %v1082 = vshll.u32 %v966, 16
        %v1084 = vrot.slane %v1082, 1
        %v1085 = vor.u32 %v1080, %v1084
        %v1087 = vshll.u32 %v1030, 16
        %v1089 = vrot.slane %v1087, 1
        %v1090 = vsel %vm577, %v1085, %v1089
        %v1092 = vshrl.u32 %v967, 16
        %v1094 = vshll.u32 %v967, 16
        %v1096 = vrot.slane %v1094, 1
        %v1097 = vor.u32 %v1092, %v1096
        %v1099 = vshll.u32 %v1031, 16
        %v1101 = vrot.slane %v1099, 1
        %v1102 = vsel %vm577, %v1097, %v1101
        %v1104 = vshrl.u32 %v968, 16
        %v1106 = vshll.u32 %v968, 16
        %v1108 = vrot.slane %v1106, 1
        %v1109 = vor.u32 %v1104, %v1108
        %v1111 = vshll.u32 %v1032, 16
        %v1113 = vrot.slane %v1111, 1
        %v1114 = vsel %vm577, %v1109, %v1113
        %v1116 = vshrl.u32 %v969, 16
        %v1118 = vshll.u32 %v969, 16
        %v1120 = vrot.slane %v1118, 1
        %v1121 = vor.u32 %v1116, %v1120
        %v1123 = vshll.u32 %v1033, 16
        %v1125 = vrot.slane %v1123, 1
        %v1126 = vsel %vm577, %v1121, %v1125
        %v1128 = vshrl.u32 %v970, 16
        %v1130 = vshll.u32 %v970, 16
        %v1132 = vrot.slane %v1130, 1
        %v1133 = vor.u32 %v1128, %v1132
        %v1135 = vshll.u32 %v1034, 16
        %v1137 = vrot.slane %v1135, 1
        %v1138 = vsel %vm577, %v1133, %v1137
        %v1140 = vshrl.u32 %v971, 16
        %v1142 = vshll.u32 %v971, 16
        %v1144 = vrot.slane %v1142, 1
        %v1145 = vor.u32 %v1140, %v1144
        %v1147 = vshll.u32 %v1035, 16
        %v1149 = vrot.slane %v1147, 1
        %v1150 = vsel %vm577, %v1145, %v1149
        %v1152 = vshrl.u32 %v972, 16
        %v1154 = vshll.u32 %v972, 16
        %v1156 = vrot.slane %v1154, 1
        %v1157 = vor.u32 %v1152, %v1156
        %v1159 = vshll.u32 %v1036, 16
        %v1161 = vrot.slane %v1159, 1
        %v1162 = vsel %vm577, %v1157, %v1161
        %v1164 = vshrl.u32 %v973, 16
        %v1166 = vshll.u32 %v973, 16
        %v1168 = vrot.slane %v1166, 1
        %v1169 = vor.u32 %v1164, %v1168
        %v1171 = vshll.u32 %v1037, 16
        %v1173 = vrot.slane %v1171, 1
        %v1174 = vsel %vm577, %v1169, %v1173
        %v1176 = vshrl.u32 %v974, 16
        %v1178 = vshll.u32 %v974, 16
        %v1180 = vrot.slane %v1178, 1
        %v1181 = vor.u32 %v1176, %v1180
        %v1183 = vshll.u32 %v1038, 16
        %v1185 = vrot.slane %v1183, 1
        %v1186 = vsel %vm577, %v1181, %v1185
        %v1188 = vshrl.u32 %v975, 16
        %v1190 = vshll.u32 %v975, 16
        %v1192 = vrot.slane %v1190, 1
        %v1193 = vor.u32 %v1188, %v1192
        %v1195 = vshll.u32 %v1039, 16
        %v1197 = vrot.slane %v1195, 1
        %v1198 = vsel %vm577, %v1193, %v1197
        %v1200 = vshrl.u32 %v976, 16
        %v1202 = vshll.u32 %v976, 16
        %v1204 = vrot.slane %v1202, 1
        %v1205 = vor.u32 %v1200, %v1204
        %v1207 = vshll.u32 %v1040, 16
        %v1209 = vrot.slane %v1207, 1
        %v1210 = vsel %vm577, %v1205, %v1209
        %v1212 = vshrl.u32 %v977, 16
        %v1214 = vshll.u32 %v977, 16
        %v1216 = vrot.slane %v1214, 1
        %v1217 = vor.u32 %v1212, %v1216
        %v1219 = vshll.u32 %v1041, 16
        %v1221 = vrot.slane %v1219, 1
        %v1222 = vsel %vm577, %v1217, %v1221
        %v1224 = vshrl.u32 %v978, 16
        %v1226 = vshll.u32 %v978, 16
        %v1228 = vrot.slane %v1226, 1
        %v1229 = vor.u32 %v1224, %v1228
        %v1231 = vshll.u32 %v1042, 16
        %v1233 = vrot.slane %v1231, 1
        %v1234 = vsel %vm577, %v1229, %v1233
        %v1267 = vunpack.c.l.b16 %v352
        %v1268 = vunpack.c.l.b16 %v353
        %v1269 = vunpack.c.l.b16 %v354
        %v1270 = vunpack.c.l.b16 %v355
        %v1271 = vunpack.c.l.b16 %v356
        %v1272 = vunpack.c.l.b16 %v357
        %v1273 = vunpack.c.l.b16 %v358
        %v1274 = vunpack.c.l.b16 %v359
        %v1275 = vunpack.c.l.b16 %v360
        %v1276 = vunpack.c.l.b16 %v361
        %v1277 = vunpack.c.l.b16 %v362
        %v1278 = vunpack.c.l.b16 %v363
        %v1279 = vunpack.c.l.b16 %v364
        %v1280 = vunpack.c.l.b16 %v365
        %v1281 = vunpack.c.l.b16 %v366
        %v1282 = vunpack.c.l.b16 %v367
        %v1283 = vpack.c.b16 %v932, %v1267
        %v1284 = vpack.c.b16 %v934, %v1268
        %v1285 = vpack.c.b16 %v936, %v1269
        %v1286 = vpack.c.b16 %v938, %v1270
        %v1287 = vpack.c.b16 %v940, %v1271
        %v1288 = vpack.c.b16 %v942, %v1272
        %v1289 = vpack.c.b16 %v944, %v1273
        %v1290 = vpack.c.b16 %v946, %v1274
        %v1291 = vpack.c.b16 %v948, %v1275
        %v1292 = vpack.c.b16 %v950, %v1276
        %v1293 = vpack.c.b16 %v952, %v1277
        %v1294 = vpack.c.b16 %v954, %v1278
        %v1295 = vpack.c.b16 %v956, %v1279
        %v1296 = vpack.c.b16 %v958, %v1280
        %v1297 = vpack.c.b16 %v960, %v1281
        %v1298 = vpack.c.b16 %v962, %v1282
        %v1299 = vrot.slane %v1283, 1
        %v1300 = vrot.slane %v1027, 1
        %v1301 = vsel %vm834, %v1299, %v1300
        %v1302 = vrot.slane %v1284, 1
        %v1303 = vrot.slane %v1028, 1
        %v1304 = vsel %vm834, %v1302, %v1303
        %v1305 = vrot.slane %v1285, 1
        %v1306 = vrot.slane %v1029, 1
        %v1307 = vsel %vm834, %v1305, %v1306
        %v1308 = vrot.slane %v1286, 1
        %v1309 = vrot.slane %v1030, 1
        %v1310 = vsel %vm834, %v1308, %v1309
        %v1311 = vrot.slane %v1287, 1
        %v1312 = vrot.slane %v1031, 1
        %v1313 = vsel %vm834, %v1311, %v1312
        %v1314 = vrot.slane %v1288, 1
        %v1315 = vrot.slane %v1032, 1
        %v1316 = vsel %vm834, %v1314, %v1315
        %v1317 = vrot.slane %v1289, 1
        %v1318 = vrot.slane %v1033, 1
        %v1319 = vsel %vm834, %v1317, %v1318
        %v1320 = vrot.slane %v1290, 1
        %v1321 = vrot.slane %v1034, 1
        %v1322 = vsel %vm834, %v1320, %v1321
        %v1323 = vrot.slane %v1291, 1
        %v1324 = vrot.slane %v1035, 1
        %v1325 = vsel %vm834, %v1323, %v1324
        %v1326 = vrot.slane %v1292, 1
        %v1327 = vrot.slane %v1036, 1
        %v1328 = vsel %vm834, %v1326, %v1327
        %v1329 = vrot.slane %v1293, 1
        %v1330 = vrot.slane %v1037, 1
        %v1331 = vsel %vm834, %v1329, %v1330
        %v1332 = vrot.slane %v1294, 1
        %v1333 = vrot.slane %v1038, 1
        %v1334 = vsel %vm834, %v1332, %v1333
        %v1335 = vrot.slane %v1295, 1
        %v1336 = vrot.slane %v1039, 1
        %v1337 = vsel %vm834, %v1335, %v1336
        %v1338 = vrot.slane %v1296, 1
        %v1339 = vrot.slane %v1040, 1
        %v1340 = vsel %vm834, %v1338, %v1339
        %v1341 = vrot.slane %v1297, 1
        %v1342 = vrot.slane %v1041, 1
        %v1343 = vsel %vm834, %v1341, %v1342
        %v1344 = vrot.slane %v1298, 1
        %v1345 = vrot.slane %v1042, 1
        %v1346 = vsel %vm834, %v1344, %v1345
        %v1395 = vunpack.c.l.b16 %v369
        %v1396 = vunpack.c.l.b16 %v370
        %v1397 = vunpack.c.l.b16 %v371
        %v1398 = vunpack.c.l.b16 %v372
        %v1399 = vunpack.c.l.b16 %v373
        %v1400 = vunpack.c.l.b16 %v374
        %v1401 = vunpack.c.l.b16 %v375
        %v1402 = vunpack.c.l.b16 %v376
        %v1403 = vunpack.c.l.b16 %v377
        %v1404 = vunpack.c.l.b16 %v378
        %v1405 = vunpack.c.l.b16 %v379
        %v1406 = vunpack.c.l.b16 %v380
        %v1407 = vunpack.c.l.b16 %v381
        %v1408 = vunpack.c.l.b16 %v382
        %v1409 = vunpack.c.l.b16 %v383
        %v1410 = vunpack.c.l.b16 %v384
        %v1411 = vunpack.c.l.b16 %v385
        %v1412 = vunpack.c.l.b16 %v386
        %v1413 = vunpack.c.l.b16 %v387
        %v1414 = vunpack.c.l.b16 %v388
        %v1415 = vunpack.c.l.b16 %v389
        %v1416 = vunpack.c.l.b16 %v390
        %v1417 = vunpack.c.l.b16 %v391
        %v1418 = vunpack.c.l.b16 %v392
        %v1419 = vunpack.c.l.b16 %v393
        %v1420 = vunpack.c.l.b16 %v394
        %v1421 = vunpack.c.l.b16 %v395
        %v1422 = vunpack.c.l.b16 %v396
        %v1423 = vunpack.c.l.b16 %v397
        %v1424 = vunpack.c.l.b16 %v398
        %v1425 = vunpack.c.l.b16 %v399
        %v1426 = vunpack.c.l.b16 %v400
        %v1427 = vpack.c.b16 %v1396, %v1395
        %v1428 = vpack.c.b16 %v1398, %v1397
        %v1429 = vpack.c.b16 %v1400, %v1399
        %v1430 = vpack.c.b16 %v1402, %v1401
        %v1431 = vpack.c.b16 %v1404, %v1403
        %v1432 = vpack.c.b16 %v1406, %v1405
        %v1433 = vpack.c.b16 %v1408, %v1407
        %v1434 = vpack.c.b16 %v1410, %v1409
        %v1435 = vpack.c.b16 %v1412, %v1411
        %v1436 = vpack.c.b16 %v1414, %v1413
        %v1437 = vpack.c.b16 %v1416, %v1415
        %v1438 = vpack.c.b16 %v1418, %v1417
        %v1439 = vpack.c.b16 %v1420, %v1419
        %v1440 = vpack.c.b16 %v1422, %v1421
        %v1441 = vpack.c.b16 %v1424, %v1423
        %v1442 = vpack.c.b16 %v1426, %v1425
        %v1475 = vunpack.c.l.b16 %v401
        %v1476 = vunpack.c.l.b16 %v402
        %v1477 = vunpack.c.l.b16 %v403
        %v1478 = vunpack.c.l.b16 %v404
        %v1479 = vunpack.c.l.b16 %v405
        %v1480 = vunpack.c.l.b16 %v406
        %v1481 = vunpack.c.l.b16 %v407
        %v1482 = vunpack.c.l.b16 %v408
        %v1483 = vunpack.c.l.b16 %v409
        %v1484 = vunpack.c.l.b16 %v410
        %v1485 = vunpack.c.l.b16 %v411
        %v1486 = vunpack.c.l.b16 %v412
        %v1487 = vunpack.c.l.b16 %v413
        %v1488 = vunpack.c.l.b16 %v414
        %v1489 = vunpack.c.l.b16 %v415
        %v1490 = vunpack.c.l.b16 %v416
        %v1491 = vpack.c.b16 %v1475, %v1475
        %v1492 = vpack.c.b16 %v1476, %v1476
        %v1493 = vpack.c.b16 %v1477, %v1477
        %v1494 = vpack.c.b16 %v1478, %v1478
        %v1495 = vpack.c.b16 %v1479, %v1479
        %v1496 = vpack.c.b16 %v1480, %v1480
        %v1497 = vpack.c.b16 %v1481, %v1481
        %v1498 = vpack.c.b16 %v1482, %v1482
        %v1499 = vpack.c.b16 %v1483, %v1483
        %v1500 = vpack.c.b16 %v1484, %v1484
        %v1501 = vpack.c.b16 %v1485, %v1485
        %v1502 = vpack.c.b16 %v1486, %v1486
        %v1503 = vpack.c.b16 %v1487, %v1487
        %v1504 = vpack.c.b16 %v1488, %v1488
        %v1505 = vpack.c.b16 %v1489, %v1489
        %v1506 = vpack.c.b16 %v1490, %v1490
        %v1508 = vshrl.u32 %v1427, 16
        %v1510 = vshll.u32 %v1427, 16
        %v1512 = vrot.slane %v1510, 1
        %v1513 = vor.u32 %v1508, %v1512
        %v1515 = vshll.u32 %v1491, 16
        %v1517 = vrot.slane %v1515, 1
        %v1518 = vsel %vm577, %v1513, %v1517
        %v1520 = vshrl.u32 %v1428, 16
        %v1522 = vshll.u32 %v1428, 16
        %v1524 = vrot.slane %v1522, 1
        %v1525 = vor.u32 %v1520, %v1524
        %v1527 = vshll.u32 %v1492, 16
        %v1529 = vrot.slane %v1527, 1
        %v1530 = vsel %vm577, %v1525, %v1529
        %v1532 = vshrl.u32 %v1429, 16
        %v1534 = vshll.u32 %v1429, 16
        %v1536 = vrot.slane %v1534, 1
        %v1537 = vor.u32 %v1532, %v1536
        %v1539 = vshll.u32 %v1493, 16
        %v1541 = vrot.slane %v1539, 1
        %v1542 = vsel %vm577, %v1537, %v1541
        %v1544 = vshrl.u32 %v1430, 16
        %v1546 = vshll.u32 %v1430, 16
        %v1548 = vrot.slane %v1546, 1
        %v1549 = vor.u32 %v1544, %v1548
        %v1551 = vshll.u32 %v1494, 16
        %v1553 = vrot.slane %v1551, 1
        %v1554 = vsel %vm577, %v1549, %v1553
        %v1556 = vshrl.u32 %v1431, 16
        %v1558 = vshll.u32 %v1431, 16
        %v1560 = vrot.slane %v1558, 1
        %v1561 = vor.u32 %v1556, %v1560
        %v1563 = vshll.u32 %v1495, 16
        %v1565 = vrot.slane %v1563, 1
        %v1566 = vsel %vm577, %v1561, %v1565
        %v1568 = vshrl.u32 %v1432, 16
        %v1570 = vshll.u32 %v1432, 16
        %v1572 = vrot.slane %v1570, 1
        %v1573 = vor.u32 %v1568, %v1572
        %v1575 = vshll.u32 %v1496, 16
        %v1577 = vrot.slane %v1575, 1
        %v1578 = vsel %vm577, %v1573, %v1577
        %v1580 = vshrl.u32 %v1433, 16
        %v1582 = vshll.u32 %v1433, 16
        %v1584 = vrot.slane %v1582, 1
        %v1585 = vor.u32 %v1580, %v1584
        %v1587 = vshll.u32 %v1497, 16
        %v1589 = vrot.slane %v1587, 1
        %v1590 = vsel %vm577, %v1585, %v1589
        %v1592 = vshrl.u32 %v1434, 16
        %v1594 = vshll.u32 %v1434, 16
        %v1596 = vrot.slane %v1594, 1
        %v1597 = vor.u32 %v1592, %v1596
        %v1599 = vshll.u32 %v1498, 16
        %v1601 = vrot.slane %v1599, 1
        %v1602 = vsel %vm577, %v1597, %v1601
        %v1604 = vshrl.u32 %v1435, 16
        %v1606 = vshll.u32 %v1435, 16
        %v1608 = vrot.slane %v1606, 1
        %v1609 = vor.u32 %v1604, %v1608
        %v1611 = vshll.u32 %v1499, 16
        %v1613 = vrot.slane %v1611, 1
        %v1614 = vsel %vm577, %v1609, %v1613
        %v1616 = vshrl.u32 %v1436, 16
        %v1618 = vshll.u32 %v1436, 16
        %v1620 = vrot.slane %v1618, 1
        %v1621 = vor.u32 %v1616, %v1620
        %v1623 = vshll.u32 %v1500, 16
        %v1625 = vrot.slane %v1623, 1
        %v1626 = vsel %vm577, %v1621, %v1625
        %v1628 = vshrl.u32 %v1437, 16
        %v1630 = vshll.u32 %v1437, 16
        %v1632 = vrot.slane %v1630, 1
        %v1633 = vor.u32 %v1628, %v1632
        %v1635 = vshll.u32 %v1501, 16
        %v1637 = vrot.slane %v1635, 1
        %v1638 = vsel %vm577, %v1633, %v1637
        %v1640 = vshrl.u32 %v1438, 16
        %v1642 = vshll.u32 %v1438, 16
        %v1644 = vrot.slane %v1642, 1
        %v1645 = vor.u32 %v1640, %v1644
        %v1647 = vshll.u32 %v1502, 16
        %v1649 = vrot.slane %v1647, 1
        %v1650 = vsel %vm577, %v1645, %v1649
        %v1652 = vshrl.u32 %v1439, 16
        %v1654 = vshll.u32 %v1439, 16
        %v1656 = vrot.slane %v1654, 1
        %v1657 = vor.u32 %v1652, %v1656
        %v1659 = vshll.u32 %v1503, 16
        %v1661 = vrot.slane %v1659, 1
        %v1662 = vsel %vm577, %v1657, %v1661
        %v1664 = vshrl.u32 %v1440, 16
        %v1666 = vshll.u32 %v1440, 16
        %v1668 = vrot.slane %v1666, 1
        %v1669 = vor.u32 %v1664, %v1668
        %v1671 = vshll.u32 %v1504, 16
        %v1673 = vrot.slane %v1671, 1
        %v1674 = vsel %vm577, %v1669, %v1673
        %v1676 = vshrl.u32 %v1441, 16
        %v1678 = vshll.u32 %v1441, 16
        %v1680 = vrot.slane %v1678, 1
        %v1681 = vor.u32 %v1676, %v1680
        %v1683 = vshll.u32 %v1505, 16
        %v1685 = vrot.slane %v1683, 1
        %v1686 = vsel %vm577, %v1681, %v1685
        %v1688 = vshrl.u32 %v1442, 16
        %v1690 = vshll.u32 %v1442, 16
        %v1692 = vrot.slane %v1690, 1
        %v1693 = vor.u32 %v1688, %v1692
        %v1695 = vshll.u32 %v1506, 16
        %v1697 = vrot.slane %v1695, 1
        %v1698 = vsel %vm577, %v1693, %v1697
        %v1731 = vunpack.c.l.b16 %v417
        %v1732 = vunpack.c.l.b16 %v418
        %v1733 = vunpack.c.l.b16 %v419
        %v1734 = vunpack.c.l.b16 %v420
        %v1735 = vunpack.c.l.b16 %v421
        %v1736 = vunpack.c.l.b16 %v422
        %v1737 = vunpack.c.l.b16 %v423
        %v1738 = vunpack.c.l.b16 %v424
        %v1739 = vunpack.c.l.b16 %v425
        %v1740 = vunpack.c.l.b16 %v426
        %v1741 = vunpack.c.l.b16 %v427
        %v1742 = vunpack.c.l.b16 %v428
        %v1743 = vunpack.c.l.b16 %v429
        %v1744 = vunpack.c.l.b16 %v430
        %v1745 = vunpack.c.l.b16 %v431
        %v1746 = vunpack.c.l.b16 %v432
        %v1747 = vpack.c.b16 %v1396, %v1731
        %v1748 = vpack.c.b16 %v1398, %v1732
        %v1749 = vpack.c.b16 %v1400, %v1733
        %v1750 = vpack.c.b16 %v1402, %v1734
        %v1751 = vpack.c.b16 %v1404, %v1735
        %v1752 = vpack.c.b16 %v1406, %v1736
        %v1753 = vpack.c.b16 %v1408, %v1737
        %v1754 = vpack.c.b16 %v1410, %v1738
        %v1755 = vpack.c.b16 %v1412, %v1739
        %v1756 = vpack.c.b16 %v1414, %v1740
        %v1757 = vpack.c.b16 %v1416, %v1741
        %v1758 = vpack.c.b16 %v1418, %v1742
        %v1759 = vpack.c.b16 %v1420, %v1743
        %v1760 = vpack.c.b16 %v1422, %v1744
        %v1761 = vpack.c.b16 %v1424, %v1745
        %v1762 = vpack.c.b16 %v1426, %v1746
        %v1763 = vrot.slane %v1747, 1
        %v1764 = vrot.slane %v1491, 1
        %v1765 = vsel %vm834, %v1763, %v1764
        %v1766 = vrot.slane %v1748, 1
        %v1767 = vrot.slane %v1492, 1
        %v1768 = vsel %vm834, %v1766, %v1767
        %v1769 = vrot.slane %v1749, 1
        %v1770 = vrot.slane %v1493, 1
        %v1771 = vsel %vm834, %v1769, %v1770
        %v1772 = vrot.slane %v1750, 1
        %v1773 = vrot.slane %v1494, 1
        %v1774 = vsel %vm834, %v1772, %v1773
        %v1775 = vrot.slane %v1751, 1
        %v1776 = vrot.slane %v1495, 1
        %v1777 = vsel %vm834, %v1775, %v1776
        %v1778 = vrot.slane %v1752, 1
        %v1779 = vrot.slane %v1496, 1
        %v1780 = vsel %vm834, %v1778, %v1779
        %v1781 = vrot.slane %v1753, 1
        %v1782 = vrot.slane %v1497, 1
        %v1783 = vsel %vm834, %v1781, %v1782
        %v1784 = vrot.slane %v1754, 1
        %v1785 = vrot.slane %v1498, 1
        %v1786 = vsel %vm834, %v1784, %v1785
        %v1787 = vrot.slane %v1755, 1
        %v1788 = vrot.slane %v1499, 1
        %v1789 = vsel %vm834, %v1787, %v1788
        %v1790 = vrot.slane %v1756, 1
        %v1791 = vrot.slane %v1500, 1
        %v1792 = vsel %vm834, %v1790, %v1791
        %v1793 = vrot.slane %v1757, 1
        %v1794 = vrot.slane %v1501, 1
        %v1795 = vsel %vm834, %v1793, %v1794
        %v1796 = vrot.slane %v1758, 1
        %v1797 = vrot.slane %v1502, 1
        %v1798 = vsel %vm834, %v1796, %v1797
        %v1799 = vrot.slane %v1759, 1
        %v1800 = vrot.slane %v1503, 1
        %v1801 = vsel %vm834, %v1799, %v1800
        %v1802 = vrot.slane %v1760, 1
        %v1803 = vrot.slane %v1504, 1
        %v1804 = vsel %vm834, %v1802, %v1803
        %v1805 = vrot.slane %v1761, 1
        %v1806 = vrot.slane %v1505, 1
        %v1807 = vsel %vm834, %v1805, %v1806
        %v1808 = vrot.slane %v1762, 1
        %v1809 = vrot.slane %v1506, 1
        %v1810 = vsel %vm834, %v1808, %v1809
        %v1827 = vld [vmem:[%s1] sm:$0xf]
        %v1828 = vld [vmem:[%s1 + $0x4] sm:$0xf]
        %v1829 = vld [vmem:[%s1 + $0x8] sm:$0xf]
        %v1830 = vld [vmem:[%s1 + $0xc] sm:$0xf]
        %v1831 = vld [vmem:[%s1 + $0x10] sm:$0xf]
        %v1832 = vld [vmem:[%s1 + $0x14] sm:$0xf]
        %v1833 = vld [vmem:[%s1 + $0x18] sm:$0xf]
        %v1834 = vld [vmem:[%s1 + $0x1c] sm:$0xf]
        %v1835 = vld [vmem:[%s1 + $0x20] sm:$0xf]
        %v1836 = vld [vmem:[%s1 + $0x24] sm:$0xf]
        %v1837 = vld [vmem:[%s1 + $0x28] sm:$0xf]
        %v1838 = vld [vmem:[%s1 + $0x2c] sm:$0xf]
        %v1839 = vld [vmem:[%s1 + $0x30] sm:$0xf]
        %v1840 = vld [vmem:[%s1 + $0x34] sm:$0xf]
        %v1841 = vld [vmem:[%s1 + $0x38] sm:$0xf]
        %v1842 = vld [vmem:[%s1 + $0x3c] sm:$0xf]
        %v1843 = vld [vmem:[%s1 + $0x40] sm:$0xf]
        %v1844 = vld [vmem:[%s1 + $0x44] sm:$0xf]
        %v1845 = vld [vmem:[%s1 + $0x48] sm:$0xf]
        %v1846 = vld [vmem:[%s1 + $0x4c] sm:$0xf]
        %v1847 = vld [vmem:[%s1 + $0x50] sm:$0xf]
        %v1848 = vld [vmem:[%s1 + $0x54] sm:$0xf]
        %v1849 = vld [vmem:[%s1 + $0x58] sm:$0xf]
        %v1850 = vld [vmem:[%s1 + $0x5c] sm:$0xf]
        %v1851 = vld [vmem:[%s1 + $0x60] sm:$0xf]
        %v1852 = vld [vmem:[%s1 + $0x64] sm:$0xf]
        %v1853 = vld [vmem:[%s1 + $0x68] sm:$0xf]
        %v1854 = vld [vmem:[%s1 + $0x6c] sm:$0xf]
        %v1855 = vld [vmem:[%s1 + $0x70] sm:$0xf]
        %v1856 = vld [vmem:[%s1 + $0x74] sm:$0xf]
        %v1857 = vld [vmem:[%s1 + $0x78] sm:$0xf]
        %v1858 = vld [vmem:[%s1 + $0x7c] sm:$0xf]
        %v1859 = vld [vmem:[%s1 + $0x80] sm:$0xf]
        %v1860 = vld [vmem:[%s1 + $0x84] sm:$0xf]
        %v1861 = vld [vmem:[%s1 + $0x88] sm:$0xf]
        %v1862 = vld [vmem:[%s1 + $0x8c] sm:$0xf]
        %v1863 = vld [vmem:[%s1 + $0x90] sm:$0xf]
        %v1864 = vld [vmem:[%s1 + $0x94] sm:$0xf]
        %v1865 = vld [vmem:[%s1 + $0x98] sm:$0xf]
        %v1866 = vld [vmem:[%s1 + $0x9c] sm:$0xf]
        %v1867 = vld [vmem:[%s1 + $0xa0] sm:$0xf]
        %v1868 = vld [vmem:[%s1 + $0xa4] sm:$0xf]
        %v1869 = vld [vmem:[%s1 + $0xa8] sm:$0xf]
        %v1870 = vld [vmem:[%s1 + $0xac] sm:$0xf]
        %v1871 = vld [vmem:[%s1 + $0xb0] sm:$0xf]
        %v1872 = vld [vmem:[%s1 + $0xb4] sm:$0xf]
        %v1873 = vld [vmem:[%s1 + $0xb8] sm:$0xf]
        %v1874 = vld [vmem:[%s1 + $0xbc] sm:$0xf]
        %v1875 = vld [vmem:[%s1 + $0xc0] sm:$0xf]
        %v1876 = vld [vmem:[%s1 + $0xc4] sm:$0xf]
        %v1877 = vld [vmem:[%s1 + $0xc8] sm:$0xf]
        %v1878 = vld [vmem:[%s1 + $0xcc] sm:$0xf]
        %v1879 = vld [vmem:[%s1 + $0xd0] sm:$0xf]
        %v1880 = vld [vmem:[%s1 + $0xd4] sm:$0xf]
        %v1881 = vld [vmem:[%s1 + $0xd8] sm:$0xf]
        %v1882 = vld [vmem:[%s1 + $0xdc] sm:$0xf]
        %v1883 = vld [vmem:[%s1 + $0xe0] sm:$0xf]
        %v1884 = vld [vmem:[%s1 + $0xe4] sm:$0xf]
        %v1885 = vld [vmem:[%s1 + $0xe8] sm:$0xf]
        %v1886 = vld [vmem:[%s1 + $0xec] sm:$0xf]
        %v1887 = vld [vmem:[%s1 + $0xf0] sm:$0xf]
        %v1888 = vld [vmem:[%s1 + $0xf4] sm:$0xf]
        %v1889 = vld [vmem:[%s1 + $0xf8] sm:$0xf]
        %v1890 = vld [vmem:[%s1 + $0xfc] sm:$0xf]
        %v1891 = vld [vmem:[%s1 + $0x100] sm:$0xf]
        %v1892 = vld [vmem:[%s1 + $0x104] sm:$0xf]
        %v1893 = vld [vmem:[%s1 + $0x108] sm:$0xf]
        %v1894 = vld [vmem:[%s1 + $0x10c] sm:$0xf]
        %v1895 = vld [vmem:[%s1 + $0x110] sm:$0xf]
        %v1896 = vld [vmem:[%s1 + $0x114] sm:$0xf]
        %v1897 = vld [vmem:[%s1 + $0x118] sm:$0xf]
        %v1898 = vld [vmem:[%s1 + $0x11c] sm:$0xf]
        %v1899 = vld [vmem:[%s1 + $0x120] sm:$0xf]
        %v1900 = vld [vmem:[%s1 + $0x124] sm:$0xf]
        %v1901 = vld [vmem:[%s1 + $0x128] sm:$0xf]
        %v1902 = vld [vmem:[%s1 + $0x12c] sm:$0xf]
        %v1903 = vld [vmem:[%s1 + $0x130] sm:$0xf]
        %v1904 = vld [vmem:[%s1 + $0x134] sm:$0xf]
        %v1905 = vld [vmem:[%s1 + $0x138] sm:$0xf]
        %v1906 = vld [vmem:[%s1 + $0x13c] sm:$0xf]
        %v1907 = vld [vmem:[%s1 + $0x140] sm:$0xf]
        %v1908 = vld [vmem:[%s1 + $0x144] sm:$0xf]
        %v1909 = vld [vmem:[%s1 + $0x148] sm:$0xf]
        %v1910 = vld [vmem:[%s1 + $0x14c] sm:$0xf]
        %v1911 = vld [vmem:[%s1 + $0x150] sm:$0xf]
        %v1912 = vld [vmem:[%s1 + $0x154] sm:$0xf]
        %v1913 = vld [vmem:[%s1 + $0x158] sm:$0xf]
        %v1914 = vld [vmem:[%s1 + $0x15c] sm:$0xf]
        %v1915 = vld [vmem:[%s1 + $0x160] sm:$0xf]
        %v1916 = vld [vmem:[%s1 + $0x164] sm:$0xf]
        %v1917 = vld [vmem:[%s1 + $0x168] sm:$0xf]
        %v1918 = vld [vmem:[%s1 + $0x16c] sm:$0xf]
        %v1919 = vld [vmem:[%s1 + $0x170] sm:$0xf]
        %v1920 = vld [vmem:[%s1 + $0x174] sm:$0xf]
        %v1921 = vld [vmem:[%s1 + $0x178] sm:$0xf]
        %v1922 = vld [vmem:[%s1 + $0x17c] sm:$0xf]
        %v1923 = vld [vmem:[%s1 + $0x180] sm:$0xf]
        %v1924 = vld [vmem:[%s1 + $0x184] sm:$0xf]
        %v1925 = vld [vmem:[%s1 + $0x188] sm:$0xf]
        %v1926 = vld [vmem:[%s1 + $0x18c] sm:$0xf]
        %v1927 = vld [vmem:[%s1 + $0x190] sm:$0xf]
        %v1928 = vld [vmem:[%s1 + $0x194] sm:$0xf]
        %v1929 = vld [vmem:[%s1 + $0x198] sm:$0xf]
        %v1930 = vld [vmem:[%s1 + $0x19c] sm:$0xf]
        %v1931 = vld [vmem:[%s1 + $0x1a0] sm:$0xf]
        %v1932 = vld [vmem:[%s1 + $0x1a4] sm:$0xf]
        %v1933 = vld [vmem:[%s1 + $0x1a8] sm:$0xf]
        %v1934 = vld [vmem:[%s1 + $0x1ac] sm:$0xf]
        %v1935 = vld [vmem:[%s1 + $0x1b0] sm:$0xf]
        %v1936 = vld [vmem:[%s1 + $0x1b4] sm:$0xf]
        %v1937 = vld [vmem:[%s1 + $0x1b8] sm:$0xf]
        %v1938 = vld [vmem:[%s1 + $0x1bc] sm:$0xf]
        %v1939 = vld [vmem:[%s1 + $0x1c0] sm:$0xf]
        %v1940 = vld [vmem:[%s1 + $0x1c4] sm:$0xf]
        %v1941 = vld [vmem:[%s1 + $0x1c8] sm:$0xf]
        %v1942 = vld [vmem:[%s1 + $0x1cc] sm:$0xf]
        %v1943 = vld [vmem:[%s1 + $0x1d0] sm:$0xf]
        %v1944 = vld [vmem:[%s1 + $0x1d4] sm:$0xf]
        %v1945 = vld [vmem:[%s1 + $0x1d8] sm:$0xf]
        %v1946 = vld [vmem:[%s1 + $0x1dc] sm:$0xf]
        %v1947 = vld [vmem:[%s1 + $0x1e0] sm:$0xf]
        %v1948 = vld [vmem:[%s1 + $0x1e4] sm:$0xf]
        %v1949 = vld [vmem:[%s1 + $0x1e8] sm:$0xf]
        %v1950 = vld [vmem:[%s1 + $0x1ec] sm:$0xf]
        %v1951 = vld [vmem:[%s1 + $0x1f0] sm:$0xf]
        %v1952 = vld [vmem:[%s1 + $0x1f4] sm:$0xf]
        %v1953 = vld [vmem:[%s1 + $0x1f8] sm:$0xf]
        %v1954 = vld [vmem:[%s1 + $0x1fc] sm:$0xf]
        %v1955 = vld [vmem:[%s1 + $0x200] sm:$0xf]
        %v1956 = vld [vmem:[%s1 + $0x204] sm:$0xf]
        %v1957 = vld [vmem:[%s1 + $0x208] sm:$0xf]
        %v1958 = vld [vmem:[%s1 + $0x20c] sm:$0xf]
        %v1959 = vld [vmem:[%s1 + $0x210] sm:$0xf]
        %v1960 = vld [vmem:[%s1 + $0x214] sm:$0xf]
        %v1961 = vld [vmem:[%s1 + $0x218] sm:$0xf]
        %v1962 = vld [vmem:[%s1 + $0x21c] sm:$0xf]
        %v1963 = vld [vmem:[%s1 + $0x220] sm:$0xf]
        %v1964 = vld [vmem:[%s1 + $0x224] sm:$0xf]
        %v1965 = vld [vmem:[%s1 + $0x228] sm:$0xf]
        %v1966 = vld [vmem:[%s1 + $0x22c] sm:$0xf]
        %v1967 = vld [vmem:[%s1 + $0x230] sm:$0xf]
        %v1968 = vld [vmem:[%s1 + $0x234] sm:$0xf]
        %v1969 = vld [vmem:[%s1 + $0x238] sm:$0xf]
        %v1970 = vld [vmem:[%s1 + $0x23c] sm:$0xf]
        %v1971 = vld [vmem:[%s3] sm:$0x1]
        %v1973 = vlaneseq
        %v1974 = vshrl.u32 %v1973, 7
        %v1975 = vsub.s32 0, %v1974
        %v1976 = vrot.slane %v1971, %v1975
        %v2122 = vunpack.c.l.b16 %v1827
        %v2123 = vunpack.c.l.b16 %v1828
        %v2124 = vunpack.c.l.b16 %v1829
        %v2125 = vunpack.c.l.b16 %v1830
        %v2126 = vunpack.c.l.b16 %v1831
        %v2127 = vunpack.c.l.b16 %v1832
        %v2128 = vunpack.c.l.b16 %v1833
        %v2129 = vunpack.c.l.b16 %v1834
        %v2130 = vunpack.c.l.b16 %v1835
        %v2131 = vunpack.c.l.b16 %v1836
        %v2132 = vunpack.c.l.b16 %v1837
        %v2133 = vunpack.c.l.b16 %v1838
        %v2134 = vunpack.c.l.b16 %v1839
        %v2135 = vunpack.c.l.b16 %v1840
        %v2136 = vunpack.c.l.b16 %v1841
        %v2137 = vunpack.c.l.b16 %v1842
        %v2138 = vunpack.c.l.b16 %v1843
        %v2139 = vunpack.c.l.b16 %v1844
        %v2140 = vunpack.c.l.b16 %v1845
        %v2141 = vunpack.c.l.b16 %v1846
        %v2142 = vunpack.c.l.b16 %v1847
        %v2143 = vunpack.c.l.b16 %v1848
        %v2144 = vunpack.c.l.b16 %v1849
        %v2145 = vunpack.c.l.b16 %v1850
        %v2146 = vunpack.c.l.b16 %v1851
        %v2147 = vunpack.c.l.b16 %v1852
        %v2148 = vunpack.c.l.b16 %v1853
        %v2149 = vunpack.c.l.b16 %v1854
        %v2150 = vunpack.c.l.b16 %v1855
        %v2151 = vunpack.c.l.b16 %v1856
        %v2152 = vunpack.c.l.b16 %v1857
        %v2153 = vunpack.c.l.b16 %v1858
        %v2154 = vunpack.c.l.b16 %v1859
        %v2155 = vunpack.c.l.b16 %v1860
        %v2156 = vunpack.c.l.b16 %v1861
        %v2157 = vunpack.c.l.b16 %v1862
        %v2158 = vunpack.c.l.b16 %v1863
        %v2159 = vunpack.c.l.b16 %v1864
        %v2160 = vunpack.c.l.b16 %v1865
        %v2161 = vunpack.c.l.b16 %v1866
        %v2162 = vunpack.c.l.b16 %v1867
        %v2163 = vunpack.c.l.b16 %v1868
        %v2164 = vunpack.c.l.b16 %v1869
        %v2165 = vunpack.c.l.b16 %v1870
        %v2166 = vunpack.c.l.b16 %v1871
        %v2167 = vunpack.c.l.b16 %v1872
        %v2168 = vunpack.c.l.b16 %v1873
        %v2169 = vunpack.c.l.b16 %v1874
        %v2170 = vunpack.c.l.b16 %v1875
        %v2171 = vunpack.c.l.b16 %v1876
        %v2172 = vunpack.c.l.b16 %v1877
        %v2173 = vunpack.c.l.b16 %v1878
        %v2174 = vunpack.c.l.b16 %v1879
        %v2175 = vunpack.c.l.b16 %v1880
        %v2176 = vunpack.c.l.b16 %v1881
        %v2177 = vunpack.c.l.b16 %v1882
        %v2178 = vunpack.c.l.b16 %v1883
        %v2179 = vunpack.c.l.b16 %v1884
        %v2180 = vunpack.c.l.b16 %v1885
        %v2181 = vunpack.c.l.b16 %v1886
        %v2182 = vunpack.c.l.b16 %v1887
        %v2183 = vunpack.c.l.b16 %v1888
        %v2184 = vunpack.c.l.b16 %v1889
        %v2185 = vunpack.c.l.b16 %v1890
        %v2186 = vunpack.c.l.b16 %v1891
        %v2187 = vunpack.c.l.b16 %v1892
        %v2188 = vunpack.c.l.b16 %v1893
        %v2189 = vunpack.c.l.b16 %v1894
        %v2190 = vunpack.c.l.b16 %v1895
        %v2191 = vunpack.c.l.b16 %v1896
        %v2192 = vunpack.c.l.b16 %v1897
        %v2193 = vunpack.c.l.b16 %v1898
        %v2194 = vunpack.c.l.b16 %v1899
        %v2195 = vunpack.c.l.b16 %v1900
        %v2196 = vunpack.c.l.b16 %v1901
        %v2197 = vunpack.c.l.b16 %v1902
        %v2198 = vunpack.c.l.b16 %v1903
        %v2199 = vunpack.c.l.b16 %v1904
        %v2200 = vunpack.c.l.b16 %v1905
        %v2201 = vunpack.c.l.b16 %v1906
        %v2202 = vunpack.c.l.b16 %v1907
        %v2203 = vunpack.c.l.b16 %v1908
        %v2204 = vunpack.c.l.b16 %v1909
        %v2205 = vunpack.c.l.b16 %v1910
        %v2206 = vunpack.c.l.b16 %v1911
        %v2207 = vunpack.c.l.b16 %v1912
        %v2208 = vunpack.c.l.b16 %v1913
        %v2209 = vunpack.c.l.b16 %v1914
        %v2210 = vunpack.c.l.b16 %v1915
        %v2211 = vunpack.c.l.b16 %v1916
        %v2212 = vunpack.c.l.b16 %v1917
        %v2213 = vunpack.c.l.b16 %v1918
        %v2214 = vunpack.c.l.b16 %v1919
        %v2215 = vunpack.c.l.b16 %v1920
        %v2216 = vunpack.c.l.b16 %v1921
        %v2217 = vunpack.c.l.b16 %v1922
        %v2218 = vunpack.c.l.b16 %v1923
        %v2219 = vunpack.c.l.b16 %v1924
        %v2220 = vunpack.c.l.b16 %v1925
        %v2221 = vunpack.c.l.b16 %v1926
        %v2222 = vunpack.c.l.b16 %v1927
        %v2223 = vunpack.c.l.b16 %v1928
        %v2224 = vunpack.c.l.b16 %v1929
        %v2225 = vunpack.c.l.b16 %v1930
        %v2226 = vunpack.c.l.b16 %v1931
        %v2227 = vunpack.c.l.b16 %v1932
        %v2228 = vunpack.c.l.b16 %v1933
        %v2229 = vunpack.c.l.b16 %v1934
        %v2230 = vunpack.c.l.b16 %v1935
        %v2231 = vunpack.c.l.b16 %v1936
        %v2232 = vunpack.c.l.b16 %v1937
        %v2233 = vunpack.c.l.b16 %v1938
        %v2234 = vunpack.c.l.b16 %v1939
        %v2235 = vunpack.c.l.b16 %v1940
        %v2236 = vunpack.c.l.b16 %v1941
        %v2237 = vunpack.c.l.b16 %v1942
        %v2238 = vunpack.c.l.b16 %v1943
        %v2239 = vunpack.c.l.b16 %v1944
        %v2240 = vunpack.c.l.b16 %v1945
        %v2241 = vunpack.c.l.b16 %v1946
        %v2242 = vunpack.c.l.b16 %v1947
        %v2243 = vunpack.c.l.b16 %v1948
        %v2244 = vunpack.c.l.b16 %v1949
        %v2245 = vunpack.c.l.b16 %v1950
        %v2246 = vunpack.c.l.b16 %v1951
        %v2247 = vunpack.c.l.b16 %v1952
        %v2248 = vunpack.c.l.b16 %v1953
        %v2249 = vunpack.c.l.b16 %v1954
        %v2250 = vunpack.c.l.b16 %v1955
        %v2251 = vunpack.c.l.b16 %v1956
        %v2252 = vunpack.c.l.b16 %v1957
        %v2253 = vunpack.c.l.b16 %v1958
        %v2254 = vunpack.c.l.b16 %v1959
        %v2255 = vunpack.c.l.b16 %v1960
        %v2256 = vunpack.c.l.b16 %v1961
        %v2257 = vunpack.c.l.b16 %v1962
        %v2258 = vunpack.c.l.b16 %v1963
        %v2259 = vunpack.c.l.b16 %v1964
        %v2260 = vunpack.c.l.b16 %v1965
        %v2261 = vunpack.c.l.b16 %v1966
        %v2262 = vunpack.c.l.b16 %v1967
        %v2263 = vunpack.c.l.b16 %v1968
        %v2264 = vunpack.c.l.b16 %v1969
        %v2265 = vunpack.c.l.b16 %v1970
        %v2266 = vpack.c.b16 %v2123, %v2122
        %v2267 = vpack.c.b16 %v2125, %v2124
        %v2268 = vpack.c.b16 %v2127, %v2126
        %v2269 = vpack.c.b16 %v2129, %v2128
        %v2270 = vpack.c.b16 %v2131, %v2130
        %v2271 = vpack.c.b16 %v2133, %v2132
        %v2272 = vpack.c.b16 %v2135, %v2134
        %v2273 = vpack.c.b16 %v2137, %v2136
        %v2274 = vpack.c.b16 %v2139, %v2138
        %v2275 = vpack.c.b16 %v2141, %v2140
        %v2276 = vpack.c.b16 %v2143, %v2142
        %v2277 = vpack.c.b16 %v2145, %v2144
        %v2278 = vpack.c.b16 %v2147, %v2146
        %v2279 = vpack.c.b16 %v2149, %v2148
        %v2280 = vpack.c.b16 %v2151, %v2150
        %v2281 = vpack.c.b16 %v2153, %v2152
        %v2282 = vpack.c.b16 %v2155, %v2154
        %v2283 = vpack.c.b16 %v2157, %v2156
        %v2284 = vpack.c.b16 %v2159, %v2158
        %v2285 = vpack.c.b16 %v2161, %v2160
        %v2286 = vpack.c.b16 %v2163, %v2162
        %v2287 = vpack.c.b16 %v2165, %v2164
        %v2288 = vpack.c.b16 %v2167, %v2166
        %v2289 = vpack.c.b16 %v2169, %v2168
        %v2290 = vpack.c.b16 %v2171, %v2170
        %v2291 = vpack.c.b16 %v2173, %v2172
        %v2292 = vpack.c.b16 %v2175, %v2174
        %v2293 = vpack.c.b16 %v2177, %v2176
        %v2294 = vpack.c.b16 %v2179, %v2178
        %v2295 = vpack.c.b16 %v2181, %v2180
        %v2296 = vpack.c.b16 %v2183, %v2182
        %v2297 = vpack.c.b16 %v2185, %v2184
        %v2298 = vpack.c.b16 %v2187, %v2186
        %v2299 = vpack.c.b16 %v2189, %v2188
        %v2300 = vpack.c.b16 %v2191, %v2190
        %v2301 = vpack.c.b16 %v2193, %v2192
        %v2302 = vpack.c.b16 %v2195, %v2194
        %v2303 = vpack.c.b16 %v2197, %v2196
        %v2304 = vpack.c.b16 %v2199, %v2198
        %v2305 = vpack.c.b16 %v2201, %v2200
        %v2306 = vpack.c.b16 %v2203, %v2202
        %v2307 = vpack.c.b16 %v2205, %v2204
        %v2308 = vpack.c.b16 %v2207, %v2206
        %v2309 = vpack.c.b16 %v2209, %v2208
        %v2310 = vpack.c.b16 %v2211, %v2210
        %v2311 = vpack.c.b16 %v2213, %v2212
        %v2312 = vpack.c.b16 %v2215, %v2214
        %v2313 = vpack.c.b16 %v2217, %v2216
        %v2314 = vpack.c.b16 %v2219, %v2218
        %v2315 = vpack.c.b16 %v2221, %v2220
        %v2316 = vpack.c.b16 %v2223, %v2222
        %v2317 = vpack.c.b16 %v2225, %v2224
        %v2318 = vpack.c.b16 %v2227, %v2226
        %v2319 = vpack.c.b16 %v2229, %v2228
        %v2320 = vpack.c.b16 %v2231, %v2230
        %v2321 = vpack.c.b16 %v2233, %v2232
        %v2322 = vpack.c.b16 %v2235, %v2234
        %v2323 = vpack.c.b16 %v2237, %v2236
        %v2324 = vpack.c.b16 %v2239, %v2238
        %v2325 = vpack.c.b16 %v2241, %v2240
        %v2326 = vpack.c.b16 %v2243, %v2242
        %v2327 = vpack.c.b16 %v2245, %v2244
        %v2328 = vpack.c.b16 %v2247, %v2246
        %v2329 = vpack.c.b16 %v2249, %v2248
        %v2330 = vpack.c.b16 %v2251, %v2250
        %v2331 = vpack.c.b16 %v2253, %v2252
        %v2332 = vpack.c.b16 %v2255, %v2254
        %v2333 = vpack.c.b16 %v2257, %v2256
        %v2334 = vpack.c.b16 %v2259, %v2258
        %v2335 = vpack.c.b16 %v2261, %v2260
        %v2336 = vpack.c.b16 %v2263, %v2262
        %v2337 = vpack.c.b16 %v2265, %v2264
        %2410 = vmatprep.subr.bf16.mxu0 0
        %2411 = vmatpush1.bf16.msra.mxu0 %v2266
        %2412 = vmatprep.subr.bf16.mxu0 0
        %2413 = vmatpush1.bf16.msra.mxu0 %v2267
        %2414 = vmatprep.subr.bf16.mxu0 0
        %2415 = vmatpush1.bf16.msra.mxu0 %v2268
        %2416 = vmatprep.subr.bf16.mxu0 0
        %2417 = vmatpush1.bf16.msra.mxu0 %v2269
        %2418 = vmatprep.subr.bf16.mxu0 0
        %2419 = vmatpush1.bf16.msra.mxu0 %v2270
        %2420 = vmatprep.subr.bf16.mxu0 0
        %2421 = vmatpush1.bf16.msra.mxu0 %v2271
        %2422 = vmatprep.subr.bf16.mxu0 0
        %2423 = vmatpush1.bf16.msra.mxu0 %v2272
        %2424 = vmatprep.subr.bf16.mxu0 0
        %2425 = vmatpush1.bf16.msra.mxu0 %v2273
        %2426 = vmatprep.subr.bf16.mxu0 0
        %2427 = vmatpush1.bf16.msra.mxu0 %v2274
        %2428 = vmatprep.subr.bf16.mxu0 0
        %2429 = vmatpush1.bf16.msra.mxu0 %v2275
        %2430 = vmatprep.subr.bf16.mxu0 0
        %2431 = vmatpush1.bf16.msra.mxu0 %v2276
        %2432 = vmatprep.subr.bf16.mxu0 0
        %2433 = vmatpush1.bf16.msra.mxu0 %v2277
        %2434 = vmatprep.subr.bf16.mxu0 0
        %2435 = vmatpush1.bf16.msra.mxu0 %v2278
        %2436 = vmatprep.subr.bf16.mxu0 0
        %2437 = vmatpush1.bf16.msra.mxu0 %v2279
        %2438 = vmatprep.subr.bf16.mxu0 0
        %2439 = vmatpush1.bf16.msra.mxu0 %v2280
        %2440 = vmatprep.subr.bf16.mxu0 0
        %2441 = vmatpush1.bf16.msra.mxu0 %v2281
        %2442 = vmatprep.mubr.bf16.mxu0 %v589
        %2443 = vmatmul.mubr.bf16.gmra.mrb[0].mxu0 %v497
        %v2444 = vpop.f32.mrb[0].mxu0
        %v2445 = vadd.f32 %v1976, %v2444
        %v2446 = vpop.f32.mrb[0].mxu0
        %v2447 = vpop.f32.mrb[0].mxu0
        %v2448 = vadd.f32 %v1976, %v2447
        %v2449 = vpop.f32.mrb[0].mxu0
        %2450 = vmatprep.mubr.bf16.mxu0 %v601
        %2451 = vmatmul.mubr.bf16.gmra.mrb[0].mxu0 %v498
        %v2452 = vpop.f32.mrb[0].mxu0
        %v2453 = vadd.f32 %v1976, %v2452
        %v2454 = vpop.f32.mrb[0].mxu0
        %v2455 = vpop.f32.mrb[0].mxu0
        %v2456 = vadd.f32 %v1976, %v2455
        %v2457 = vpop.f32.mrb[0].mxu0
        %2458 = vmatprep.mubr.bf16.mxu0 %v613
        %2459 = vmatmul.mubr.bf16.gmra.mrb[0].mxu0 %v499
        %v2460 = vpop.f32.mrb[0].mxu0
        %v2461 = vadd.f32 %v1976, %v2460
        %v2462 = vpop.f32.mrb[0].mxu0
        %v2463 = vpop.f32.mrb[0].mxu0
        %v2464 = vadd.f32 %v1976, %v2463
        %v2465 = vpop.f32.mrb[0].mxu0
        %2466 = vmatprep.mubr.bf16.mxu0 %v625
        %2467 = vmatmul.mubr.bf16.gmra.mrb[0].mxu0 %v500
        %v2468 = vpop.f32.mrb[0].mxu0
        %v2469 = vadd.f32 %v1976, %v2468
        %v2470 = vpop.f32.mrb[0].mxu0
        %v2471 = vpop.f32.mrb[0].mxu0
        %v2472 = vadd.f32 %v1976, %v2471
        %v2473 = vpop.f32.mrb[0].mxu0
        %2474 = vmatprep.mubr.bf16.mxu0 %v637
        %2475 = vmatmul.mubr.bf16.gmra.mrb[0].mxu0 %v501
        %v2476 = vpop.f32.mrb[0].mxu0
        %v2477 = vadd.f32 %v1976, %v2476
        %v2478 = vpop.f32.mrb[0].mxu0
        %v2479 = vpop.f32.mrb[0].mxu0
        %v2480 = vadd.f32 %v1976, %v2479
        %v2481 = vpop.f32.mrb[0].mxu0
        %2482 = vmatprep.mubr.bf16.mxu0 %v649
        %2483 = vmatmul.mubr.bf16.gmra.mrb[0].mxu0 %v502
        %v2484 = vpop.f32.mrb[0].mxu0
        %v2485 = vadd.f32 %v1976, %v2484
        %v2486 = vpop.f32.mrb[0].mxu0
        %v2487 = vpop.f32.mrb[0].mxu0
        %v2488 = vadd.f32 %v1976, %v2487
        %v2489 = vpop.f32.mrb[0].mxu0
        %2490 = vmatprep.mubr.bf16.mxu0 %v661
        %2491 = vmatmul.mubr.bf16.gmra.mrb[0].mxu0 %v503
        %v2492 = vpop.f32.mrb[0].mxu0
        %v2493 = vadd.f32 %v1976, %v2492
        %v2494 = vpop.f32.mrb[0].mxu0
        %v2495 = vpop.f32.mrb[0].mxu0
        %v2496 = vadd.f32 %v1976, %v2495
        %v2497 = vpop.f32.mrb[0].mxu0
        %2498 = vmatprep.mubr.bf16.mxu0 %v673
        %2499 = vmatmul.mubr.bf16.gmra.mrb[0].mxu0 %v504
        %v2500 = vpop.f32.mrb[0].mxu0
        %v2501 = vadd.f32 %v1976, %v2500
        %v2502 = vpop.f32.mrb[0].mxu0
        %v2503 = vpop.f32.mrb[0].mxu0
        %v2504 = vadd.f32 %v1976, %v2503
        %v2505 = vpop.f32.mrb[0].mxu0
        %2506 = vmatprep.mubr.bf16.mxu0 %v685
        %2507 = vmatmul.mubr.bf16.gmra.mrb[0].mxu0 %v505
        %v2508 = vpop.f32.mrb[0].mxu0
        %v2509 = vadd.f32 %v1976, %v2508
        %v2510 = vpop.f32.mrb[0].mxu0
        %v2511 = vpop.f32.mrb[0].mxu0
        %v2512 = vadd.f32 %v1976, %v2511
        %v2513 = vpop.f32.mrb[0].mxu0
        %2514 = vmatprep.mubr.bf16.mxu0 %v697
        %2515 = vmatmul.mubr.bf16.gmra.mrb[0].mxu0 %v506
        %v2516 = vpop.f32.mrb[0].mxu0
        %v2517 = vadd.f32 %v1976, %v2516
        %v2518 = vpop.f32.mrb[0].mxu0
        %v2519 = vpop.f32.mrb[0].mxu0
        %v2520 = vadd.f32 %v1976, %v2519
        %v2521 = vpop.f32.mrb[0].mxu0
        %2522 = vmatprep.mubr.bf16.mxu0 %v709
        %2523 = vmatmul.mubr.bf16.gmra.mrb[0].mxu0 %v507
        %v2524 = vpop.f32.mrb[0].mxu0
        %v2525 = vadd.f32 %v1976, %v2524
        %v2526 = vpop.f32.mrb[0].mxu0
        %v2527 = vpop.f32.mrb[0].mxu0
        %v2528 = vadd.f32 %v1976, %v2527
        %v2529 = vpop.f32.mrb[0].mxu0
        %2530 = vmatprep.mubr.bf16.mxu0 %v721
        %2531 = vmatmul.mubr.bf16.gmra.mrb[0].mxu0 %v508
        %v2532 = vpop.f32.mrb[0].mxu0
        %v2533 = vadd.f32 %v1976, %v2532
        %v2534 = vpop.f32.mrb[0].mxu0
        %v2535 = vpop.f32.mrb[0].mxu0
        %v2536 = vadd.f32 %v1976, %v2535
        %v2537 = vpop.f32.mrb[0].mxu0
        %2538 = vmatprep.mubr.bf16.mxu0 %v733
        %2539 = vmatmul.mubr.bf16.gmra.mrb[0].mxu0 %v509
        %v2540 = vpop.f32.mrb[0].mxu0
        %v2541 = vadd.f32 %v1976, %v2540
        %v2542 = vpop.f32.mrb[0].mxu0
        %v2543 = vpop.f32.mrb[0].mxu0
        %v2544 = vadd.f32 %v1976, %v2543
        %v2545 = vpop.f32.mrb[0].mxu0
        %2546 = vmatprep.mubr.bf16.mxu0 %v745
        %2547 = vmatmul.mubr.bf16.gmra.mrb[0].mxu0 %v510
        %v2548 = vpop.f32.mrb[0].mxu0
        %v2549 = vadd.f32 %v1976, %v2548
        %v2550 = vpop.f32.mrb[0].mxu0
        %v2551 = vpop.f32.mrb[0].mxu0
        %v2552 = vadd.f32 %v1976, %v2551
        %v2553 = vpop.f32.mrb[0].mxu0
        %2554 = vmatprep.mubr.bf16.mxu0 %v757
        %2555 = vmatmul.mubr.bf16.gmra.mrb[0].mxu0 %v511
        %v2556 = vpop.f32.mrb[0].mxu0
        %v2557 = vadd.f32 %v1976, %v2556
        %v2558 = vpop.f32.mrb[0].mxu0
        %v2559 = vpop.f32.mrb[0].mxu0
        %v2560 = vadd.f32 %v1976, %v2559
        %v2561 = vpop.f32.mrb[0].mxu0
        %2562 = vmatprep.mubr.bf16.mxu0 %v769
        %2563 = vmatmul.mubr.bf16.gmra.mrb[0].mxu0 %v512
        %v2564 = vpop.f32.mrb[0].mxu0
        %v2565 = vadd.f32 %v1976, %v2564
        %v2566 = vpop.f32.mrb[0].mxu0
        %v2567 = vpop.f32.mrb[0].mxu0
        %v2568 = vadd.f32 %v1976, %v2567
        %v2569 = vpop.f32.mrb[0].mxu0
        %2570 = vdwg.mxu0
        %2571 = vmatprep.subr.bf16.mxu0 0
        %2572 = vmatpush1.bf16.msra.mxu0 %v2282
        %2573 = vmatprep.subr.bf16.mxu0 0
        %2574 = vmatpush1.bf16.msra.mxu0 %v2283
        %2575 = vmatprep.subr.bf16.mxu0 0
        %2576 = vmatpush1.bf16.msra.mxu0 %v2284
        %2577 = vmatprep.subr.bf16.mxu0 0
        %2578 = vmatpush1.bf16.msra.mxu0 %v2285
        %2579 = vmatprep.subr.bf16.mxu0 0
        %2580 = vmatpush1.bf16.msra.mxu0 %v2286
        %2581 = vmatprep.subr.bf16.mxu0 0
        %2582 = vmatpush1.bf16.msra.mxu0 %v2287
        %2583 = vmatprep.subr.bf16.mxu0 0
        %2584 = vmatpush1.bf16.msra.mxu0 %v2288
        %2585 = vmatprep.subr.bf16.mxu0 0
        %2586 = vmatpush1.bf16.msra.mxu0 %v2289
        %2587 = vmatprep.subr.bf16.mxu0 0
        %2588 = vmatpush1.bf16.msra.mxu0 %v2290
        %2589 = vmatprep.subr.bf16.mxu0 0
        %2590 = vmatpush1.bf16.msra.mxu0 %v2291
        %2591 = vmatprep.subr.bf16.mxu0 0
        %2592 = vmatpush1.bf16.msra.mxu0 %v2292
        %2593 = vmatprep.subr.bf16.mxu0 0
        %2594 = vmatpush1.bf16.msra.mxu0 %v2293
        %2595 = vmatprep.subr.bf16.mxu0 0
        %2596 = vmatpush1.bf16.msra.mxu0 %v2294
        %2597 = vmatprep.subr.bf16.mxu0 0
        %2598 = vmatpush1.bf16.msra.mxu0 %v2295
        %2599 = vmatprep.subr.bf16.mxu0 0
        %2600 = vmatpush1.bf16.msra.mxu0 %v2296
        %2601 = vmatprep.subr.bf16.mxu0 0
        %2602 = vmatpush1.bf16.msra.mxu0 %v2297
        %2603 = vmatprep.mubr.bf16.mxu0 %v963
        %2604 = vmatmul.mubr.bf16.gmra.mrb[0].mxu0 %v837
        %v2605 = vpop.f32.mrb[0].mxu0
        %v2606 = vadd.f32 %v2445, %v2605
        %v2607 = vpop.f32.mrb[0].mxu0
        %v2608 = vpop.f32.mrb[0].mxu0
        %v2609 = vadd.f32 %v2448, %v2608
        %v2610 = vpop.f32.mrb[0].mxu0
        %2611 = vmatprep.mubr.bf16.mxu0 %v964
        %2612 = vmatmul.mubr.bf16.gmra.mrb[0].mxu0 %v840
        %v2613 = vpop.f32.mrb[0].mxu0
        %v2614 = vadd.f32 %v2453, %v2613
        %v2615 = vpop.f32.mrb[0].mxu0
        %v2616 = vpop.f32.mrb[0].mxu0
        %v2617 = vadd.f32 %v2456, %v2616
        %v2618 = vpop.f32.mrb[0].mxu0
        %2619 = vmatprep.mubr.bf16.mxu0 %v965
        %2620 = vmatmul.mubr.bf16.gmra.mrb[0].mxu0 %v843
        %v2621 = vpop.f32.mrb[0].mxu0
        %v2622 = vadd.f32 %v2461, %v2621
        %v2623 = vpop.f32.mrb[0].mxu0
        %v2624 = vpop.f32.mrb[0].mxu0
        %v2625 = vadd.f32 %v2464, %v2624
        %v2626 = vpop.f32.mrb[0].mxu0
        %2627 = vmatprep.mubr.bf16.mxu0 %v966
        %2628 = vmatmul.mubr.bf16.gmra.mrb[0].mxu0 %v846
        %v2629 = vpop.f32.mrb[0].mxu0
        %v2630 = vadd.f32 %v2469, %v2629
        %v2631 = vpop.f32.mrb[0].mxu0
        %v2632 = vpop.f32.mrb[0].mxu0
        %v2633 = vadd.f32 %v2472, %v2632
        %v2634 = vpop.f32.mrb[0].mxu0
        %2635 = vmatprep.mubr.bf16.mxu0 %v967
        %2636 = vmatmul.mubr.bf16.gmra.mrb[0].mxu0 %v849
        %v2637 = vpop.f32.mrb[0].mxu0
        %v2638 = vadd.f32 %v2477, %v2637
        %v2639 = vpop.f32.mrb[0].mxu0
        %v2640 = vpop.f32.mrb[0].mxu0
        %v2641 = vadd.f32 %v2480, %v2640
        %v2642 = vpop.f32.mrb[0].mxu0
        %2643 = vmatprep.mubr.bf16.mxu0 %v968
        %2644 = vmatmul.mubr.bf16.gmra.mrb[0].mxu0 %v852
        %v2645 = vpop.f32.mrb[0].mxu0
        %v2646 = vadd.f32 %v2485, %v2645
        %v2647 = vpop.f32.mrb[0].mxu0
        %v2648 = vpop.f32.mrb[0].mxu0
        %v2649 = vadd.f32 %v2488, %v2648
        %v2650 = vpop.f32.mrb[0].mxu0
        %2651 = vmatprep.mubr.bf16.mxu0 %v969
        %2652 = vmatmul.mubr.bf16.gmra.mrb[0].mxu0 %v855
        %v2653 = vpop.f32.mrb[0].mxu0
        %v2654 = vadd.f32 %v2493, %v2653
        %v2655 = vpop.f32.mrb[0].mxu0
        %v2656 = vpop.f32.mrb[0].mxu0
        %v2657 = vadd.f32 %v2496, %v2656
        %v2658 = vpop.f32.mrb[0].mxu0
        %2659 = vmatprep.mubr.bf16.mxu0 %v970
        %2660 = vmatmul.mubr.bf16.gmra.mrb[0].mxu0 %v858
        %v2661 = vpop.f32.mrb[0].mxu0
        %v2662 = vadd.f32 %v2501, %v2661
        %v2663 = vpop.f32.mrb[0].mxu0
        %v2664 = vpop.f32.mrb[0].mxu0
        %v2665 = vadd.f32 %v2504, %v2664
        %v2666 = vpop.f32.mrb[0].mxu0
        %2667 = vmatprep.mubr.bf16.mxu0 %v971
        %2668 = vmatmul.mubr.bf16.gmra.mrb[0].mxu0 %v861
        %v2669 = vpop.f32.mrb[0].mxu0
        %v2670 = vadd.f32 %v2509, %v2669
        %v2671 = vpop.f32.mrb[0].mxu0
        %v2672 = vpop.f32.mrb[0].mxu0
        %v2673 = vadd.f32 %v2512, %v2672
        %v2674 = vpop.f32.mrb[0].mxu0
        %2675 = vmatprep.mubr.bf16.mxu0 %v972
        %2676 = vmatmul.mubr.bf16.gmra.mrb[0].mxu0 %v864
        %v2677 = vpop.f32.mrb[0].mxu0
        %v2678 = vadd.f32 %v2517, %v2677
        %v2679 = vpop.f32.mrb[0].mxu0
        %v2680 = vpop.f32.mrb[0].mxu0
        %v2681 = vadd.f32 %v2520, %v2680
        %v2682 = vpop.f32.mrb[0].mxu0
        %2683 = vmatprep.mubr.bf16.mxu0 %v973
        %2684 = vmatmul.mubr.bf16.gmra.mrb[0].mxu0 %v867
        %v2685 = vpop.f32.mrb[0].mxu0
        %v2686 = vadd.f32 %v2525, %v2685
        %v2687 = vpop.f32.mrb[0].mxu0
        %v2688 = vpop.f32.mrb[0].mxu0
        %v2689 = vadd.f32 %v2528, %v2688
        %v2690 = vpop.f32.mrb[0].mxu0
        %2691 = vmatprep.mubr.bf16.mxu0 %v974
        %2692 = vmatmul.mubr.bf16.gmra.mrb[0].mxu0 %v870
        %v2693 = vpop.f32.mrb[0].mxu0
        %v2694 = vadd.f32 %v2533, %v2693
        %v2695 = vpop.f32.mrb[0].mxu0
        %v2696 = vpop.f32.mrb[0].mxu0
        %v2697 = vadd.f32 %v2536, %v2696
        %v2698 = vpop.f32.mrb[0].mxu0
        %2699 = vmatprep.mubr.bf16.mxu0 %v975
        %2700 = vmatmul.mubr.bf16.gmra.mrb[0].mxu0 %v873
        %v2701 = vpop.f32.mrb[0].mxu0
        %v2702 = vadd.f32 %v2541, %v2701
        %v2703 = vpop.f32.mrb[0].mxu0
        %v2704 = vpop.f32.mrb[0].mxu0
        %v2705 = vadd.f32 %v2544, %v2704
        %v2706 = vpop.f32.mrb[0].mxu0
        %2707 = vmatprep.mubr.bf16.mxu0 %v976
        %2708 = vmatmul.mubr.bf16.gmra.mrb[0].mxu0 %v876
        %v2709 = vpop.f32.mrb[0].mxu0
        %v2710 = vadd.f32 %v2549, %v2709
        %v2711 = vpop.f32.mrb[0].mxu0
        %v2712 = vpop.f32.mrb[0].mxu0
        %v2713 = vadd.f32 %v2552, %v2712
        %v2714 = vpop.f32.mrb[0].mxu0
        %2715 = vmatprep.mubr.bf16.mxu0 %v977
        %2716 = vmatmul.mubr.bf16.gmra.mrb[0].mxu0 %v879
        %v2717 = vpop.f32.mrb[0].mxu0
        %v2718 = vadd.f32 %v2557, %v2717
        %v2719 = vpop.f32.mrb[0].mxu0
        %v2720 = vpop.f32.mrb[0].mxu0
        %v2721 = vadd.f32 %v2560, %v2720
        %v2722 = vpop.f32.mrb[0].mxu0
        %2723 = vmatprep.mubr.bf16.mxu0 %v978
        %2724 = vmatmul.mubr.bf16.gmra.mrb[0].mxu0 %v882
        %v2725 = vpop.f32.mrb[0].mxu0
        %v2726 = vadd.f32 %v2565, %v2725
        %v2727 = vpop.f32.mrb[0].mxu0
        %v2728 = vpop.f32.mrb[0].mxu0
        %v2729 = vadd.f32 %v2568, %v2728
        %v2730 = vpop.f32.mrb[0].mxu0
        %2731 = vdwg.mxu0
        %2732 = vmatprep.subr.bf16.mxu0 0
        %2733 = vmatpush1.bf16.msra.mxu0 %v2298
        %2734 = vmatprep.subr.bf16.mxu0 0
        %2735 = vmatpush1.bf16.msra.mxu0 %v2299
        %2736 = vmatprep.subr.bf16.mxu0 0
        %2737 = vmatpush1.bf16.msra.mxu0 %v2300
        %2738 = vmatprep.subr.bf16.mxu0 0
        %2739 = vmatpush1.bf16.msra.mxu0 %v2301
        %2740 = vmatprep.subr.bf16.mxu0 0
        %2741 = vmatpush1.bf16.msra.mxu0 %v2302
        %2742 = vmatprep.subr.bf16.mxu0 0
        %2743 = vmatpush1.bf16.msra.mxu0 %v2303
        %2744 = vmatprep.subr.bf16.mxu0 0
        %2745 = vmatpush1.bf16.msra.mxu0 %v2304
        %2746 = vmatprep.subr.bf16.mxu0 0
        %2747 = vmatpush1.bf16.msra.mxu0 %v2305
        %2748 = vmatprep.subr.bf16.mxu0 0
        %2749 = vmatpush1.bf16.msra.mxu0 %v2306
        %2750 = vmatprep.subr.bf16.mxu0 0
        %2751 = vmatpush1.bf16.msra.mxu0 %v2307
        %2752 = vmatprep.subr.bf16.mxu0 0
        %2753 = vmatpush1.bf16.msra.mxu0 %v2308
        %2754 = vmatprep.subr.bf16.mxu0 0
        %2755 = vmatpush1.bf16.msra.mxu0 %v2309
        %2756 = vmatprep.subr.bf16.mxu0 0
        %2757 = vmatpush1.bf16.msra.mxu0 %v2310
        %2758 = vmatprep.subr.bf16.mxu0 0
        %2759 = vmatpush1.bf16.msra.mxu0 %v2311
        %2760 = vmatprep.subr.bf16.mxu0 0
        %2761 = vmatpush1.bf16.msra.mxu0 %v2312
        %2762 = vmatprep.subr.bf16.mxu0 0
        %2763 = vmatpush1.bf16.msra.mxu0 %v2313
        %2764 = vmatprep.mubr.bf16.mxu0 %v1301
        %2765 = vmatmul.mubr.bf16.gmra.mrb[0].mxu0 %v1054
        %v2766 = vpop.f32.mrb[0].mxu0
        %v2767 = vadd.f32 %v2606, %v2766
        %v2768 = vpop.f32.mrb[0].mxu0
        %v2769 = vpop.f32.mrb[0].mxu0
        %v2770 = vadd.f32 %v2609, %v2769
        %v2771 = vpop.f32.mrb[0].mxu0
        %2772 = vmatprep.mubr.bf16.mxu0 %v1304
        %2773 = vmatmul.mubr.bf16.gmra.mrb[0].mxu0 %v1066
        %v2774 = vpop.f32.mrb[0].mxu0
        %v2775 = vadd.f32 %v2614, %v2774
        %v2776 = vpop.f32.mrb[0].mxu0
        %v2777 = vpop.f32.mrb[0].mxu0
        %v2778 = vadd.f32 %v2617, %v2777
        %v2779 = vpop.f32.mrb[0].mxu0
        %2780 = vmatprep.mubr.bf16.mxu0 %v1307
        %2781 = vmatmul.mubr.bf16.gmra.mrb[0].mxu0 %v1078
        %v2782 = vpop.f32.mrb[0].mxu0
        %v2783 = vadd.f32 %v2622, %v2782
        %v2784 = vpop.f32.mrb[0].mxu0
        %v2785 = vpop.f32.mrb[0].mxu0
        %v2786 = vadd.f32 %v2625, %v2785
        %v2787 = vpop.f32.mrb[0].mxu0
        %2788 = vmatprep.mubr.bf16.mxu0 %v1310
        %2789 = vmatmul.mubr.bf16.gmra.mrb[0].mxu0 %v1090
        %v2790 = vpop.f32.mrb[0].mxu0
        %v2791 = vadd.f32 %v2630, %v2790
        %v2792 = vpop.f32.mrb[0].mxu0
        %v2793 = vpop.f32.mrb[0].mxu0
        %v2794 = vadd.f32 %v2633, %v2793
        %v2795 = vpop.f32.mrb[0].mxu0
        %2796 = vmatprep.mubr.bf16.mxu0 %v1313
        %2797 = vmatmul.mubr.bf16.gmra.mrb[0].mxu0 %v1102
        %v2798 = vpop.f32.mrb[0].mxu0
        %v2799 = vadd.f32 %v2638, %v2798
        %v2800 = vpop.f32.mrb[0].mxu0
        %v2801 = vpop.f32.mrb[0].mxu0
        %v2802 = vadd.f32 %v2641, %v2801
        %v2803 = vpop.f32.mrb[0].mxu0
        %2804 = vmatprep.mubr.bf16.mxu0 %v1316
        %2805 = vmatmul.mubr.bf16.gmra.mrb[0].mxu0 %v1114
        %v2806 = vpop.f32.mrb[0].mxu0
        %v2807 = vadd.f32 %v2646, %v2806
        %v2808 = vpop.f32.mrb[0].mxu0
        %v2809 = vpop.f32.mrb[0].mxu0
        %v2810 = vadd.f32 %v2649, %v2809
        %v2811 = vpop.f32.mrb[0].mxu0
        %2812 = vmatprep.mubr.bf16.mxu0 %v1319
        %2813 = vmatmul.mubr.bf16.gmra.mrb[0].mxu0 %v1126
        %v2814 = vpop.f32.mrb[0].mxu0
        %v2815 = vadd.f32 %v2654, %v2814
        %v2816 = vpop.f32.mrb[0].mxu0
        %v2817 = vpop.f32.mrb[0].mxu0
        %v2818 = vadd.f32 %v2657, %v2817
        %v2819 = vpop.f32.mrb[0].mxu0
        %2820 = vmatprep.mubr.bf16.mxu0 %v1322
        %2821 = vmatmul.mubr.bf16.gmra.mrb[0].mxu0 %v1138
        %v2822 = vpop.f32.mrb[0].mxu0
        %v2823 = vadd.f32 %v2662, %v2822
        %v2824 = vpop.f32.mrb[0].mxu0
        %v2825 = vpop.f32.mrb[0].mxu0
        %v2826 = vadd.f32 %v2665, %v2825
        %v2827 = vpop.f32.mrb[0].mxu0
        %2828 = vmatprep.mubr.bf16.mxu0 %v1325
        %2829 = vmatmul.mubr.bf16.gmra.mrb[0].mxu0 %v1150
        %v2830 = vpop.f32.mrb[0].mxu0
        %v2831 = vadd.f32 %v2670, %v2830
        %v2832 = vpop.f32.mrb[0].mxu0
        %v2833 = vpop.f32.mrb[0].mxu0
        %v2834 = vadd.f32 %v2673, %v2833
        %v2835 = vpop.f32.mrb[0].mxu0
        %2836 = vmatprep.mubr.bf16.mxu0 %v1328
        %2837 = vmatmul.mubr.bf16.gmra.mrb[0].mxu0 %v1162
        %v2838 = vpop.f32.mrb[0].mxu0
        %v2839 = vadd.f32 %v2678, %v2838
        %v2840 = vpop.f32.mrb[0].mxu0
        %v2841 = vpop.f32.mrb[0].mxu0
        %v2842 = vadd.f32 %v2681, %v2841
        %v2843 = vpop.f32.mrb[0].mxu0
        %2844 = vmatprep.mubr.bf16.mxu0 %v1331
        %2845 = vmatmul.mubr.bf16.gmra.mrb[0].mxu0 %v1174
        %v2846 = vpop.f32.mrb[0].mxu0
        %v2847 = vadd.f32 %v2686, %v2846
        %v2848 = vpop.f32.mrb[0].mxu0
        %v2849 = vpop.f32.mrb[0].mxu0
        %v2850 = vadd.f32 %v2689, %v2849
        %v2851 = vpop.f32.mrb[0].mxu0
        %2852 = vmatprep.mubr.bf16.mxu0 %v1334
        %2853 = vmatmul.mubr.bf16.gmra.mrb[0].mxu0 %v1186
        %v2854 = vpop.f32.mrb[0].mxu0
        %v2855 = vadd.f32 %v2694, %v2854
        %v2856 = vpop.f32.mrb[0].mxu0
        %v2857 = vpop.f32.mrb[0].mxu0
        %v2858 = vadd.f32 %v2697, %v2857
        %v2859 = vpop.f32.mrb[0].mxu0
        %2860 = vmatprep.mubr.bf16.mxu0 %v1337
        %2861 = vmatmul.mubr.bf16.gmra.mrb[0].mxu0 %v1198
        %v2862 = vpop.f32.mrb[0].mxu0
        %v2863 = vadd.f32 %v2702, %v2862
        %v2864 = vpop.f32.mrb[0].mxu0
        %v2865 = vpop.f32.mrb[0].mxu0
        %v2866 = vadd.f32 %v2705, %v2865
        %v2867 = vpop.f32.mrb[0].mxu0
        %2868 = vmatprep.mubr.bf16.mxu0 %v1340
        %2869 = vmatmul.mubr.bf16.gmra.mrb[0].mxu0 %v1210
        %v2870 = vpop.f32.mrb[0].mxu0
        %v2871 = vadd.f32 %v2710, %v2870
        %v2872 = vpop.f32.mrb[0].mxu0
        %v2873 = vpop.f32.mrb[0].mxu0
        %v2874 = vadd.f32 %v2713, %v2873
        %v2875 = vpop.f32.mrb[0].mxu0
        %2876 = vmatprep.mubr.bf16.mxu0 %v1343
        %2877 = vmatmul.mubr.bf16.gmra.mrb[0].mxu0 %v1222
        %v2878 = vpop.f32.mrb[0].mxu0
        %v2879 = vadd.f32 %v2718, %v2878
        %v2880 = vpop.f32.mrb[0].mxu0
        %v2881 = vpop.f32.mrb[0].mxu0
        %v2882 = vadd.f32 %v2721, %v2881
        %v2883 = vpop.f32.mrb[0].mxu0
        %2884 = vmatprep.mubr.bf16.mxu0 %v1346
        %2885 = vmatmul.mubr.bf16.gmra.mrb[0].mxu0 %v1234
        %v2886 = vpop.f32.mrb[0].mxu0
        %v2887 = vadd.f32 %v2726, %v2886
        %v2888 = vpop.f32.mrb[0].mxu0
        %v2889 = vpop.f32.mrb[0].mxu0
        %v2890 = vadd.f32 %v2729, %v2889
        %v2891 = vpop.f32.mrb[0].mxu0
        %2892 = vdwg.mxu0
        %2893 = vmatprep.subr.bf16.mxu0 0
        %2894 = vmatpush1.bf16.msra.mxu0 %v2314
        %2895 = vmatprep.subr.bf16.mxu0 0
        %2896 = vmatpush1.bf16.msra.mxu0 %v2315
        %2897 = vmatprep.subr.bf16.mxu0 0
        %2898 = vmatpush1.bf16.msra.mxu0 %v2316
        %2899 = vmatprep.subr.bf16.mxu0 0
        %2900 = vmatpush1.bf16.msra.mxu0 %v2317
        %2901 = vmatprep.subr.bf16.mxu0 0
        %2902 = vmatpush1.bf16.msra.mxu0 %v2318
        %2903 = vmatprep.subr.bf16.mxu0 0
        %2904 = vmatpush1.bf16.msra.mxu0 %v2319
        %2905 = vmatprep.subr.bf16.mxu0 0
        %2906 = vmatpush1.bf16.msra.mxu0 %v2320
        %2907 = vmatprep.subr.bf16.mxu0 0
        %2908 = vmatpush1.bf16.msra.mxu0 %v2321
        %2909 = vmatprep.subr.bf16.mxu0 0
        %2910 = vmatpush1.bf16.msra.mxu0 %v2322
        %2911 = vmatprep.subr.bf16.mxu0 0
        %2912 = vmatpush1.bf16.msra.mxu0 %v2323
        %2913 = vmatprep.subr.bf16.mxu0 0
        %2914 = vmatpush1.bf16.msra.mxu0 %v2324
        %2915 = vmatprep.subr.bf16.mxu0 0
        %2916 = vmatpush1.bf16.msra.mxu0 %v2325
        %2917 = vmatprep.subr.bf16.mxu0 0
        %2918 = vmatpush1.bf16.msra.mxu0 %v2326
        %2919 = vmatprep.subr.bf16.mxu0 0
        %2920 = vmatpush1.bf16.msra.mxu0 %v2327
        %2921 = vmatprep.subr.bf16.mxu0 0
        %2922 = vmatpush1.bf16.msra.mxu0 %v2328
        %2923 = vmatprep.subr.bf16.mxu0 0
        %2924 = vmatpush1.bf16.msra.mxu0 %v2329
        %2925 = vmatprep.mubr.bf16.mxu0 %v1518
        %2926 = vmatmul.mubr.bf16.gmra.mrb[0].mxu0 %v1427
        %v2927 = vpop.f32.mrb[0].mxu0
        %v2928 = vadd.f32 %v2767, %v2927
        %v2929 = vpop.f32.mrb[0].mxu0
        %v2930 = vpop.f32.mrb[0].mxu0
        %v2931 = vadd.f32 %v2770, %v2930
        %v2932 = vpop.f32.mrb[0].mxu0
        %2933 = vmatprep.mubr.bf16.mxu0 %v1530
        %2934 = vmatmul.mubr.bf16.gmra.mrb[0].mxu0 %v1428
        %v2935 = vpop.f32.mrb[0].mxu0
        %v2936 = vadd.f32 %v2775, %v2935
        %v2937 = vpop.f32.mrb[0].mxu0
        %v2938 = vpop.f32.mrb[0].mxu0
        %v2939 = vadd.f32 %v2778, %v2938
        %v2940 = vpop.f32.mrb[0].mxu0
        %2941 = vmatprep.mubr.bf16.mxu0 %v1542
        %2942 = vmatmul.mubr.bf16.gmra.mrb[0].mxu0 %v1429
        %v2943 = vpop.f32.mrb[0].mxu0
        %v2944 = vadd.f32 %v2783, %v2943
        %v2945 = vpop.f32.mrb[0].mxu0
        %v2946 = vpop.f32.mrb[0].mxu0
        %v2947 = vadd.f32 %v2786, %v2946
        %v2948 = vpop.f32.mrb[0].mxu0
        %2949 = vmatprep.mubr.bf16.mxu0 %v1554
        %2950 = vmatmul.mubr.bf16.gmra.mrb[0].mxu0 %v1430
        %v2951 = vpop.f32.mrb[0].mxu0
        %v2952 = vadd.f32 %v2791, %v2951
        %v2953 = vpop.f32.mrb[0].mxu0
        %v2954 = vpop.f32.mrb[0].mxu0
        %v2955 = vadd.f32 %v2794, %v2954
        %v2956 = vpop.f32.mrb[0].mxu0
        %2957 = vmatprep.mubr.bf16.mxu0 %v1566
        %2958 = vmatmul.mubr.bf16.gmra.mrb[0].mxu0 %v1431
        %v2959 = vpop.f32.mrb[0].mxu0
        %v2960 = vadd.f32 %v2799, %v2959
        %v2961 = vpop.f32.mrb[0].mxu0
        %v2962 = vpop.f32.mrb[0].mxu0
        %v2963 = vadd.f32 %v2802, %v2962
        %v2964 = vpop.f32.mrb[0].mxu0
        %2965 = vmatprep.mubr.bf16.mxu0 %v1578
        %2966 = vmatmul.mubr.bf16.gmra.mrb[0].mxu0 %v1432
        %v2967 = vpop.f32.mrb[0].mxu0
        %v2968 = vadd.f32 %v2807, %v2967
        %v2969 = vpop.f32.mrb[0].mxu0
        %v2970 = vpop.f32.mrb[0].mxu0
        %v2971 = vadd.f32 %v2810, %v2970
        %v2972 = vpop.f32.mrb[0].mxu0
        %2973 = vmatprep.mubr.bf16.mxu0 %v1590
        %2974 = vmatmul.mubr.bf16.gmra.mrb[0].mxu0 %v1433
        %v2975 = vpop.f32.mrb[0].mxu0
        %v2976 = vadd.f32 %v2815, %v2975
        %v2977 = vpop.f32.mrb[0].mxu0
        %v2978 = vpop.f32.mrb[0].mxu0
        %v2979 = vadd.f32 %v2818, %v2978
        %v2980 = vpop.f32.mrb[0].mxu0
        %2981 = vmatprep.mubr.bf16.mxu0 %v1602
        %2982 = vmatmul.mubr.bf16.gmra.mrb[0].mxu0 %v1434
        %v2983 = vpop.f32.mrb[0].mxu0
        %v2984 = vadd.f32 %v2823, %v2983
        %v2985 = vpop.f32.mrb[0].mxu0
        %v2986 = vpop.f32.mrb[0].mxu0
        %v2987 = vadd.f32 %v2826, %v2986
        %v2988 = vpop.f32.mrb[0].mxu0
        %2989 = vmatprep.mubr.bf16.mxu0 %v1614
        %2990 = vmatmul.mubr.bf16.gmra.mrb[0].mxu0 %v1435
        %v2991 = vpop.f32.mrb[0].mxu0
        %v2992 = vadd.f32 %v2831, %v2991
        %v2993 = vpop.f32.mrb[0].mxu0
        %v2994 = vpop.f32.mrb[0].mxu0
        %v2995 = vadd.f32 %v2834, %v2994
        %v2996 = vpop.f32.mrb[0].mxu0
        %2997 = vmatprep.mubr.bf16.mxu0 %v1626
        %2998 = vmatmul.mubr.bf16.gmra.mrb[0].mxu0 %v1436
        %v2999 = vpop.f32.mrb[0].mxu0
        %v3000 = vadd.f32 %v2839, %v2999
        %v3001 = vpop.f32.mrb[0].mxu0
        %v3002 = vpop.f32.mrb[0].mxu0
        %v3003 = vadd.f32 %v2842, %v3002
        %v3004 = vpop.f32.mrb[0].mxu0
        %3005 = vmatprep.mubr.bf16.mxu0 %v1638
        %3006 = vmatmul.mubr.bf16.gmra.mrb[0].mxu0 %v1437
        %v3007 = vpop.f32.mrb[0].mxu0
        %v3008 = vadd.f32 %v2847, %v3007
        %v3009 = vpop.f32.mrb[0].mxu0
        %v3010 = vpop.f32.mrb[0].mxu0
        %v3011 = vadd.f32 %v2850, %v3010
        %v3012 = vpop.f32.mrb[0].mxu0
        %3013 = vmatprep.mubr.bf16.mxu0 %v1650
        %3014 = vmatmul.mubr.bf16.gmra.mrb[0].mxu0 %v1438
        %v3015 = vpop.f32.mrb[0].mxu0
        %v3016 = vadd.f32 %v2855, %v3015
        %v3017 = vpop.f32.mrb[0].mxu0
        %v3018 = vpop.f32.mrb[0].mxu0
        %v3019 = vadd.f32 %v2858, %v3018
        %v3020 = vpop.f32.mrb[0].mxu0
        %3021 = vmatprep.mubr.bf16.mxu0 %v1662
        %3022 = vmatmul.mubr.bf16.gmra.mrb[0].mxu0 %v1439
        %v3023 = vpop.f32.mrb[0].mxu0
        %v3024 = vadd.f32 %v2863, %v3023
        %v3025 = vpop.f32.mrb[0].mxu0
        %v3026 = vpop.f32.mrb[0].mxu0
        %v3027 = vadd.f32 %v2866, %v3026
        %v3028 = vpop.f32.mrb[0].mxu0
        %3029 = vmatprep.mubr.bf16.mxu0 %v1674
        %3030 = vmatmul.mubr.bf16.gmra.mrb[0].mxu0 %v1440
        %v3031 = vpop.f32.mrb[0].mxu0
        %v3032 = vadd.f32 %v2871, %v3031
        %v3033 = vpop.f32.mrb[0].mxu0
        %v3034 = vpop.f32.mrb[0].mxu0
        %v3035 = vadd.f32 %v2874, %v3034
        %v3036 = vpop.f32.mrb[0].mxu0
        %3037 = vmatprep.mubr.bf16.mxu0 %v1686
        %3038 = vmatmul.mubr.bf16.gmra.mrb[0].mxu0 %v1441
        %v3039 = vpop.f32.mrb[0].mxu0
        %v3040 = vadd.f32 %v2879, %v3039
        %v3041 = vpop.f32.mrb[0].mxu0
        %v3042 = vpop.f32.mrb[0].mxu0
        %v3043 = vadd.f32 %v2882, %v3042
        %v3044 = vpop.f32.mrb[0].mxu0
        %3045 = vmatprep.mubr.bf16.mxu0 %v1698
        %3046 = vmatmul.mubr.bf16.gmra.mrb[0].mxu0 %v1442
        %v3047 = vpop.f32.mrb[0].mxu0
        %v3048 = vadd.f32 %v2887, %v3047
        %v3049 = vpop.f32.mrb[0].mxu0
        %v3050 = vpop.f32.mrb[0].mxu0
        %v3051 = vadd.f32 %v2890, %v3050
        %v3052 = vpop.f32.mrb[0].mxu0
        %3053 = vdwg.mxu0
        %3054 = vmatprep.subr.bf16.mxu0 0
        %3055 = vmatpush1.bf16.msra.mxu0 %v2330
        %3056 = vmatprep.subr.bf16.mxu0 0
        %3057 = vmatpush1.bf16.msra.mxu0 %v2331
        %3058 = vmatprep.subr.bf16.mxu0 0
        %3059 = vmatpush1.bf16.msra.mxu0 %v2332
        %3060 = vmatprep.subr.bf16.mxu0 0
        %3061 = vmatpush1.bf16.msra.mxu0 %v2333
        %3062 = vmatprep.subr.bf16.mxu0 0
        %3063 = vmatpush1.bf16.msra.mxu0 %v2334
        %3064 = vmatprep.subr.bf16.mxu0 0
        %3065 = vmatpush1.bf16.msra.mxu0 %v2335
        %3066 = vmatprep.subr.bf16.mxu0 0
        %3067 = vmatpush1.bf16.msra.mxu0 %v2336
        %3068 = vmatprep.subr.bf16.mxu0 0
        %3069 = vmatpush1.bf16.msra.mxu0 %v2337
        %3070 = vmatprep.subr.bf16.mxu0 0
        %3071 = vmatpush1.bf16.msra.mxu0 0
        %3072 = vmatprep.subr.bf16.mxu0 0
        %3073 = vmatpush1.bf16.msra.mxu0 0
        %3074 = vmatprep.subr.bf16.mxu0 0
        %3075 = vmatpush1.bf16.msra.mxu0 0
        %3076 = vmatprep.subr.bf16.mxu0 0
        %3077 = vmatpush1.bf16.msra.mxu0 0
        %3078 = vmatprep.subr.bf16.mxu0 0
        %3079 = vmatpush1.bf16.msra.mxu0 0
        %3080 = vmatprep.subr.bf16.mxu0 0
        %3081 = vmatpush1.bf16.msra.mxu0 0
        %3082 = vmatprep.subr.bf16.mxu0 0
        %3083 = vmatpush1.bf16.msra.mxu0 0
        %3084 = vmatprep.subr.bf16.mxu0 0
        %3085 = vmatpush1.bf16.msra.mxu0 0
        %3086 = vmatprep.mubr.bf16.mxu0 0
        %3087 = vmatmul.mubr.bf16.gmra.mrb[0].mxu0 %v1765
        %v3088 = vpop.f32.mrb[0].mxu0
        %v3089 = vadd.f32 %v2928, %v3088
        %v3090 = vpop.f32.mrb[0].mxu0
        %v3091 = vpop.f32.mrb[0].mxu0
        %v3092 = vadd.f32 %v2931, %v3091
        %v3093 = vpop.f32.mrb[0].mxu0
        %3094 = vmatprep.mubr.bf16.mxu0 0
        %3095 = vmatmul.mubr.bf16.gmra.mrb[0].mxu0 %v1768
        %v3096 = vpop.f32.mrb[0].mxu0
        %v3097 = vadd.f32 %v2936, %v3096
        %v3098 = vpop.f32.mrb[0].mxu0
        %v3099 = vpop.f32.mrb[0].mxu0
        %v3100 = vadd.f32 %v2939, %v3099
        %v3101 = vpop.f32.mrb[0].mxu0
        %3102 = vmatprep.mubr.bf16.mxu0 0
        %3103 = vmatmul.mubr.bf16.gmra.mrb[0].mxu0 %v1771
        %v3104 = vpop.f32.mrb[0].mxu0
        %v3105 = vadd.f32 %v2944, %v3104
        %v3106 = vpop.f32.mrb[0].mxu0
        %v3107 = vpop.f32.mrb[0].mxu0
        %v3108 = vadd.f32 %v2947, %v3107
        %v3109 = vpop.f32.mrb[0].mxu0
        %3110 = vmatprep.mubr.bf16.mxu0 0
        %3111 = vmatmul.mubr.bf16.gmra.mrb[0].mxu0 %v1774
        %v3112 = vpop.f32.mrb[0].mxu0
        %v3113 = vadd.f32 %v2952, %v3112
        %v3114 = vpop.f32.mrb[0].mxu0
        %v3115 = vpop.f32.mrb[0].mxu0
        %v3116 = vadd.f32 %v2955, %v3115
        %v3117 = vpop.f32.mrb[0].mxu0
        %3118 = vmatprep.mubr.bf16.mxu0 0
        %3119 = vmatmul.mubr.bf16.gmra.mrb[0].mxu0 %v1777
        %v3120 = vpop.f32.mrb[0].mxu0
        %v3121 = vadd.f32 %v2960, %v3120
        %v3122 = vpop.f32.mrb[0].mxu0
        %v3123 = vpop.f32.mrb[0].mxu0
        %v3124 = vadd.f32 %v2963, %v3123
        %v3125 = vpop.f32.mrb[0].mxu0
        %3126 = vmatprep.mubr.bf16.mxu0 0
        %3127 = vmatmul.mubr.bf16.gmra.mrb[0].mxu0 %v1780
        %v3128 = vpop.f32.mrb[0].mxu0
        %v3129 = vadd.f32 %v2968, %v3128
        %v3130 = vpop.f32.mrb[0].mxu0
        %v3131 = vpop.f32.mrb[0].mxu0
        %v3132 = vadd.f32 %v2971, %v3131
        %v3133 = vpop.f32.mrb[0].mxu0
        %3134 = vmatprep.mubr.bf16.mxu0 0
        %3135 = vmatmul.mubr.bf16.gmra.mrb[0].mxu0 %v1783
        %v3136 = vpop.f32.mrb[0].mxu0
        %v3137 = vadd.f32 %v2976, %v3136
        %v3138 = vpop.f32.mrb[0].mxu0
        %v3139 = vpop.f32.mrb[0].mxu0
        %v3140 = vadd.f32 %v2979, %v3139
        %v3141 = vpop.f32.mrb[0].mxu0
        %3142 = vmatprep.mubr.bf16.mxu0 0
        %3143 = vmatmul.mubr.bf16.gmra.mrb[0].mxu0 %v1786
        %v3144 = vpop.f32.mrb[0].mxu0
        %v3145 = vadd.f32 %v2984, %v3144
        %v3146 = vpop.f32.mrb[0].mxu0
        %v3147 = vpop.f32.mrb[0].mxu0
        %v3148 = vadd.f32 %v2987, %v3147
        %v3149 = vpop.f32.mrb[0].mxu0
        %3150 = vmatprep.mubr.bf16.mxu0 0
        %3151 = vmatmul.mubr.bf16.gmra.mrb[0].mxu0 %v1789
        %v3152 = vpop.f32.mrb[0].mxu0
        %v3153 = vadd.f32 %v2992, %v3152
        %v3154 = vpop.f32.mrb[0].mxu0
        %v3155 = vpop.f32.mrb[0].mxu0
        %v3156 = vadd.f32 %v2995, %v3155
        %v3157 = vpop.f32.mrb[0].mxu0
        %3158 = vmatprep.mubr.bf16.mxu0 0
        %3159 = vmatmul.mubr.bf16.gmra.mrb[0].mxu0 %v1792
        %v3160 = vpop.f32.mrb[0].mxu0
        %v3161 = vadd.f32 %v3000, %v3160
        %v3162 = vpop.f32.mrb[0].mxu0
        %v3163 = vpop.f32.mrb[0].mxu0
        %v3164 = vadd.f32 %v3003, %v3163
        %v3165 = vpop.f32.mrb[0].mxu0
        %3166 = vmatprep.mubr.bf16.mxu0 0
        %3167 = vmatmul.mubr.bf16.gmra.mrb[0].mxu0 %v1795
        %v3168 = vpop.f32.mrb[0].mxu0
        %v3169 = vadd.f32 %v3008, %v3168
        %v3170 = vpop.f32.mrb[0].mxu0
        %v3171 = vpop.f32.mrb[0].mxu0
        %v3172 = vadd.f32 %v3011, %v3171
        %v3173 = vpop.f32.mrb[0].mxu0
        %3174 = vmatprep.mubr.bf16.mxu0 0
        %3175 = vmatmul.mubr.bf16.gmra.mrb[0].mxu0 %v1798
        %v3176 = vpop.f32.mrb[0].mxu0
        %v3177 = vadd.f32 %v3016, %v3176
        %v3178 = vpop.f32.mrb[0].mxu0
        %v3179 = vpop.f32.mrb[0].mxu0
        %v3180 = vadd.f32 %v3019, %v3179
        %v3181 = vpop.f32.mrb[0].mxu0
        %3182 = vmatprep.mubr.bf16.mxu0 0
        %3183 = vmatmul.mubr.bf16.gmra.mrb[0].mxu0 %v1801
        %v3184 = vpop.f32.mrb[0].mxu0
        %v3185 = vadd.f32 %v3024, %v3184
        %v3186 = vpop.f32.mrb[0].mxu0
        %v3187 = vpop.f32.mrb[0].mxu0
        %v3188 = vadd.f32 %v3027, %v3187
        %v3189 = vpop.f32.mrb[0].mxu0
        %3190 = vmatprep.mubr.bf16.mxu0 0
        %3191 = vmatmul.mubr.bf16.gmra.mrb[0].mxu0 %v1804
        %v3192 = vpop.f32.mrb[0].mxu0
        %v3193 = vadd.f32 %v3032, %v3192
        %v3194 = vpop.f32.mrb[0].mxu0
        %v3195 = vpop.f32.mrb[0].mxu0
        %v3196 = vadd.f32 %v3035, %v3195
        %v3197 = vpop.f32.mrb[0].mxu0
        %3198 = vmatprep.mubr.bf16.mxu0 0
        %3199 = vmatmul.mubr.bf16.gmra.mrb[0].mxu0 %v1807
        %v3200 = vpop.f32.mrb[0].mxu0
        %v3201 = vadd.f32 %v3040, %v3200
        %v3202 = vpop.f32.mrb[0].mxu0
        %v3203 = vpop.f32.mrb[0].mxu0
        %v3204 = vadd.f32 %v3043, %v3203
        %v3205 = vpop.f32.mrb[0].mxu0
        %3206 = vmatprep.mubr.bf16.mxu0 0
        %3207 = vmatmul.mubr.bf16.gmra.mrb[0].mxu0 %v1810
        %v3208 = vpop.f32.mrb[0].mxu0
        %v3209 = vadd.f32 %v3048, %v3208
        %v3210 = vpop.f32.mrb[0].mxu0
        %v3211 = vpop.f32.mrb[0].mxu0
        %v3212 = vadd.f32 %v3051, %v3211
        %v3213 = vpop.f32.mrb[0].mxu0
        %3214 = vdwg.mxu0
        %v3215 = vmax.f32 %v3089, 0.0
        %v3216 = vmax.f32 %v3092, 0.0
        %v3217 = vmax.f32 %v3097, 0.0
        %v3218 = vmax.f32 %v3100, 0.0
        %v3219 = vmax.f32 %v3105, 0.0
        %v3220 = vmax.f32 %v3108, 0.0
        %v3221 = vmax.f32 %v3113, 0.0
        %v3222 = vmax.f32 %v3116, 0.0
        %v3223 = vmax.f32 %v3121, 0.0
        %v3224 = vmax.f32 %v3124, 0.0
        %v3225 = vmax.f32 %v3129, 0.0
        %v3226 = vmax.f32 %v3132, 0.0
        %v3227 = vmax.f32 %v3137, 0.0
        %v3228 = vmax.f32 %v3140, 0.0
        %v3229 = vmax.f32 %v3145, 0.0
        %v3230 = vmax.f32 %v3148, 0.0
        %v3231 = vmax.f32 %v3153, 0.0
        %v3232 = vmax.f32 %v3156, 0.0
        %v3233 = vmax.f32 %v3161, 0.0
        %v3234 = vmax.f32 %v3164, 0.0
        %v3235 = vmax.f32 %v3169, 0.0
        %v3236 = vmax.f32 %v3172, 0.0
        %v3237 = vmax.f32 %v3177, 0.0
        %v3238 = vmax.f32 %v3180, 0.0
        %v3239 = vmax.f32 %v3185, 0.0
        %v3240 = vmax.f32 %v3188, 0.0
        %v3241 = vmax.f32 %v3193, 0.0
        %v3242 = vmax.f32 %v3196, 0.0
        %v3243 = vmax.f32 %v3201, 0.0
        %v3244 = vmax.f32 %v3204, 0.0
        %v3245 = vmax.f32 %v3209, 0.0
        %v3246 = vmax.f32 %v3212, 0.0
        %v3247 = vpack.c.bf16 %v3216, %v3215
        %v3248 = vpack.c.bf16 %v3218, %v3217
        %v3249 = vpack.c.bf16 %v3220, %v3219
        %v3250 = vpack.c.bf16 %v3222, %v3221
        %v3251 = vpack.c.bf16 %v3224, %v3223
        %v3252 = vpack.c.bf16 %v3226, %v3225
        %v3253 = vpack.c.bf16 %v3228, %v3227
        %v3254 = vpack.c.bf16 %v3230, %v3229
        %v3255 = vpack.c.bf16 %v3232, %v3231
        %v3256 = vpack.c.bf16 %v3234, %v3233
        %v3257 = vpack.c.bf16 %v3236, %v3235
        %v3258 = vpack.c.bf16 %v3238, %v3237
        %v3259 = vpack.c.bf16 %v3240, %v3239
        %v3260 = vpack.c.bf16 %v3242, %v3241
        %v3261 = vpack.c.bf16 %v3244, %v3243
        %v3262 = vpack.c.bf16 %v3246, %v3245
        %s3263 = scalar_lea.vmem [#allocation2], 24
        %3264 = vst [vmem:[%s3263 + $0x8] sm:$0xff] %v3247
        %3265 = vst [vmem:[%s3263 + $0x20] sm:$0xff] %v3248
        %3266 = vst [vmem:[%s3263 + $0x38] sm:$0xff] %v3249
        %3267 = vst [vmem:[%s3263 + $0x50] sm:$0xff] %v3250
        %3268 = vst [vmem:[%s3263 + $0x68] sm:$0xff] %v3251
        %3269 = vst [vmem:[%s3263 + $0x80] sm:$0xff] %v3252
        %3270 = vst [vmem:[%s3263 + $0x98] sm:$0xff] %v3253
        %3271 = vst [vmem:[%s3263 + $0xb0] sm:$0xff] %v3254
        %3272 = vst [vmem:[%s3263 + $0xc8] sm:$0xff] %v3255
        %3273 = vst [vmem:[%s3263 + $0xe0] sm:$0xff] %v3256
        %3274 = vst [vmem:[%s3263 + $0xf8] sm:$0xff] %v3257
        %3275 = vst [vmem:[%s3263 + $0x110] sm:$0xff] %v3258
        %3276 = vst [vmem:[%s3263 + $0x128] sm:$0xff] %v3259
        %3277 = vst [vmem:[%s3263 + $0x140] sm:$0xff] %v3260
        %3278 = vst [vmem:[%s3263 + $0x158] sm:$0xff] %v3261
        %3279 = vst [vmem:[%s3263 + $0x170] sm:$0xff] %v3262
        %3280 = vst [vmem:[#allocation2] sm:$0xff] 0
        %3281 = vst [vmem:[#allocation2 + $0x8] sm:$0xff] 0
        %3282 = vst [vmem:[#allocation2 + $0x10] sm:$0xff] 0
        %s3283 = scalar_lea.vmem [#allocation2], 408
        %3284 = vst [vmem:[%s3283] sm:$0xff] 0
        %3285 = vst [vmem:[%s3283 + $0x8] sm:$0xff] 0
        %3286 = vst [vmem:[%s3283 + $0x10] sm:$0xff] 0
        %3287 = vst [vmem:[#allocation2] sm:$0xff] 0
        %3288 = vst [vmem:[#allocation2 + $0x18] sm:$0xff] 0
        %3289 = vst [vmem:[#allocation2 + $0x30] sm:$0xff] 0
        %3290 = vst [vmem:[#allocation2 + $0x48] sm:$0xff] 0
        %3291 = vst [vmem:[#allocation2 + $0x60] sm:$0xff] 0
        %3292 = vst [vmem:[#allocation2 + $0x78] sm:$0xff] 0
        %3293 = vst [vmem:[#allocation2 + $0x90] sm:$0xff] 0
        %3294 = vst [vmem:[#allocation2 + $0xa8] sm:$0xff] 0
        %3295 = vst [vmem:[#allocation2 + $0xc0] sm:$0xff] 0
        %3296 = vst [vmem:[#allocation2 + $0xd8] sm:$0xff] 0
        %3297 = vst [vmem:[#allocation2 + $0xf0] sm:$0xff] 0
        %3298 = vst [vmem:[#allocation2 + $0x108] sm:$0xff] 0
        %3299 = vst [vmem:[#allocation2 + $0x120] sm:$0xff] 0
        %3300 = vst [vmem:[#allocation2 + $0x138] sm:$0xff] 0
        %3301 = vst [vmem:[#allocation2 + $0x150] sm:$0xff] 0
        %3302 = vst [vmem:[#allocation2 + $0x168] sm:$0xff] 0
        %3303 = vst [vmem:[#allocation2 + $0x180] sm:$0xff] 0
        %3304 = vst [vmem:[#allocation2 + $0x198] sm:$0xff] 0
        %3305 = vst [vmem:[#allocation2 + $0x10] sm:$0xff] 0
        %3306 = vst [vmem:[#allocation2 + $0x28] sm:$0xff] 0
        %3307 = vst [vmem:[#allocation2 + $0x40] sm:$0xff] 0
        %3308 = vst [vmem:[#allocation2 + $0x58] sm:$0xff] 0
        %3309 = vst [vmem:[#allocation2 + $0x70] sm:$0xff] 0
        %3310 = vst [vmem:[#allocation2 + $0x88] sm:$0xff] 0
        %3311 = vst [vmem:[#allocation2 + $0xa0] sm:$0xff] 0
        %3312 = vst [vmem:[#allocation2 + $0xb8] sm:$0xff] 0
        %3313 = vst [vmem:[#allocation2 + $0xd0] sm:$0xff] 0
        %3314 = vst [vmem:[#allocation2 + $0xe8] sm:$0xff] 0
        %3315 = vst [vmem:[#allocation2 + $0x100] sm:$0xff] 0
        %3316 = vst [vmem:[#allocation2 + $0x118] sm:$0xff] 0
        %3317 = vst [vmem:[#allocation2 + $0x130] sm:$0xff] 0
        %3318 = vst [vmem:[#allocation2 + $0x148] sm:$0xff] 0
        %3319 = vst [vmem:[#allocation2 + $0x160] sm:$0xff] 0
        %3320 = vst [vmem:[#allocation2 + $0x178] sm:$0xff] 0
        %3321 = vst [vmem:[#allocation2 + $0x190] sm:$0xff] 0
        %3322 = vst [vmem:[#allocation2 + $0x1a8] sm:$0xff] 0
        %v3323 = vld [vmem:[#allocation2] sm:$0x80]
        %v3324 = vld [vmem:[#allocation2 + $0x8] sm:$0xff]
        %v3325 = vld [vmem:[#allocation2 + $0x18] sm:$0x80]
        %v3326 = vld [vmem:[#allocation2 + $0x20] sm:$0xff]
        %v3327 = vld [vmem:[#allocation2 + $0x30] sm:$0x80]
        %v3328 = vld [vmem:[#allocation2 + $0x38] sm:$0xff]
        %v3329 = vld [vmem:[#allocation2 + $0x48] sm:$0x80]
        %v3330 = vld [vmem:[#allocation2 + $0x50] sm:$0xff]
        %v3331 = vld [vmem:[#allocation2 + $0x60] sm:$0x80]
        %v3332 = vld [vmem:[#allocation2 + $0x68] sm:$0xff]
        %v3333 = vld [vmem:[#allocation2 + $0x78] sm:$0x80]
        %v3334 = vld [vmem:[#allocation2 + $0x80] sm:$0xff]
        %v3335 = vld [vmem:[#allocation2 + $0x90] sm:$0x80]
        %v3336 = vld [vmem:[#allocation2 + $0x98] sm:$0xff]
        %v3337 = vld [vmem:[#allocation2 + $0xa8] sm:$0x80]
        %v3338 = vld [vmem:[#allocation2 + $0xb0] sm:$0xff]
        %v3339 = vld [vmem:[#allocation2 + $0xc0] sm:$0x80]
        %v3340 = vld [vmem:[#allocation2 + $0xc8] sm:$0xff]
        %v3341 = vld [vmem:[#allocation2 + $0xd8] sm:$0x80]
        %v3342 = vld [vmem:[#allocation2 + $0xe0] sm:$0xff]
        %v3343 = vld [vmem:[#allocation2 + $0xf0] sm:$0x80]
        %v3344 = vld [vmem:[#allocation2 + $0xf8] sm:$0xff]
        %v3345 = vld [vmem:[#allocation2 + $0x108] sm:$0x80]
        %v3346 = vld [vmem:[#allocation2 + $0x110] sm:$0xff]
        %v3347 = vld [vmem:[#allocation2 + $0x120] sm:$0x80]
        %v3348 = vld [vmem:[#allocation2 + $0x128] sm:$0xff]
        %v3349 = vld [vmem:[#allocation2 + $0x138] sm:$0x80]
        %v3350 = vld [vmem:[#allocation2 + $0x140] sm:$0xff]
        %v3351 = vld [vmem:[#allocation2 + $0x150] sm:$0x80]
        %v3352 = vld [vmem:[#allocation2 + $0x158] sm:$0xff]
        %v3353 = vld [vmem:[#allocation2 + $0x168] sm:$0x80]
        %v3354 = vld [vmem:[#allocation2 + $0x170] sm:$0xff]
        %v3355 = vld [vmem:[#allocation2 + $0x10] sm:$0x1]
        %v3356 = vld [vmem:[#allocation2 + $0x28] sm:$0x1]
        %v3357 = vld [vmem:[#allocation2 + $0x40] sm:$0x1]
        %v3358 = vld [vmem:[#allocation2 + $0x58] sm:$0x1]
        %v3359 = vld [vmem:[#allocation2 + $0x70] sm:$0x1]
        %v3360 = vld [vmem:[#allocation2 + $0x88] sm:$0x1]
        %v3361 = vld [vmem:[#allocation2 + $0xa0] sm:$0x1]
        %v3362 = vld [vmem:[#allocation2 + $0xb8] sm:$0x1]
        %v3363 = vld [vmem:[#allocation2 + $0xd0] sm:$0x1]
        %v3364 = vld [vmem:[#allocation2 + $0xe8] sm:$0x1]
        %v3365 = vld [vmem:[#allocation2 + $0x100] sm:$0x1]
        %v3366 = vld [vmem:[#allocation2 + $0x118] sm:$0x1]
        %v3367 = vld [vmem:[#allocation2 + $0x130] sm:$0x1]
        %v3368 = vld [vmem:[#allocation2 + $0x148] sm:$0x1]
        %v3369 = vld [vmem:[#allocation2 + $0x160] sm:$0x1]
        %v3370 = vld [vmem:[#allocation2 + $0x178] sm:$0x1]
        %v3371 = vld [vmem:[%s3263] sm:$0x80]
        %v3372 = vld [vmem:[%s3263 + $0x8] sm:$0xff]
        %v3373 = vld [vmem:[%s3263 + $0x18] sm:$0x80]
        %v3374 = vld [vmem:[%s3263 + $0x20] sm:$0xff]
        %v3375 = vld [vmem:[%s3263 + $0x30] sm:$0x80]
        %v3376 = vld [vmem:[%s3263 + $0x38] sm:$0xff]
        %v3377 = vld [vmem:[%s3263 + $0x48] sm:$0x80]
        %v3378 = vld [vmem:[%s3263 + $0x50] sm:$0xff]
        %v3379 = vld [vmem:[%s3263 + $0x60] sm:$0x80]
        %v3380 = vld [vmem:[%s3263 + $0x68] sm:$0xff]
        %v3381 = vld [vmem:[%s3263 + $0x78] sm:$0x80]
        %v3382 = vld [vmem:[%s3263 + $0x80] sm:$0xff]
        %v3383 = vld [vmem:[%s3263 + $0x90] sm:$0x80]
        %v3384 = vld [vmem:[%s3263 + $0x98] sm:$0xff]
        %v3385 = vld [vmem:[%s3263 + $0xa8] sm:$0x80]
        %v3386 = vld [vmem:[%s3263 + $0xb0] sm:$0xff]
        %v3387 = vld [vmem:[%s3263 + $0xc0] sm:$0x80]
        %v3388 = vld [vmem:[%s3263 + $0xc8] sm:$0xff]
        %v3389 = vld [vmem:[%s3263 + $0xd8] sm:$0x80]
        %v3390 = vld [vmem:[%s3263 + $0xe0] sm:$0xff]
        %v3391 = vld [vmem:[%s3263 + $0xf0] sm:$0x80]
        %v3392 = vld [vmem:[%s3263 + $0xf8] sm:$0xff]
        %v3393 = vld [vmem:[%s3263 + $0x108] sm:$0x80]
        %v3394 = vld [vmem:[%s3263 + $0x110] sm:$0xff]
        %v3395 = vld [vmem:[%s3263 + $0x120] sm:$0x80]
        %v3396 = vld [vmem:[%s3263 + $0x128] sm:$0xff]
        %v3397 = vld [vmem:[%s3263 + $0x138] sm:$0x80]
        %v3398 = vld [vmem:[%s3263 + $0x140] sm:$0xff]
        %v3399 = vld [vmem:[%s3263 + $0x150] sm:$0x80]
        %v3400 = vld [vmem:[%s3263 + $0x158] sm:$0xff]
        %v3401 = vld [vmem:[%s3263 + $0x168] sm:$0x80]
        %v3402 = vld [vmem:[%s3263 + $0x170] sm:$0xff]
        %v3403 = vld [vmem:[%s3263 + $0x10] sm:$0x1]
        %v3404 = vld [vmem:[%s3263 + $0x28] sm:$0x1]
        %v3405 = vld [vmem:[%s3263 + $0x40] sm:$0x1]
        %v3406 = vld [vmem:[%s3263 + $0x58] sm:$0x1]
        %v3407 = vld [vmem:[%s3263 + $0x70] sm:$0x1]
        %v3408 = vld [vmem:[%s3263 + $0x88] sm:$0x1]
        %v3409 = vld [vmem:[%s3263 + $0xa0] sm:$0x1]
        %v3410 = vld [vmem:[%s3263 + $0xb8] sm:$0x1]
        %v3411 = vld [vmem:[%s3263 + $0xd0] sm:$0x1]
        %v3412 = vld [vmem:[%s3263 + $0xe8] sm:$0x1]
        %v3413 = vld [vmem:[%s3263 + $0x100] sm:$0x1]
        %v3414 = vld [vmem:[%s3263 + $0x118] sm:$0x1]
        %v3415 = vld [vmem:[%s3263 + $0x130] sm:$0x1]
        %v3416 = vld [vmem:[%s3263 + $0x148] sm:$0x1]
        %v3417 = vld [vmem:[%s3263 + $0x160] sm:$0x1]
        %v3418 = vld [vmem:[%s3263 + $0x178] sm:$0x1]
        %s3419 = scalar_lea.vmem [#allocation2], 48
        %v3420 = vld [vmem:[%s3419] sm:$0x80]
        %v3421 = vld [vmem:[%s3419 + $0x8] sm:$0xff]
        %v3422 = vld [vmem:[%s3419 + $0x18] sm:$0x80]
        %v3423 = vld [vmem:[%s3419 + $0x20] sm:$0xff]
        %v3424 = vld [vmem:[%s3419 + $0x30] sm:$0x80]
        %v3425 = vld [vmem:[%s3419 + $0x38] sm:$0xff]
        %v3426 = vld [vmem:[%s3419 + $0x48] sm:$0x80]
        %v3427 = vld [vmem:[%s3419 + $0x50] sm:$0xff]
        %v3428 = vld [vmem:[%s3419 + $0x60] sm:$0x80]
        %v3429 = vld [vmem:[%s3419 + $0x68] sm:$0xff]
        %v3430 = vld [vmem:[%s3419 + $0x78] sm:$0x80]
        %v3431 = vld [vmem:[%s3419 + $0x80] sm:$0xff]
        %v3432 = vld [vmem:[%s3419 + $0x90] sm:$0x80]
        %v3433 = vld [vmem:[%s3419 + $0x98] sm:$0xff]
        %v3434 = vld [vmem:[%s3419 + $0xa8] sm:$0x80]
        %v3435 = vld [vmem:[%s3419 + $0xb0] sm:$0xff]
        %v3436 = vld [vmem:[%s3419 + $0xc0] sm:$0x80]
        %v3437 = vld [vmem:[%s3419 + $0xc8] sm:$0xff]
        %v3438 = vld [vmem:[%s3419 + $0xd8] sm:$0x80]
        %v3439 = vld [vmem:[%s3419 + $0xe0] sm:$0xff]
        %v3440 = vld [vmem:[%s3419 + $0xf0] sm:$0x80]
        %v3441 = vld [vmem:[%s3419 + $0xf8] sm:$0xff]
        %v3442 = vld [vmem:[%s3419 + $0x108] sm:$0x80]
        %v3443 = vld [vmem:[%s3419 + $0x110] sm:$0xff]
        %v3444 = vld [vmem:[%s3419 + $0x120] sm:$0x80]
        %v3445 = vld [vmem:[%s3419 + $0x128] sm:$0xff]
        %v3446 = vld [vmem:[%s3419 + $0x138] sm:$0x80]
        %v3447 = vld [vmem:[%s3419 + $0x140] sm:$0xff]
        %v3448 = vld [vmem:[%s3419 + $0x150] sm:$0x80]
        %v3449 = vld [vmem:[%s3419 + $0x158] sm:$0xff]
        %v3450 = vld [vmem:[%s3419 + $0x168] sm:$0x80]
        %v3451 = vld [vmem:[%s3419 + $0x170] sm:$0xff]
        %v3452 = vld [vmem:[%s3419 + $0x10] sm:$0x1]
        %v3453 = vld [vmem:[%s3419 + $0x28] sm:$0x1]
        %v3454 = vld [vmem:[%s3419 + $0x40] sm:$0x1]
        %v3455 = vld [vmem:[%s3419 + $0x58] sm:$0x1]
        %v3456 = vld [vmem:[%s3419 + $0x70] sm:$0x1]
        %v3457 = vld [vmem:[%s3419 + $0x88] sm:$0x1]
        %v3458 = vld [vmem:[%s3419 + $0xa0] sm:$0x1]
        %v3459 = vld [vmem:[%s3419 + $0xb8] sm:$0x1]
        %v3460 = vld [vmem:[%s3419 + $0xd0] sm:$0x1]
        %v3461 = vld [vmem:[%s3419 + $0xe8] sm:$0x1]
        %v3462 = vld [vmem:[%s3419 + $0x100] sm:$0x1]
        %v3463 = vld [vmem:[%s3419 + $0x118] sm:$0x1]
        %v3464 = vld [vmem:[%s3419 + $0x130] sm:$0x1]
        %v3465 = vld [vmem:[%s3419 + $0x148] sm:$0x1]
        %v3466 = vld [vmem:[%s3419 + $0x160] sm:$0x1]
        %v3467 = vld [vmem:[%s3419 + $0x178] sm:$0x1]
        %v3469 = vshll.u32 %v3324, 16
        %v3471 = vrot.slane %v3469, 1
        %v3472 = vshrl.u32 %v3324, 16
        %v3474 = vor.u32 %v3472, %v3471
        %v3476 = vshll.u32 %v3326, 16
        %v3478 = vrot.slane %v3476, 1
        %v3479 = vshrl.u32 %v3326, 16
        %v3481 = vor.u32 %v3479, %v3478
        %v3483 = vshll.u32 %v3328, 16
        %v3485 = vrot.slane %v3483, 1
        %v3486 = vshrl.u32 %v3328, 16
        %v3488 = vor.u32 %v3486, %v3485
        %v3490 = vshll.u32 %v3330, 16
        %v3492 = vrot.slane %v3490, 1
        %v3493 = vshrl.u32 %v3330, 16
        %v3495 = vor.u32 %v3493, %v3492
        %v3497 = vshll.u32 %v3332, 16
        %v3499 = vrot.slane %v3497, 1
        %v3500 = vshrl.u32 %v3332, 16
        %v3502 = vor.u32 %v3500, %v3499
        %v3504 = vshll.u32 %v3334, 16
        %v3506 = vrot.slane %v3504, 1
        %v3507 = vshrl.u32 %v3334, 16
        %v3509 = vor.u32 %v3507, %v3506
        %v3511 = vshll.u32 %v3336, 16
        %v3513 = vrot.slane %v3511, 1
        %v3514 = vshrl.u32 %v3336, 16
        %v3516 = vor.u32 %v3514, %v3513
        %v3518 = vshll.u32 %v3338, 16
        %v3520 = vrot.slane %v3518, 1
        %v3521 = vshrl.u32 %v3338, 16
        %v3523 = vor.u32 %v3521, %v3520
        %v3525 = vshll.u32 %v3340, 16
        %v3527 = vrot.slane %v3525, 1
        %v3528 = vshrl.u32 %v3340, 16
        %v3530 = vor.u32 %v3528, %v3527
        %v3532 = vshll.u32 %v3342, 16
        %v3534 = vrot.slane %v3532, 1
        %v3535 = vshrl.u32 %v3342, 16
        %v3537 = vor.u32 %v3535, %v3534
        %v3539 = vshll.u32 %v3344, 16
        %v3541 = vrot.slane %v3539, 1
        %v3542 = vshrl.u32 %v3344, 16
        %v3544 = vor.u32 %v3542, %v3541
        %v3546 = vshll.u32 %v3346, 16
        %v3548 = vrot.slane %v3546, 1
        %v3549 = vshrl.u32 %v3346, 16
        %v3551 = vor.u32 %v3549, %v3548
        %v3553 = vshll.u32 %v3348, 16
        %v3555 = vrot.slane %v3553, 1
        %v3556 = vshrl.u32 %v3348, 16
        %v3558 = vor.u32 %v3556, %v3555
        %v3560 = vshll.u32 %v3350, 16
        %v3562 = vrot.slane %v3560, 1
        %v3563 = vshrl.u32 %v3350, 16
        %v3565 = vor.u32 %v3563, %v3562
        %v3567 = vshll.u32 %v3352, 16
        %v3569 = vrot.slane %v3567, 1
        %v3570 = vshrl.u32 %v3352, 16
        %v3572 = vor.u32 %v3570, %v3569
        %v3574 = vshll.u32 %v3354, 16
        %v3576 = vrot.slane %v3574, 1
        %v3577 = vshrl.u32 %v3354, 16
        %v3579 = vor.u32 %v3577, %v3576
        %v3612 = vrot.slane %v3324, 1
        %v3613 = vrot.slane %v3355, 1
        %v3614 = vsel %vm834, %v3612, %v3613
        %v3615 = vrot.slane %v3326, 1
        %v3616 = vrot.slane %v3356, 1
        %v3617 = vsel %vm834, %v3615, %v3616
        %v3618 = vrot.slane %v3328, 1
        %v3619 = vrot.slane %v3357, 1
        %v3620 = vsel %vm834, %v3618, %v3619
        %v3621 = vrot.slane %v3330, 1
        %v3622 = vrot.slane %v3358, 1
        %v3623 = vsel %vm834, %v3621, %v3622
        %v3624 = vrot.slane %v3332, 1
        %v3625 = vrot.slane %v3359, 1
        %v3626 = vsel %vm834, %v3624, %v3625
        %v3627 = vrot.slane %v3334, 1
        %v3628 = vrot.slane %v3360, 1
        %v3629 = vsel %vm834, %v3627, %v3628
        %v3630 = vrot.slane %v3336, 1
        %v3631 = vrot.slane %v3361, 1
        %v3632 = vsel %vm834, %v3630, %v3631
        %v3633 = vrot.slane %v3338, 1
        %v3634 = vrot.slane %v3362, 1
        %v3635 = vsel %vm834, %v3633, %v3634
        %v3636 = vrot.slane %v3340, 1
        %v3637 = vrot.slane %v3363, 1
        %v3638 = vsel %vm834, %v3636, %v3637
        %v3639 = vrot.slane %v3342, 1
        %v3640 = vrot.slane %v3364, 1
        %v3641 = vsel %vm834, %v3639, %v3640
        %v3642 = vrot.slane %v3344, 1
        %v3643 = vrot.slane %v3365, 1
        %v3644 = vsel %vm834, %v3642, %v3643
        %v3645 = vrot.slane %v3346, 1
        %v3646 = vrot.slane %v3366, 1
        %v3647 = vsel %vm834, %v3645, %v3646
        %v3648 = vrot.slane %v3348, 1
        %v3649 = vrot.slane %v3367, 1
        %v3650 = vsel %vm834, %v3648, %v3649
        %v3651 = vrot.slane %v3350, 1
        %v3652 = vrot.slane %v3368, 1
        %v3653 = vsel %vm834, %v3651, %v3652
        %v3654 = vrot.slane %v3352, 1
        %v3655 = vrot.slane %v3369, 1
        %v3656 = vsel %vm834, %v3654, %v3655
        %v3657 = vrot.slane %v3354, 1
        %v3658 = vrot.slane %v3370, 1
        %v3659 = vsel %vm834, %v3657, %v3658
        %v3661 = vshll.u32 %v3372, 16
        %v3663 = vrot.slane %v3661, 1
        %v3664 = vshrl.u32 %v3372, 16
        %v3666 = vor.u32 %v3664, %v3663
        %v3668 = vshll.u32 %v3374, 16
        %v3670 = vrot.slane %v3668, 1
        %v3671 = vshrl.u32 %v3374, 16
        %v3673 = vor.u32 %v3671, %v3670
        %v3675 = vshll.u32 %v3376, 16
        %v3677 = vrot.slane %v3675, 1
        %v3678 = vshrl.u32 %v3376, 16
        %v3680 = vor.u32 %v3678, %v3677
        %v3682 = vshll.u32 %v3378, 16
        %v3684 = vrot.slane %v3682, 1
        %v3685 = vshrl.u32 %v3378, 16
        %v3687 = vor.u32 %v3685, %v3684
        %v3689 = vshll.u32 %v3380, 16
        %v3691 = vrot.slane %v3689, 1
        %v3692 = vshrl.u32 %v3380, 16
        %v3694 = vor.u32 %v3692, %v3691
        %v3696 = vshll.u32 %v3382, 16
        %v3698 = vrot.slane %v3696, 1
        %v3699 = vshrl.u32 %v3382, 16
        %v3701 = vor.u32 %v3699, %v3698
        %v3703 = vshll.u32 %v3384, 16
        %v3705 = vrot.slane %v3703, 1
        %v3706 = vshrl.u32 %v3384, 16
        %v3708 = vor.u32 %v3706, %v3705
        %v3710 = vshll.u32 %v3386, 16
        %v3712 = vrot.slane %v3710, 1
        %v3713 = vshrl.u32 %v3386, 16
        %v3715 = vor.u32 %v3713, %v3712
        %v3717 = vshll.u32 %v3388, 16
        %v3719 = vrot.slane %v3717, 1
        %v3720 = vshrl.u32 %v3388, 16
        %v3722 = vor.u32 %v3720, %v3719
        %v3724 = vshll.u32 %v3390, 16
        %v3726 = vrot.slane %v3724, 1
        %v3727 = vshrl.u32 %v3390, 16
        %v3729 = vor.u32 %v3727, %v3726
        %v3731 = vshll.u32 %v3392, 16
        %v3733 = vrot.slane %v3731, 1
        %v3734 = vshrl.u32 %v3392, 16
        %v3736 = vor.u32 %v3734, %v3733
        %v3738 = vshll.u32 %v3394, 16
        %v3740 = vrot.slane %v3738, 1
        %v3741 = vshrl.u32 %v3394, 16
        %v3743 = vor.u32 %v3741, %v3740
        %v3745 = vshll.u32 %v3396, 16
        %v3747 = vrot.slane %v3745, 1
        %v3748 = vshrl.u32 %v3396, 16
        %v3750 = vor.u32 %v3748, %v3747
        %v3752 = vshll.u32 %v3398, 16
        %v3754 = vrot.slane %v3752, 1
        %v3755 = vshrl.u32 %v3398, 16
        %v3757 = vor.u32 %v3755, %v3754
        %v3759 = vshll.u32 %v3400, 16
        %v3761 = vrot.slane %v3759, 1
        %v3762 = vshrl.u32 %v3400, 16
        %v3764 = vor.u32 %v3762, %v3761
        %v3766 = vshll.u32 %v3402, 16
        %v3768 = vrot.slane %v3766, 1
        %v3769 = vshrl.u32 %v3402, 16
        %v3771 = vor.u32 %v3769, %v3768
        %v3804 = vrot.slane %v3372, 1
        %v3805 = vrot.slane %v3403, 1
        %v3806 = vsel %vm834, %v3804, %v3805
        %v3807 = vrot.slane %v3374, 1
        %v3808 = vrot.slane %v3404, 1
        %v3809 = vsel %vm834, %v3807, %v3808
        %v3810 = vrot.slane %v3376, 1
        %v3811 = vrot.slane %v3405, 1
        %v3812 = vsel %vm834, %v3810, %v3811
        %v3813 = vrot.slane %v3378, 1
        %v3814 = vrot.slane %v3406, 1
        %v3815 = vsel %vm834, %v3813, %v3814
        %v3816 = vrot.slane %v3380, 1
        %v3817 = vrot.slane %v3407, 1
        %v3818 = vsel %vm834, %v3816, %v3817
        %v3819 = vrot.slane %v3382, 1
        %v3820 = vrot.slane %v3408, 1
        %v3821 = vsel %vm834, %v3819, %v3820
        %v3822 = vrot.slane %v3384, 1
        %v3823 = vrot.slane %v3409, 1
        %v3824 = vsel %vm834, %v3822, %v3823
        %v3825 = vrot.slane %v3386, 1
        %v3826 = vrot.slane %v3410, 1
        %v3827 = vsel %vm834, %v3825, %v3826
        %v3828 = vrot.slane %v3388, 1
        %v3829 = vrot.slane %v3411, 1
        %v3830 = vsel %vm834, %v3828, %v3829
        %v3831 = vrot.slane %v3390, 1
        %v3832 = vrot.slane %v3412, 1
        %v3833 = vsel %vm834, %v3831, %v3832
        %v3834 = vrot.slane %v3392, 1
        %v3835 = vrot.slane %v3413, 1
        %v3836 = vsel %vm834, %v3834, %v3835
        %v3837 = vrot.slane %v3394, 1
        %v3838 = vrot.slane %v3414, 1
        %v3839 = vsel %vm834, %v3837, %v3838
        %v3840 = vrot.slane %v3396, 1
        %v3841 = vrot.slane %v3415, 1
        %v3842 = vsel %vm834, %v3840, %v3841
        %v3843 = vrot.slane %v3398, 1
        %v3844 = vrot.slane %v3416, 1
        %v3845 = vsel %vm834, %v3843, %v3844
        %v3846 = vrot.slane %v3400, 1
        %v3847 = vrot.slane %v3417, 1
        %v3848 = vsel %vm834, %v3846, %v3847
        %v3849 = vrot.slane %v3402, 1
        %v3850 = vrot.slane %v3418, 1
        %v3851 = vsel %vm834, %v3849, %v3850
        %v3853 = vshll.u32 %v3421, 16
        %v3855 = vrot.slane %v3853, 1
        %v3856 = vshrl.u32 %v3421, 16
        %v3858 = vor.u32 %v3856, %v3855
        %v3860 = vshll.u32 %v3423, 16
        %v3862 = vrot.slane %v3860, 1
        %v3863 = vshrl.u32 %v3423, 16
        %v3865 = vor.u32 %v3863, %v3862
        %v3867 = vshll.u32 %v3425, 16
        %v3869 = vrot.slane %v3867, 1
        %v3870 = vshrl.u32 %v3425, 16
        %v3872 = vor.u32 %v3870, %v3869
        %v3874 = vshll.u32 %v3427, 16
        %v3876 = vrot.slane %v3874, 1
        %v3877 = vshrl.u32 %v3427, 16
        %v3879 = vor.u32 %v3877, %v3876
        %v3881 = vshll.u32 %v3429, 16
        %v3883 = vrot.slane %v3881, 1
        %v3884 = vshrl.u32 %v3429, 16
        %v3886 = vor.u32 %v3884, %v3883
        %v3888 = vshll.u32 %v3431, 16
        %v3890 = vrot.slane %v3888, 1
        %v3891 = vshrl.u32 %v3431, 16
        %v3893 = vor.u32 %v3891, %v3890
        %v3895 = vshll.u32 %v3433, 16
        %v3897 = vrot.slane %v3895, 1
        %v3898 = vshrl.u32 %v3433, 16
        %v3900 = vor.u32 %v3898, %v3897
        %v3902 = vshll.u32 %v3435, 16
        %v3904 = vrot.slane %v3902, 1
        %v3905 = vshrl.u32 %v3435, 16
        %v3907 = vor.u32 %v3905, %v3904
        %v3909 = vshll.u32 %v3437, 16
        %v3911 = vrot.slane %v3909, 1
        %v3912 = vshrl.u32 %v3437, 16
        %v3914 = vor.u32 %v3912, %v3911
        %v3916 = vshll.u32 %v3439, 16
        %v3918 = vrot.slane %v3916, 1
        %v3919 = vshrl.u32 %v3439, 16
        %v3921 = vor.u32 %v3919, %v3918
        %v3923 = vshll.u32 %v3441, 16
        %v3925 = vrot.slane %v3923, 1
        %v3926 = vshrl.u32 %v3441, 16
        %v3928 = vor.u32 %v3926, %v3925
        %v3930 = vshll.u32 %v3443, 16
        %v3932 = vrot.slane %v3930, 1
        %v3933 = vshrl.u32 %v3443, 16
        %v3935 = vor.u32 %v3933, %v3932
        %v3937 = vshll.u32 %v3445, 16
        %v3939 = vrot.slane %v3937, 1
        %v3940 = vshrl.u32 %v3445, 16
        %v3942 = vor.u32 %v3940, %v3939
        %v3944 = vshll.u32 %v3447, 16
        %v3946 = vrot.slane %v3944, 1
        %v3947 = vshrl.u32 %v3447, 16
        %v3949 = vor.u32 %v3947, %v3946
        %v3951 = vshll.u32 %v3449, 16
        %v3953 = vrot.slane %v3951, 1
        %v3954 = vshrl.u32 %v3449, 16
        %v3956 = vor.u32 %v3954, %v3953
        %v3958 = vshll.u32 %v3451, 16
        %v3960 = vrot.slane %v3958, 1
        %v3961 = vshrl.u32 %v3451, 16
        %v3963 = vor.u32 %v3961, %v3960
        %v3996 = vrot.slane %v3421, 1
        %v3997 = vrot.slane %v3452, 1
        %v3998 = vsel %vm834, %v3996, %v3997
        %v3999 = vrot.slane %v3423, 1
        %v4000 = vrot.slane %v3453, 1
        %v4001 = vsel %vm834, %v3999, %v4000
        %v4002 = vrot.slane %v3425, 1
        %v4003 = vrot.slane %v3454, 1
        %v4004 = vsel %vm834, %v4002, %v4003
        %v4005 = vrot.slane %v3427, 1
        %v4006 = vrot.slane %v3455, 1
        %v4007 = vsel %vm834, %v4005, %v4006
        %v4008 = vrot.slane %v3429, 1
        %v4009 = vrot.slane %v3456, 1
        %v4010 = vsel %vm834, %v4008, %v4009
        %v4011 = vrot.slane %v3431, 1
        %v4012 = vrot.slane %v3457, 1
        %v4013 = vsel %vm834, %v4011, %v4012
        %v4014 = vrot.slane %v3433, 1
        %v4015 = vrot.slane %v3458, 1
        %v4016 = vsel %vm834, %v4014, %v4015
        %v4017 = vrot.slane %v3435, 1
        %v4018 = vrot.slane %v3459, 1
        %v4019 = vsel %vm834, %v4017, %v4018
        %v4020 = vrot.slane %v3437, 1
        %v4021 = vrot.slane %v3460, 1
        %v4022 = vsel %vm834, %v4020, %v4021
        %v4023 = vrot.slane %v3439, 1
        %v4024 = vrot.slane %v3461, 1
        %v4025 = vsel %vm834, %v4023, %v4024
        %v4026 = vrot.slane %v3441, 1
        %v4027 = vrot.slane %v3462, 1
        %v4028 = vsel %vm834, %v4026, %v4027
        %v4029 = vrot.slane %v3443, 1
        %v4030 = vrot.slane %v3463, 1
        %v4031 = vsel %vm834, %v4029, %v4030
        %v4032 = vrot.slane %v3445, 1
        %v4033 = vrot.slane %v3464, 1
        %v4034 = vsel %vm834, %v4032, %v4033
        %v4035 = vrot.slane %v3447, 1
        %v4036 = vrot.slane %v3465, 1
        %v4037 = vsel %vm834, %v4035, %v4036
        %v4038 = vrot.slane %v3449, 1
        %v4039 = vrot.slane %v3466, 1
        %v4040 = vsel %vm834, %v4038, %v4039
        %v4041 = vrot.slane %v3451, 1
        %v4042 = vrot.slane %v3467, 1
        %v4043 = vsel %vm834, %v4041, %v4042
        %vm4044 = vsmask.f32 256
        %v4046 = vshrl.u32 %v3323, 16
        %v4048 = vrot.slane %v4046, 7
        %v4049 = vrot.slane %v3472, 7
        %v4050 = vor.u32 %v4049, %v3469
        %v4051 = vsel %vm4044, %v4048, %v4050
        %v4053 = vshrl.u32 %v3471, 16
        %v4055 = vrot.slane %v4053, 7
        %v4057 = vshrl.u32 %v3474, 16
        %v4059 = vrot.slane %v4057, 7
        %v4060 = vshll.u32 %v3474, 16
        %v4062 = vor.u32 %v4059, %v4060
        %v4063 = vsel %vm4044, %v4055, %v4062
        %v4065 = vshrl.u32 %v3612, 16
        %v4067 = vrot.slane %v4065, 7
        %v4069 = vshrl.u32 %v3614, 16
        %v4071 = vrot.slane %v4069, 7
        %v4072 = vshll.u32 %v3614, 16
        %v4074 = vor.u32 %v4071, %v4072
        %v4075 = vsel %vm4044, %v4067, %v4074
        %v4077 = vshrl.u32 %v3371, 16
        %v4079 = vrot.slane %v4077, 7
        %v4080 = vrot.slane %v3664, 7
        %v4081 = vor.u32 %v4080, %v3661
        %v4082 = vsel %vm4044, %v4079, %v4081
        %v4084 = vshrl.u32 %v3663, 16
        %v4086 = vrot.slane %v4084, 7
        %v4088 = vshrl.u32 %v3666, 16
        %v4090 = vrot.slane %v4088, 7
        %v4091 = vshll.u32 %v3666, 16
        %v4093 = vor.u32 %v4090, %v4091
        %v4094 = vsel %vm4044, %v4086, %v4093
        %v4096 = vshrl.u32 %v3804, 16
        %v4098 = vrot.slane %v4096, 7
        %v4100 = vshrl.u32 %v3806, 16
        %v4102 = vrot.slane %v4100, 7
        %v4103 = vshll.u32 %v3806, 16
        %v4105 = vor.u32 %v4102, %v4103
        %v4106 = vsel %vm4044, %v4098, %v4105
        %v4108 = vshrl.u32 %v3420, 16
        %v4110 = vrot.slane %v4108, 7
        %v4111 = vrot.slane %v3856, 7
        %v4112 = vor.u32 %v4111, %v3853
        %v4113 = vsel %vm4044, %v4110, %v4112
        %v4115 = vshrl.u32 %v3855, 16
        %v4117 = vrot.slane %v4115, 7
        %v4119 = vshrl.u32 %v3858, 16
        %v4121 = vrot.slane %v4119, 7
        %v4122 = vshll.u32 %v3858, 16
        %v4124 = vor.u32 %v4121, %v4122
        %v4125 = vsel %vm4044, %v4117, %v4124
        %v4127 = vshrl.u32 %v3996, 16
        %v4129 = vrot.slane %v4127, 7
        %v4131 = vshrl.u32 %v3998, 16
        %v4133 = vrot.slane %v4131, 7
        %v4134 = vshll.u32 %v3998, 16
        %v4136 = vor.u32 %v4133, %v4134
        %v4137 = vsel %vm4044, %v4129, %v4136
        %v4139 = vshrl.u32 %v3325, 16
        %v4141 = vrot.slane %v4139, 7
        %v4142 = vrot.slane %v3479, 7
        %v4143 = vor.u32 %v4142, %v3476
        %v4144 = vsel %vm4044, %v4141, %v4143
        %v4146 = vshrl.u32 %v3478, 16
        %v4148 = vrot.slane %v4146, 7
        %v4150 = vshrl.u32 %v3481, 16
        %v4152 = vrot.slane %v4150, 7
        %v4153 = vshll.u32 %v3481, 16
        %v4155 = vor.u32 %v4152, %v4153
        %v4156 = vsel %vm4044, %v4148, %v4155
        %v4158 = vshrl.u32 %v3615, 16
        %v4160 = vrot.slane %v4158, 7
        %v4162 = vshrl.u32 %v3617, 16
        %v4164 = vrot.slane %v4162, 7
        %v4165 = vshll.u32 %v3617, 16
        %v4167 = vor.u32 %v4164, %v4165
        %v4168 = vsel %vm4044, %v4160, %v4167
        %v4170 = vshrl.u32 %v3373, 16
        %v4172 = vrot.slane %v4170, 7
        %v4173 = vrot.slane %v3671, 7
        %v4174 = vor.u32 %v4173, %v3668
        %v4175 = vsel %vm4044, %v4172, %v4174
        %v4177 = vshrl.u32 %v3670, 16
        %v4179 = vrot.slane %v4177, 7
        %v4181 = vshrl.u32 %v3673, 16
        %v4183 = vrot.slane %v4181, 7
        %v4184 = vshll.u32 %v3673, 16
        %v4186 = vor.u32 %v4183, %v4184
        %v4187 = vsel %vm4044, %v4179, %v4186
        %v4189 = vshrl.u32 %v3807, 16
        %v4191 = vrot.slane %v4189, 7
        %v4193 = vshrl.u32 %v3809, 16
        %v4195 = vrot.slane %v4193, 7
        %v4196 = vshll.u32 %v3809, 16
        %v4198 = vor.u32 %v4195, %v4196
        %v4199 = vsel %vm4044, %v4191, %v4198
        %v4201 = vshrl.u32 %v3422, 16
        %v4203 = vrot.slane %v4201, 7
        %v4204 = vrot.slane %v3863, 7
        %v4205 = vor.u32 %v4204, %v3860
        %v4206 = vsel %vm4044, %v4203, %v4205
        %v4208 = vshrl.u32 %v3862, 16
        %v4210 = vrot.slane %v4208, 7
        %v4212 = vshrl.u32 %v3865, 16
        %v4214 = vrot.slane %v4212, 7
        %v4215 = vshll.u32 %v3865, 16
        %v4217 = vor.u32 %v4214, %v4215
        %v4218 = vsel %vm4044, %v4210, %v4217
        %v4220 = vshrl.u32 %v3999, 16
        %v4222 = vrot.slane %v4220, 7
        %v4224 = vshrl.u32 %v4001, 16
        %v4226 = vrot.slane %v4224, 7
        %v4227 = vshll.u32 %v4001, 16
        %v4229 = vor.u32 %v4226, %v4227
        %v4230 = vsel %vm4044, %v4222, %v4229
        %v4232 = vshrl.u32 %v3327, 16
        %v4234 = vrot.slane %v4232, 7
        %v4235 = vrot.slane %v3486, 7
        %v4236 = vor.u32 %v4235, %v3483
        %v4237 = vsel %vm4044, %v4234, %v4236
        %v4239 = vshrl.u32 %v3485, 16
        %v4241 = vrot.slane %v4239, 7
        %v4243 = vshrl.u32 %v3488, 16
        %v4245 = vrot.slane %v4243, 7
        %v4246 = vshll.u32 %v3488, 16
        %v4248 = vor.u32 %v4245, %v4246
        %v4249 = vsel %vm4044, %v4241, %v4248
        %v4251 = vshrl.u32 %v3618, 16
        %v4253 = vrot.slane %v4251, 7
        %v4255 = vshrl.u32 %v3620, 16
        %v4257 = vrot.slane %v4255, 7
        %v4258 = vshll.u32 %v3620, 16
        %v4260 = vor.u32 %v4257, %v4258
        %v4261 = vsel %vm4044, %v4253, %v4260
        %v4263 = vshrl.u32 %v3375, 16
        %v4265 = vrot.slane %v4263, 7
        %v4266 = vrot.slane %v3678, 7
        %v4267 = vor.u32 %v4266, %v3675
        %v4268 = vsel %vm4044, %v4265, %v4267
        %v4270 = vshrl.u32 %v3677, 16
        %v4272 = vrot.slane %v4270, 7
        %v4274 = vshrl.u32 %v3680, 16
        %v4276 = vrot.slane %v4274, 7
        %v4277 = vshll.u32 %v3680, 16
        %v4279 = vor.u32 %v4276, %v4277
        %v4280 = vsel %vm4044, %v4272, %v4279
        %v4282 = vshrl.u32 %v3810, 16
        %v4284 = vrot.slane %v4282, 7
        %v4286 = vshrl.u32 %v3812, 16
        %v4288 = vrot.slane %v4286, 7
        %v4289 = vshll.u32 %v3812, 16
        %v4291 = vor.u32 %v4288, %v4289
        %v4292 = vsel %vm4044, %v4284, %v4291
        %v4294 = vshrl.u32 %v3424, 16
        %v4296 = vrot.slane %v4294, 7
        %v4297 = vrot.slane %v3870, 7
        %v4298 = vor.u32 %v4297, %v3867
        %v4299 = vsel %vm4044, %v4296, %v4298
        %v4301 = vshrl.u32 %v3869, 16
        %v4303 = vrot.slane %v4301, 7
        %v4305 = vshrl.u32 %v3872, 16
        %v4307 = vrot.slane %v4305, 7
        %v4308 = vshll.u32 %v3872, 16
        %v4310 = vor.u32 %v4307, %v4308
        %v4311 = vsel %vm4044, %v4303, %v4310
        %v4313 = vshrl.u32 %v4002, 16
        %v4315 = vrot.slane %v4313, 7
        %v4317 = vshrl.u32 %v4004, 16
        %v4319 = vrot.slane %v4317, 7
        %v4320 = vshll.u32 %v4004, 16
        %v4322 = vor.u32 %v4319, %v4320
        %v4323 = vsel %vm4044, %v4315, %v4322
        %v4325 = vshrl.u32 %v3329, 16
        %v4327 = vrot.slane %v4325, 7
        %v4328 = vrot.slane %v3493, 7
        %v4329 = vor.u32 %v4328, %v3490
        %v4330 = vsel %vm4044, %v4327, %v4329
        %v4332 = vshrl.u32 %v3492, 16
        %v4334 = vrot.slane %v4332, 7
        %v4336 = vshrl.u32 %v3495, 16
        %v4338 = vrot.slane %v4336, 7
        %v4339 = vshll.u32 %v3495, 16
        %v4341 = vor.u32 %v4338, %v4339
        %v4342 = vsel %vm4044, %v4334, %v4341
        %v4344 = vshrl.u32 %v3621, 16
        %v4346 = vrot.slane %v4344, 7
        %v4348 = vshrl.u32 %v3623, 16
        %v4350 = vrot.slane %v4348, 7
        %v4351 = vshll.u32 %v3623, 16
        %v4353 = vor.u32 %v4350, %v4351
        %v4354 = vsel %vm4044, %v4346, %v4353
        %v4356 = vshrl.u32 %v3377, 16
        %v4358 = vrot.slane %v4356, 7
        %v4359 = vrot.slane %v3685, 7
        %v4360 = vor.u32 %v4359, %v3682
        %v4361 = vsel %vm4044, %v4358, %v4360
        %v4363 = vshrl.u32 %v3684, 16
        %v4365 = vrot.slane %v4363, 7
        %v4367 = vshrl.u32 %v3687, 16
        %v4369 = vrot.slane %v4367, 7
        %v4370 = vshll.u32 %v3687, 16
        %v4372 = vor.u32 %v4369, %v4370
        %v4373 = vsel %vm4044, %v4365, %v4372
        %v4375 = vshrl.u32 %v3813, 16
        %v4377 = vrot.slane %v4375, 7
        %v4379 = vshrl.u32 %v3815, 16
        %v4381 = vrot.slane %v4379, 7
        %v4382 = vshll.u32 %v3815, 16
        %v4384 = vor.u32 %v4381, %v4382
        %v4385 = vsel %vm4044, %v4377, %v4384
        %v4387 = vshrl.u32 %v3426, 16
        %v4389 = vrot.slane %v4387, 7
        %v4390 = vrot.slane %v3877, 7
        %v4391 = vor.u32 %v4390, %v3874
        %v4392 = vsel %vm4044, %v4389, %v4391
        %v4394 = vshrl.u32 %v3876, 16
        %v4396 = vrot.slane %v4394, 7
        %v4398 = vshrl.u32 %v3879, 16
        %v4400 = vrot.slane %v4398, 7
        %v4401 = vshll.u32 %v3879, 16
        %v4403 = vor.u32 %v4400, %v4401
        %v4404 = vsel %vm4044, %v4396, %v4403
        %v4406 = vshrl.u32 %v4005, 16
        %v4408 = vrot.slane %v4406, 7
        %v4410 = vshrl.u32 %v4007, 16
        %v4412 = vrot.slane %v4410, 7
        %v4413 = vshll.u32 %v4007, 16
        %v4415 = vor.u32 %v4412, %v4413
        %v4416 = vsel %vm4044, %v4408, %v4415
        %v4418 = vshrl.u32 %v3331, 16
        %v4420 = vrot.slane %v4418, 7
        %v4421 = vrot.slane %v3500, 7
        %v4422 = vor.u32 %v4421, %v3497
        %v4423 = vsel %vm4044, %v4420, %v4422
        %v4425 = vshrl.u32 %v3499, 16
        %v4427 = vrot.slane %v4425, 7
        %v4429 = vshrl.u32 %v3502, 16
        %v4431 = vrot.slane %v4429, 7
        %v4432 = vshll.u32 %v3502, 16
        %v4434 = vor.u32 %v4431, %v4432
        %v4435 = vsel %vm4044, %v4427, %v4434
        %v4437 = vshrl.u32 %v3624, 16
        %v4439 = vrot.slane %v4437, 7
        %v4441 = vshrl.u32 %v3626, 16
        %v4443 = vrot.slane %v4441, 7
        %v4444 = vshll.u32 %v3626, 16
        %v4446 = vor.u32 %v4443, %v4444
        %v4447 = vsel %vm4044, %v4439, %v4446
        %v4449 = vshrl.u32 %v3379, 16
        %v4451 = vrot.slane %v4449, 7
        %v4452 = vrot.slane %v3692, 7
        %v4453 = vor.u32 %v4452, %v3689
        %v4454 = vsel %vm4044, %v4451, %v4453
        %v4456 = vshrl.u32 %v3691, 16
        %v4458 = vrot.slane %v4456, 7
        %v4460 = vshrl.u32 %v3694, 16
        %v4462 = vrot.slane %v4460, 7
        %v4463 = vshll.u32 %v3694, 16
        %v4465 = vor.u32 %v4462, %v4463
        %v4466 = vsel %vm4044, %v4458, %v4465
        %v4468 = vshrl.u32 %v3816, 16
        %v4470 = vrot.slane %v4468, 7
        %v4472 = vshrl.u32 %v3818, 16
        %v4474 = vrot.slane %v4472, 7
        %v4475 = vshll.u32 %v3818, 16
        %v4477 = vor.u32 %v4474, %v4475
        %v4478 = vsel %vm4044, %v4470, %v4477
        %v4480 = vshrl.u32 %v3428, 16
        %v4482 = vrot.slane %v4480, 7
        %v4483 = vrot.slane %v3884, 7
        %v4484 = vor.u32 %v4483, %v3881
        %v4485 = vsel %vm4044, %v4482, %v4484
        %v4487 = vshrl.u32 %v3883, 16
        %v4489 = vrot.slane %v4487, 7
        %v4491 = vshrl.u32 %v3886, 16
        %v4493 = vrot.slane %v4491, 7
        %v4494 = vshll.u32 %v3886, 16
        %v4496 = vor.u32 %v4493, %v4494
        %v4497 = vsel %vm4044, %v4489, %v4496
        %v4499 = vshrl.u32 %v4008, 16
        %v4501 = vrot.slane %v4499, 7
        %v4503 = vshrl.u32 %v4010, 16
        %v4505 = vrot.slane %v4503, 7
        %v4506 = vshll.u32 %v4010, 16
        %v4508 = vor.u32 %v4505, %v4506
        %v4509 = vsel %vm4044, %v4501, %v4508
        %v4511 = vshrl.u32 %v3333, 16
        %v4513 = vrot.slane %v4511, 7
        %v4514 = vrot.slane %v3507, 7
        %v4515 = vor.u32 %v4514, %v3504
        %v4516 = vsel %vm4044, %v4513, %v4515
        %v4518 = vshrl.u32 %v3506, 16
        %v4520 = vrot.slane %v4518, 7
        %v4522 = vshrl.u32 %v3509, 16
        %v4524 = vrot.slane %v4522, 7
        %v4525 = vshll.u32 %v3509, 16
        %v4527 = vor.u32 %v4524, %v4525
        %v4528 = vsel %vm4044, %v4520, %v4527
        %v4530 = vshrl.u32 %v3627, 16
        %v4532 = vrot.slane %v4530, 7
        %v4534 = vshrl.u32 %v3629, 16
        %v4536 = vrot.slane %v4534, 7
        %v4537 = vshll.u32 %v3629, 16
        %v4539 = vor.u32 %v4536, %v4537
        %v4540 = vsel %vm4044, %v4532, %v4539
        %v4542 = vshrl.u32 %v3381, 16
        %v4544 = vrot.slane %v4542, 7
        %v4545 = vrot.slane %v3699, 7
        %v4546 = vor.u32 %v4545, %v3696
        %v4547 = vsel %vm4044, %v4544, %v4546
        %v4549 = vshrl.u32 %v3698, 16
        %v4551 = vrot.slane %v4549, 7
        %v4553 = vshrl.u32 %v3701, 16
        %v4555 = vrot.slane %v4553, 7
        %v4556 = vshll.u32 %v3701, 16
        %v4558 = vor.u32 %v4555, %v4556
        %v4559 = vsel %vm4044, %v4551, %v4558
        %v4561 = vshrl.u32 %v3819, 16
        %v4563 = vrot.slane %v4561, 7
        %v4565 = vshrl.u32 %v3821, 16
        %v4567 = vrot.slane %v4565, 7
        %v4568 = vshll.u32 %v3821, 16
        %v4570 = vor.u32 %v4567, %v4568
        %v4571 = vsel %vm4044, %v4563, %v4570
        %v4573 = vshrl.u32 %v3430, 16
        %v4575 = vrot.slane %v4573, 7
        %v4576 = vrot.slane %v3891, 7
        %v4577 = vor.u32 %v4576, %v3888
        %v4578 = vsel %vm4044, %v4575, %v4577
        %v4580 = vshrl.u32 %v3890, 16
        %v4582 = vrot.slane %v4580, 7
        %v4584 = vshrl.u32 %v3893, 16
        %v4586 = vrot.slane %v4584, 7
        %v4587 = vshll.u32 %v3893, 16
        %v4589 = vor.u32 %v4586, %v4587
        %v4590 = vsel %vm4044, %v4582, %v4589
        %v4592 = vshrl.u32 %v4011, 16
        %v4594 = vrot.slane %v4592, 7
        %v4596 = vshrl.u32 %v4013, 16
        %v4598 = vrot.slane %v4596, 7
        %v4599 = vshll.u32 %v4013, 16
        %v4601 = vor.u32 %v4598, %v4599
        %v4602 = vsel %vm4044, %v4594, %v4601
        %v4604 = vshrl.u32 %v3335, 16
        %v4606 = vrot.slane %v4604, 7
        %v4607 = vrot.slane %v3514, 7
        %v4608 = vor.u32 %v4607, %v3511
        %v4609 = vsel %vm4044, %v4606, %v4608
        %v4611 = vshrl.u32 %v3513, 16
        %v4613 = vrot.slane %v4611, 7
        %v4615 = vshrl.u32 %v3516, 16
        %v4617 = vrot.slane %v4615, 7
        %v4618 = vshll.u32 %v3516, 16
        %v4620 = vor.u32 %v4617, %v4618
        %v4621 = vsel %vm4044, %v4613, %v4620
        %v4623 = vshrl.u32 %v3630, 16
        %v4625 = vrot.slane %v4623, 7
        %v4627 = vshrl.u32 %v3632, 16
        %v4629 = vrot.slane %v4627, 7
        %v4630 = vshll.u32 %v3632, 16
        %v4632 = vor.u32 %v4629, %v4630
        %v4633 = vsel %vm4044, %v4625, %v4632
        %v4635 = vshrl.u32 %v3383, 16
        %v4637 = vrot.slane %v4635, 7
        %v4638 = vrot.slane %v3706, 7
        %v4639 = vor.u32 %v4638, %v3703
        %v4640 = vsel %vm4044, %v4637, %v4639
        %v4642 = vshrl.u32 %v3705, 16
        %v4644 = vrot.slane %v4642, 7
        %v4646 = vshrl.u32 %v3708, 16
        %v4648 = vrot.slane %v4646, 7
        %v4649 = vshll.u32 %v3708, 16
        %v4651 = vor.u32 %v4648, %v4649
        %v4652 = vsel %vm4044, %v4644, %v4651
        %v4654 = vshrl.u32 %v3822, 16
        %v4656 = vrot.slane %v4654, 7
        %v4658 = vshrl.u32 %v3824, 16
        %v4660 = vrot.slane %v4658, 7
        %v4661 = vshll.u32 %v3824, 16
        %v4663 = vor.u32 %v4660, %v4661
        %v4664 = vsel %vm4044, %v4656, %v4663
        %v4666 = vshrl.u32 %v3432, 16
        %v4668 = vrot.slane %v4666, 7
        %v4669 = vrot.slane %v3898, 7
        %v4670 = vor.u32 %v4669, %v3895
        %v4671 = vsel %vm4044, %v4668, %v4670
        %v4673 = vshrl.u32 %v3897, 16
        %v4675 = vrot.slane %v4673, 7
        %v4677 = vshrl.u32 %v3900, 16
        %v4679 = vrot.slane %v4677, 7
        %v4680 = vshll.u32 %v3900, 16
        %v4682 = vor.u32 %v4679, %v4680
        %v4683 = vsel %vm4044, %v4675, %v4682
        %v4685 = vshrl.u32 %v4014, 16
        %v4687 = vrot.slane %v4685, 7
        %v4689 = vshrl.u32 %v4016, 16
        %v4691 = vrot.slane %v4689, 7
        %v4692 = vshll.u32 %v4016, 16
        %v4694 = vor.u32 %v4691, %v4692
        %v4695 = vsel %vm4044, %v4687, %v4694
        %v4697 = vshrl.u32 %v3337, 16
        %v4699 = vrot.slane %v4697, 7
        %v4700 = vrot.slane %v3521, 7
        %v4701 = vor.u32 %v4700, %v3518
        %v4702 = vsel %vm4044, %v4699, %v4701
        %v4704 = vshrl.u32 %v3520, 16
        %v4706 = vrot.slane %v4704, 7
        %v4708 = vshrl.u32 %v3523, 16
        %v4710 = vrot.slane %v4708, 7
        %v4711 = vshll.u32 %v3523, 16
        %v4713 = vor.u32 %v4710, %v4711
        %v4714 = vsel %vm4044, %v4706, %v4713
        %v4716 = vshrl.u32 %v3633, 16
        %v4718 = vrot.slane %v4716, 7
        %v4720 = vshrl.u32 %v3635, 16
        %v4722 = vrot.slane %v4720, 7
        %v4723 = vshll.u32 %v3635, 16
        %v4725 = vor.u32 %v4722, %v4723
        %v4726 = vsel %vm4044, %v4718, %v4725
        %v4728 = vshrl.u32 %v3385, 16
        %v4730 = vrot.slane %v4728, 7
        %v4731 = vrot.slane %v3713, 7
        %v4732 = vor.u32 %v4731, %v3710
        %v4733 = vsel %vm4044, %v4730, %v4732
        %v4735 = vshrl.u32 %v3712, 16
        %v4737 = vrot.slane %v4735, 7
        %v4739 = vshrl.u32 %v3715, 16
        %v4741 = vrot.slane %v4739, 7
        %v4742 = vshll.u32 %v3715, 16
        %v4744 = vor.u32 %v4741, %v4742
        %v4745 = vsel %vm4044, %v4737, %v4744
        %v4747 = vshrl.u32 %v3825, 16
        %v4749 = vrot.slane %v4747, 7
        %v4751 = vshrl.u32 %v3827, 16
        %v4753 = vrot.slane %v4751, 7
        %v4754 = vshll.u32 %v3827, 16
        %v4756 = vor.u32 %v4753, %v4754
        %v4757 = vsel %vm4044, %v4749, %v4756
        %v4759 = vshrl.u32 %v3434, 16
        %v4761 = vrot.slane %v4759, 7
        %v4762 = vrot.slane %v3905, 7
        %v4763 = vor.u32 %v4762, %v3902
        %v4764 = vsel %vm4044, %v4761, %v4763
        %v4766 = vshrl.u32 %v3904, 16
        %v4768 = vrot.slane %v4766, 7
        %v4770 = vshrl.u32 %v3907, 16
        %v4772 = vrot.slane %v4770, 7
        %v4773 = vshll.u32 %v3907, 16
        %v4775 = vor.u32 %v4772, %v4773
        %v4776 = vsel %vm4044, %v4768, %v4775
        %v4778 = vshrl.u32 %v4017, 16
        %v4780 = vrot.slane %v4778, 7
        %v4782 = vshrl.u32 %v4019, 16
        %v4784 = vrot.slane %v4782, 7
        %v4785 = vshll.u32 %v4019, 16
        %v4787 = vor.u32 %v4784, %v4785
        %v4788 = vsel %vm4044, %v4780, %v4787
        %v4790 = vshrl.u32 %v3339, 16
        %v4792 = vrot.slane %v4790, 7
        %v4793 = vrot.slane %v3528, 7
        %v4794 = vor.u32 %v4793, %v3525
        %v4795 = vsel %vm4044, %v4792, %v4794
        %v4797 = vshrl.u32 %v3527, 16
        %v4799 = vrot.slane %v4797, 7
        %v4801 = vshrl.u32 %v3530, 16
        %v4803 = vrot.slane %v4801, 7
        %v4804 = vshll.u32 %v3530, 16
        %v4806 = vor.u32 %v4803, %v4804
        %v4807 = vsel %vm4044, %v4799, %v4806
        %v4809 = vshrl.u32 %v3636, 16
        %v4811 = vrot.slane %v4809, 7
        %v4813 = vshrl.u32 %v3638, 16
        %v4815 = vrot.slane %v4813, 7
        %v4816 = vshll.u32 %v3638, 16
        %v4818 = vor.u32 %v4815, %v4816
        %v4819 = vsel %vm4044, %v4811, %v4818
        %v4821 = vshrl.u32 %v3387, 16
        %v4823 = vrot.slane %v4821, 7
        %v4824 = vrot.slane %v3720, 7
        %v4825 = vor.u32 %v4824, %v3717
        %v4826 = vsel %vm4044, %v4823, %v4825
        %v4828 = vshrl.u32 %v3719, 16
        %v4830 = vrot.slane %v4828, 7
        %v4832 = vshrl.u32 %v3722, 16
        %v4834 = vrot.slane %v4832, 7
        %v4835 = vshll.u32 %v3722, 16
        %v4837 = vor.u32 %v4834, %v4835
        %v4838 = vsel %vm4044, %v4830, %v4837
        %v4840 = vshrl.u32 %v3828, 16
        %v4842 = vrot.slane %v4840, 7
        %v4844 = vshrl.u32 %v3830, 16
        %v4846 = vrot.slane %v4844, 7
        %v4847 = vshll.u32 %v3830, 16
        %v4849 = vor.u32 %v4846, %v4847
        %v4850 = vsel %vm4044, %v4842, %v4849
        %v4852 = vshrl.u32 %v3436, 16
        %v4854 = vrot.slane %v4852, 7
        %v4855 = vrot.slane %v3912, 7
        %v4856 = vor.u32 %v4855, %v3909
        %v4857 = vsel %vm4044, %v4854, %v4856
        %v4859 = vshrl.u32 %v3911, 16
        %v4861 = vrot.slane %v4859, 7
        %v4863 = vshrl.u32 %v3914, 16
        %v4865 = vrot.slane %v4863, 7
        %v4866 = vshll.u32 %v3914, 16
        %v4868 = vor.u32 %v4865, %v4866
        %v4869 = vsel %vm4044, %v4861, %v4868
        %v4871 = vshrl.u32 %v4020, 16
        %v4873 = vrot.slane %v4871, 7
        %v4875 = vshrl.u32 %v4022, 16
        %v4877 = vrot.slane %v4875, 7
        %v4878 = vshll.u32 %v4022, 16
        %v4880 = vor.u32 %v4877, %v4878
        %v4881 = vsel %vm4044, %v4873, %v4880
        %v4883 = vshrl.u32 %v3341, 16
        %v4885 = vrot.slane %v4883, 7
        %v4886 = vrot.slane %v3535, 7
        %v4887 = vor.u32 %v4886, %v3532
        %v4888 = vsel %vm4044, %v4885, %v4887
        %v4890 = vshrl.u32 %v3534, 16
        %v4892 = vrot.slane %v4890, 7
        %v4894 = vshrl.u32 %v3537, 16
        %v4896 = vrot.slane %v4894, 7
        %v4897 = vshll.u32 %v3537, 16
        %v4899 = vor.u32 %v4896, %v4897
        %v4900 = vsel %vm4044, %v4892, %v4899
        %v4902 = vshrl.u32 %v3639, 16
        %v4904 = vrot.slane %v4902, 7
        %v4906 = vshrl.u32 %v3641, 16
        %v4908 = vrot.slane %v4906, 7
        %v4909 = vshll.u32 %v3641, 16
        %v4911 = vor.u32 %v4908, %v4909
        %v4912 = vsel %vm4044, %v4904, %v4911
        %v4914 = vshrl.u32 %v3389, 16
        %v4916 = vrot.slane %v4914, 7
        %v4917 = vrot.slane %v3727, 7
        %v4918 = vor.u32 %v4917, %v3724
        %v4919 = vsel %vm4044, %v4916, %v4918
        %v4921 = vshrl.u32 %v3726, 16
        %v4923 = vrot.slane %v4921, 7
        %v4925 = vshrl.u32 %v3729, 16
        %v4927 = vrot.slane %v4925, 7
        %v4928 = vshll.u32 %v3729, 16
        %v4930 = vor.u32 %v4927, %v4928
        %v4931 = vsel %vm4044, %v4923, %v4930
        %v4933 = vshrl.u32 %v3831, 16
        %v4935 = vrot.slane %v4933, 7
        %v4937 = vshrl.u32 %v3833, 16
        %v4939 = vrot.slane %v4937, 7
        %v4940 = vshll.u32 %v3833, 16
        %v4942 = vor.u32 %v4939, %v4940
        %v4943 = vsel %vm4044, %v4935, %v4942
        %v4945 = vshrl.u32 %v3438, 16
        %v4947 = vrot.slane %v4945, 7
        %v4948 = vrot.slane %v3919, 7
        %v4949 = vor.u32 %v4948, %v3916
        %v4950 = vsel %vm4044, %v4947, %v4949
        %v4952 = vshrl.u32 %v3918, 16
        %v4954 = vrot.slane %v4952, 7
        %v4956 = vshrl.u32 %v3921, 16
        %v4958 = vrot.slane %v4956, 7
        %v4959 = vshll.u32 %v3921, 16
        %v4961 = vor.u32 %v4958, %v4959
        %v4962 = vsel %vm4044, %v4954, %v4961
        %v4964 = vshrl.u32 %v4023, 16
        %v4966 = vrot.slane %v4964, 7
        %v4968 = vshrl.u32 %v4025, 16
        %v4970 = vrot.slane %v4968, 7
        %v4971 = vshll.u32 %v4025, 16
        %v4973 = vor.u32 %v4970, %v4971
        %v4974 = vsel %vm4044, %v4966, %v4973
        %v4976 = vshrl.u32 %v3343, 16
        %v4978 = vrot.slane %v4976, 7
        %v4979 = vrot.slane %v3542, 7
        %v4980 = vor.u32 %v4979, %v3539
        %v4981 = vsel %vm4044, %v4978, %v4980
        %v4983 = vshrl.u32 %v3541, 16
        %v4985 = vrot.slane %v4983, 7
        %v4987 = vshrl.u32 %v3544, 16
        %v4989 = vrot.slane %v4987, 7
        %v4990 = vshll.u32 %v3544, 16
        %v4992 = vor.u32 %v4989, %v4990
        %v4993 = vsel %vm4044, %v4985, %v4992
        %v4995 = vshrl.u32 %v3642, 16
        %v4997 = vrot.slane %v4995, 7
        %v4999 = vshrl.u32 %v3644, 16
        %v5001 = vrot.slane %v4999, 7
        %v5002 = vshll.u32 %v3644, 16
        %v5004 = vor.u32 %v5001, %v5002
        %v5005 = vsel %vm4044, %v4997, %v5004
        %v5007 = vshrl.u32 %v3391, 16
        %v5009 = vrot.slane %v5007, 7
        %v5010 = vrot.slane %v3734, 7
        %v5011 = vor.u32 %v5010, %v3731
        %v5012 = vsel %vm4044, %v5009, %v5011
        %v5014 = vshrl.u32 %v3733, 16
        %v5016 = vrot.slane %v5014, 7
        %v5018 = vshrl.u32 %v3736, 16
        %v5020 = vrot.slane %v5018, 7
        %v5021 = vshll.u32 %v3736, 16
        %v5023 = vor.u32 %v5020, %v5021
        %v5024 = vsel %vm4044, %v5016, %v5023
        %v5026 = vshrl.u32 %v3834, 16
        %v5028 = vrot.slane %v5026, 7
        %v5030 = vshrl.u32 %v3836, 16
        %v5032 = vrot.slane %v5030, 7
        %v5033 = vshll.u32 %v3836, 16
        %v5035 = vor.u32 %v5032, %v5033
        %v5036 = vsel %vm4044, %v5028, %v5035
        %v5038 = vshrl.u32 %v3440, 16
        %v5040 = vrot.slane %v5038, 7
        %v5041 = vrot.slane %v3926, 7
        %v5042 = vor.u32 %v5041, %v3923
        %v5043 = vsel %vm4044, %v5040, %v5042
        %v5045 = vshrl.u32 %v3925, 16
        %v5047 = vrot.slane %v5045, 7
        %v5049 = vshrl.u32 %v3928, 16
        %v5051 = vrot.slane %v5049, 7
        %v5052 = vshll.u32 %v3928, 16
        %v5054 = vor.u32 %v5051, %v5052
        %v5055 = vsel %vm4044, %v5047, %v5054
        %v5057 = vshrl.u32 %v4026, 16
        %v5059 = vrot.slane %v5057, 7
        %v5061 = vshrl.u32 %v4028, 16
        %v5063 = vrot.slane %v5061, 7
        %v5064 = vshll.u32 %v4028, 16
        %v5066 = vor.u32 %v5063, %v5064
        %v5067 = vsel %vm4044, %v5059, %v5066
        %v5069 = vshrl.u32 %v3345, 16
        %v5071 = vrot.slane %v5069, 7
        %v5072 = vrot.slane %v3549, 7
        %v5073 = vor.u32 %v5072, %v3546
        %v5074 = vsel %vm4044, %v5071, %v5073
        %v5076 = vshrl.u32 %v3548, 16
        %v5078 = vrot.slane %v5076, 7
        %v5080 = vshrl.u32 %v3551, 16
        %v5082 = vrot.slane %v5080, 7
        %v5083 = vshll.u32 %v3551, 16
        %v5085 = vor.u32 %v5082, %v5083
        %v5086 = vsel %vm4044, %v5078, %v5085
        %v5088 = vshrl.u32 %v3645, 16
        %v5090 = vrot.slane %v5088, 7
        %v5092 = vshrl.u32 %v3647, 16
        %v5094 = vrot.slane %v5092, 7
        %v5095 = vshll.u32 %v3647, 16
        %v5097 = vor.u32 %v5094, %v5095
        %v5098 = vsel %vm4044, %v5090, %v5097
        %v5100 = vshrl.u32 %v3393, 16
        %v5102 = vrot.slane %v5100, 7
        %v5103 = vrot.slane %v3741, 7
        %v5104 = vor.u32 %v5103, %v3738
        %v5105 = vsel %vm4044, %v5102, %v5104
        %v5107 = vshrl.u32 %v3740, 16
        %v5109 = vrot.slane %v5107, 7
        %v5111 = vshrl.u32 %v3743, 16
        %v5113 = vrot.slane %v5111, 7
        %v5114 = vshll.u32 %v3743, 16
        %v5116 = vor.u32 %v5113, %v5114
        %v5117 = vsel %vm4044, %v5109, %v5116
        %v5119 = vshrl.u32 %v3837, 16
        %v5121 = vrot.slane %v5119, 7
        %v5123 = vshrl.u32 %v3839, 16
        %v5125 = vrot.slane %v5123, 7
        %v5126 = vshll.u32 %v3839, 16
        %v5128 = vor.u32 %v5125, %v5126
        %v5129 = vsel %vm4044, %v5121, %v5128
        %v5131 = vshrl.u32 %v3442, 16
        %v5133 = vrot.slane %v5131, 7
        %v5134 = vrot.slane %v3933, 7
        %v5135 = vor.u32 %v5134, %v3930
        %v5136 = vsel %vm4044, %v5133, %v5135
        %v5138 = vshrl.u32 %v3932, 16
        %v5140 = vrot.slane %v5138, 7
        %v5142 = vshrl.u32 %v3935, 16
        %v5144 = vrot.slane %v5142, 7
        %v5145 = vshll.u32 %v3935, 16
        %v5147 = vor.u32 %v5144, %v5145
        %v5148 = vsel %vm4044, %v5140, %v5147
        %v5150 = vshrl.u32 %v4029, 16
        %v5152 = vrot.slane %v5150, 7
        %v5154 = vshrl.u32 %v4031, 16
        %v5156 = vrot.slane %v5154, 7
        %v5157 = vshll.u32 %v4031, 16
        %v5159 = vor.u32 %v5156, %v5157
        %v5160 = vsel %vm4044, %v5152, %v5159
        %v5162 = vshrl.u32 %v3347, 16
        %v5164 = vrot.slane %v5162, 7
        %v5165 = vrot.slane %v3556, 7
        %v5166 = vor.u32 %v5165, %v3553
        %v5167 = vsel %vm4044, %v5164, %v5166
        %v5169 = vshrl.u32 %v3555, 16
        %v5171 = vrot.slane %v5169, 7
        %v5173 = vshrl.u32 %v3558, 16
        %v5175 = vrot.slane %v5173, 7
        %v5176 = vshll.u32 %v3558, 16
        %v5178 = vor.u32 %v5175, %v5176
        %v5179 = vsel %vm4044, %v5171, %v5178
        %v5181 = vshrl.u32 %v3648, 16
        %v5183 = vrot.slane %v5181, 7
        %v5185 = vshrl.u32 %v3650, 16
        %v5187 = vrot.slane %v5185, 7
        %v5188 = vshll.u32 %v3650, 16
        %v5190 = vor.u32 %v5187, %v5188
        %v5191 = vsel %vm4044, %v5183, %v5190
        %v5193 = vshrl.u32 %v3395, 16
        %v5195 = vrot.slane %v5193, 7
        %v5196 = vrot.slane %v3748, 7
        %v5197 = vor.u32 %v5196, %v3745
        %v5198 = vsel %vm4044, %v5195, %v5197
        %v5200 = vshrl.u32 %v3747, 16
        %v5202 = vrot.slane %v5200, 7
        %v5204 = vshrl.u32 %v3750, 16
        %v5206 = vrot.slane %v5204, 7
        %v5207 = vshll.u32 %v3750, 16
        %v5209 = vor.u32 %v5206, %v5207
        %v5210 = vsel %vm4044, %v5202, %v5209
        %v5212 = vshrl.u32 %v3840, 16
        %v5214 = vrot.slane %v5212, 7
        %v5216 = vshrl.u32 %v3842, 16
        %v5218 = vrot.slane %v5216, 7
        %v5219 = vshll.u32 %v3842, 16
        %v5221 = vor.u32 %v5218, %v5219
        %v5222 = vsel %vm4044, %v5214, %v5221
        %v5224 = vshrl.u32 %v3444, 16
        %v5226 = vrot.slane %v5224, 7
        %v5227 = vrot.slane %v3940, 7
        %v5228 = vor.u32 %v5227, %v3937
        %v5229 = vsel %vm4044, %v5226, %v5228
        %v5231 = vshrl.u32 %v3939, 16
        %v5233 = vrot.slane %v5231, 7
        %v5235 = vshrl.u32 %v3942, 16
        %v5237 = vrot.slane %v5235, 7
        %v5238 = vshll.u32 %v3942, 16
        %v5240 = vor.u32 %v5237, %v5238
        %v5241 = vsel %vm4044, %v5233, %v5240
        %v5243 = vshrl.u32 %v4032, 16
        %v5245 = vrot.slane %v5243, 7
        %v5247 = vshrl.u32 %v4034, 16
        %v5249 = vrot.slane %v5247, 7
        %v5250 = vshll.u32 %v4034, 16
        %v5252 = vor.u32 %v5249, %v5250
        %v5253 = vsel %vm4044, %v5245, %v5252
        %v5255 = vshrl.u32 %v3349, 16
        %v5257 = vrot.slane %v5255, 7
        %v5258 = vrot.slane %v3563, 7
        %v5259 = vor.u32 %v5258, %v3560
        %v5260 = vsel %vm4044, %v5257, %v5259
        %v5262 = vshrl.u32 %v3562, 16
        %v5264 = vrot.slane %v5262, 7
        %v5266 = vshrl.u32 %v3565, 16
        %v5268 = vrot.slane %v5266, 7
        %v5269 = vshll.u32 %v3565, 16
        %v5271 = vor.u32 %v5268, %v5269
        %v5272 = vsel %vm4044, %v5264, %v5271
        %v5274 = vshrl.u32 %v3651, 16
        %v5276 = vrot.slane %v5274, 7
        %v5278 = vshrl.u32 %v3653, 16
        %v5280 = vrot.slane %v5278, 7
        %v5281 = vshll.u32 %v3653, 16
        %v5283 = vor.u32 %v5280, %v5281
        %v5284 = vsel %vm4044, %v5276, %v5283
        %v5286 = vshrl.u32 %v3397, 16
        %v5288 = vrot.slane %v5286, 7
        %v5289 = vrot.slane %v3755, 7
        %v5290 = vor.u32 %v5289, %v3752
        %v5291 = vsel %vm4044, %v5288, %v5290
        %v5293 = vshrl.u32 %v3754, 16
        %v5295 = vrot.slane %v5293, 7
        %v5297 = vshrl.u32 %v3757, 16
        %v5299 = vrot.slane %v5297, 7
        %v5300 = vshll.u32 %v3757, 16
        %v5302 = vor.u32 %v5299, %v5300
        %v5303 = vsel %vm4044, %v5295, %v5302
        %v5305 = vshrl.u32 %v3843, 16
        %v5307 = vrot.slane %v5305, 7
        %v5309 = vshrl.u32 %v3845, 16
        %v5311 = vrot.slane %v5309, 7
        %v5312 = vshll.u32 %v3845, 16
        %v5314 = vor.u32 %v5311, %v5312
        %v5315 = vsel %vm4044, %v5307, %v5314
        %v5317 = vshrl.u32 %v3446, 16
        %v5319 = vrot.slane %v5317, 7
        %v5320 = vrot.slane %v3947, 7
        %v5321 = vor.u32 %v5320, %v3944
        %v5322 = vsel %vm4044, %v5319, %v5321
        %v5324 = vshrl.u32 %v3946, 16
        %v5326 = vrot.slane %v5324, 7
        %v5328 = vshrl.u32 %v3949, 16
        %v5330 = vrot.slane %v5328, 7
        %v5331 = vshll.u32 %v3949, 16
        %v5333 = vor.u32 %v5330, %v5331
        %v5334 = vsel %vm4044, %v5326, %v5333
        %v5336 = vshrl.u32 %v4035, 16
        %v5338 = vrot.slane %v5336, 7
        %v5340 = vshrl.u32 %v4037, 16
        %v5342 = vrot.slane %v5340, 7
        %v5343 = vshll.u32 %v4037, 16
        %v5345 = vor.u32 %v5342, %v5343
        %v5346 = vsel %vm4044, %v5338, %v5345
        %v5348 = vshrl.u32 %v3351, 16
        %v5350 = vrot.slane %v5348, 7
        %v5351 = vrot.slane %v3570, 7
        %v5352 = vor.u32 %v5351, %v3567
        %v5353 = vsel %vm4044, %v5350, %v5352
        %v5355 = vshrl.u32 %v3569, 16
        %v5357 = vrot.slane %v5355, 7
        %v5359 = vshrl.u32 %v3572, 16
        %v5361 = vrot.slane %v5359, 7
        %v5362 = vshll.u32 %v3572, 16
        %v5364 = vor.u32 %v5361, %v5362
        %v5365 = vsel %vm4044, %v5357, %v5364
        %v5367 = vshrl.u32 %v3654, 16
        %v5369 = vrot.slane %v5367, 7
        %v5371 = vshrl.u32 %v3656, 16
        %v5373 = vrot.slane %v5371, 7
        %v5374 = vshll.u32 %v3656, 16
        %v5376 = vor.u32 %v5373, %v5374
        %v5377 = vsel %vm4044, %v5369, %v5376
        %v5379 = vshrl.u32 %v3399, 16
        %v5381 = vrot.slane %v5379, 7
        %v5382 = vrot.slane %v3762, 7
        %v5383 = vor.u32 %v5382, %v3759
        %v5384 = vsel %vm4044, %v5381, %v5383
        %v5386 = vshrl.u32 %v3761, 16
        %v5388 = vrot.slane %v5386, 7
        %v5390 = vshrl.u32 %v3764, 16
        %v5392 = vrot.slane %v5390, 7
        %v5393 = vshll.u32 %v3764, 16
        %v5395 = vor.u32 %v5392, %v5393
        %v5396 = vsel %vm4044, %v5388, %v5395
        %v5398 = vshrl.u32 %v3846, 16
        %v5400 = vrot.slane %v5398, 7
        %v5402 = vshrl.u32 %v3848, 16
        %v5404 = vrot.slane %v5402, 7
        %v5405 = vshll.u32 %v3848, 16
        %v5407 = vor.u32 %v5404, %v5405
        %v5408 = vsel %vm4044, %v5400, %v5407
        %v5410 = vshrl.u32 %v3448, 16
        %v5412 = vrot.slane %v5410, 7
        %v5413 = vrot.slane %v3954, 7
        %v5414 = vor.u32 %v5413, %v3951
        %v5415 = vsel %vm4044, %v5412, %v5414
        %v5417 = vshrl.u32 %v3953, 16
        %v5419 = vrot.slane %v5417, 7
        %v5421 = vshrl.u32 %v3956, 16
        %v5423 = vrot.slane %v5421, 7
        %v5424 = vshll.u32 %v3956, 16
        %v5426 = vor.u32 %v5423, %v5424
        %v5427 = vsel %vm4044, %v5419, %v5426
        %v5429 = vshrl.u32 %v4038, 16
        %v5431 = vrot.slane %v5429, 7
        %v5433 = vshrl.u32 %v4040, 16
        %v5435 = vrot.slane %v5433, 7
        %v5436 = vshll.u32 %v4040, 16
        %v5438 = vor.u32 %v5435, %v5436
        %v5439 = vsel %vm4044, %v5431, %v5438
        %v5441 = vshrl.u32 %v3353, 16
        %v5443 = vrot.slane %v5441, 7
        %v5444 = vrot.slane %v3577, 7
        %v5445 = vor.u32 %v5444, %v3574
        %v5446 = vsel %vm4044, %v5443, %v5445
        %v5448 = vshrl.u32 %v3576, 16
        %v5450 = vrot.slane %v5448, 7
        %v5452 = vshrl.u32 %v3579, 16
        %v5454 = vrot.slane %v5452, 7
        %v5455 = vshll.u32 %v3579, 16
        %v5457 = vor.u32 %v5454, %v5455
        %v5458 = vsel %vm4044, %v5450, %v5457
        %v5460 = vshrl.u32 %v3657, 16
        %v5462 = vrot.slane %v5460, 7
        %v5464 = vshrl.u32 %v3659, 16
        %v5466 = vrot.slane %v5464, 7
        %v5467 = vshll.u32 %v3659, 16
        %v5469 = vor.u32 %v5466, %v5467
        %v5470 = vsel %vm4044, %v5462, %v5469
        %v5472 = vshrl.u32 %v3401, 16
        %v5474 = vrot.slane %v5472, 7
        %v5475 = vrot.slane %v3769, 7
        %v5476 = vor.u32 %v5475, %v3766
        %v5477 = vsel %vm4044, %v5474, %v5476
        %v5479 = vshrl.u32 %v3768, 16
        %v5481 = vrot.slane %v5479, 7
        %v5483 = vshrl.u32 %v3771, 16
        %v5485 = vrot.slane %v5483, 7
        %v5486 = vshll.u32 %v3771, 16
        %v5488 = vor.u32 %v5485, %v5486
        %v5489 = vsel %vm4044, %v5481, %v5488
        %v5491 = vshrl.u32 %v3849, 16
        %v5493 = vrot.slane %v5491, 7
        %v5495 = vshrl.u32 %v3851, 16
        %v5497 = vrot.slane %v5495, 7
        %v5498 = vshll.u32 %v3851, 16
        %v5500 = vor.u32 %v5497, %v5498
        %v5501 = vsel %vm4044, %v5493, %v5500
        %v5503 = vshrl.u32 %v3450, 16
        %v5505 = vrot.slane %v5503, 7
        %v5506 = vrot.slane %v3961, 7
        %v5507 = vor.u32 %v5506, %v3958
        %v5508 = vsel %vm4044, %v5505, %v5507
        %v5510 = vshrl.u32 %v3960, 16
        %v5512 = vrot.slane %v5510, 7
        %v5514 = vshrl.u32 %v3963, 16
        %v5516 = vrot.slane %v5514, 7
        %v5517 = vshll.u32 %v3963, 16
        %v5519 = vor.u32 %v5516, %v5517
        %v5520 = vsel %vm4044, %v5512, %v5519
        %v5522 = vshrl.u32 %v4041, 16
        %v5524 = vrot.slane %v5522, 7
        %v5526 = vshrl.u32 %v4043, 16
        %v5528 = vrot.slane %v5526, 7
        %v5529 = vshll.u32 %v4043, 16
        %v5531 = vor.u32 %v5528, %v5529
        %v5532 = vsel %vm4044, %v5524, %v5531
        %v5677 = vld [vmem:[#allocation3] sm:$0xf]
        %v5678 = vld [vmem:[#allocation3 + $0x4] sm:$0xf]
        %v5679 = vld [vmem:[#allocation3 + $0x8] sm:$0xf]
        %v5680 = vld [vmem:[#allocation3 + $0xc] sm:$0xf]
        %v5681 = vld [vmem:[#allocation3 + $0x10] sm:$0xf]
        %v5682 = vld [vmem:[#allocation3 + $0x14] sm:$0xf]
        %v5683 = vld [vmem:[#allocation3 + $0x18] sm:$0xf]
        %v5684 = vld [vmem:[#allocation3 + $0x1c] sm:$0xf]
        %v5685 = vld [vmem:[#allocation3 + $0x20] sm:$0xf]
        %v5686 = vld [vmem:[#allocation3 + $0x24] sm:$0xf]
        %v5687 = vld [vmem:[#allocation3 + $0x28] sm:$0xf]
        %v5688 = vld [vmem:[#allocation3 + $0x2c] sm:$0xf]
        %v5689 = vld [vmem:[#allocation3 + $0x30] sm:$0xf]
        %v5690 = vld [vmem:[#allocation3 + $0x34] sm:$0xf]
        %v5691 = vld [vmem:[#allocation3 + $0x38] sm:$0xf]
        %v5692 = vld [vmem:[#allocation3 + $0x3c] sm:$0xf]
        %v5693 = vld [vmem:[#allocation3 + $0x40] sm:$0xf]
        %v5694 = vld [vmem:[#allocation3 + $0x44] sm:$0xf]
        %v5695 = vld [vmem:[#allocation3 + $0x48] sm:$0xf]
        %v5696 = vld [vmem:[#allocation3 + $0x4c] sm:$0xf]
        %v5697 = vld [vmem:[#allocation3 + $0x50] sm:$0xf]
        %v5698 = vld [vmem:[#allocation3 + $0x54] sm:$0xf]
        %v5699 = vld [vmem:[#allocation3 + $0x58] sm:$0xf]
        %v5700 = vld [vmem:[#allocation3 + $0x5c] sm:$0xf]
        %v5701 = vld [vmem:[#allocation3 + $0x60] sm:$0xf]
        %v5702 = vld [vmem:[#allocation3 + $0x64] sm:$0xf]
        %v5703 = vld [vmem:[#allocation3 + $0x68] sm:$0xf]
        %v5704 = vld [vmem:[#allocation3 + $0x6c] sm:$0xf]
        %v5705 = vld [vmem:[#allocation3 + $0x70] sm:$0xf]
        %v5706 = vld [vmem:[#allocation3 + $0x74] sm:$0xf]
        %v5707 = vld [vmem:[#allocation3 + $0x78] sm:$0xf]
        %v5708 = vld [vmem:[#allocation3 + $0x7c] sm:$0xf]
        %v5709 = vld [vmem:[#allocation3 + $0x80] sm:$0xf]
        %v5710 = vld [vmem:[#allocation3 + $0x84] sm:$0xf]
        %v5711 = vld [vmem:[#allocation3 + $0x88] sm:$0xf]
        %v5712 = vld [vmem:[#allocation3 + $0x8c] sm:$0xf]
        %v5713 = vld [vmem:[#allocation3 + $0x90] sm:$0xf]
        %v5714 = vld [vmem:[#allocation3 + $0x94] sm:$0xf]
        %v5715 = vld [vmem:[#allocation3 + $0x98] sm:$0xf]
        %v5716 = vld [vmem:[#allocation3 + $0x9c] sm:$0xf]
        %v5717 = vld [vmem:[#allocation3 + $0xa0] sm:$0xf]
        %v5718 = vld [vmem:[#allocation3 + $0xa4] sm:$0xf]
        %v5719 = vld [vmem:[#allocation3 + $0xa8] sm:$0xf]
        %v5720 = vld [vmem:[#allocation3 + $0xac] sm:$0xf]
        %v5721 = vld [vmem:[#allocation3 + $0xb0] sm:$0xf]
        %v5722 = vld [vmem:[#allocation3 + $0xb4] sm:$0xf]
        %v5723 = vld [vmem:[#allocation3 + $0xb8] sm:$0xf]
        %v5724 = vld [vmem:[#allocation3 + $0xbc] sm:$0xf]
        %v5725 = vld [vmem:[#allocation3 + $0xc0] sm:$0xf]
        %v5726 = vld [vmem:[#allocation3 + $0xc4] sm:$0xf]
        %v5727 = vld [vmem:[#allocation3 + $0xc8] sm:$0xf]
        %v5728 = vld [vmem:[#allocation3 + $0xcc] sm:$0xf]
        %v5729 = vld [vmem:[#allocation3 + $0xd0] sm:$0xf]
        %v5730 = vld [vmem:[#allocation3 + $0xd4] sm:$0xf]
        %v5731 = vld [vmem:[#allocation3 + $0xd8] sm:$0xf]
        %v5732 = vld [vmem:[#allocation3 + $0xdc] sm:$0xf]
        %v5733 = vld [vmem:[#allocation3 + $0xe0] sm:$0xf]
        %v5734 = vld [vmem:[#allocation3 + $0xe4] sm:$0xf]
        %v5735 = vld [vmem:[#allocation3 + $0xe8] sm:$0xf]
        %v5736 = vld [vmem:[#allocation3 + $0xec] sm:$0xf]
        %v5737 = vld [vmem:[#allocation3 + $0xf0] sm:$0xf]
        %v5738 = vld [vmem:[#allocation3 + $0xf4] sm:$0xf]
        %v5739 = vld [vmem:[#allocation3 + $0xf8] sm:$0xf]
        %v5740 = vld [vmem:[#allocation3 + $0xfc] sm:$0xf]
        %v5741 = vld [vmem:[#allocation3 + $0x100] sm:$0xf]
        %v5742 = vld [vmem:[#allocation3 + $0x104] sm:$0xf]
        %v5743 = vld [vmem:[#allocation3 + $0x108] sm:$0xf]
        %v5744 = vld [vmem:[#allocation3 + $0x10c] sm:$0xf]
        %v5745 = vld [vmem:[#allocation3 + $0x110] sm:$0xf]
        %v5746 = vld [vmem:[#allocation3 + $0x114] sm:$0xf]
        %v5747 = vld [vmem:[#allocation3 + $0x118] sm:$0xf]
        %v5748 = vld [vmem:[#allocation3 + $0x11c] sm:$0xf]
        %v5749 = vld [vmem:[#allocation3 + $0x120] sm:$0xf]
        %v5750 = vld [vmem:[#allocation3 + $0x124] sm:$0xf]
        %v5751 = vld [vmem:[#allocation3 + $0x128] sm:$0xf]
        %v5752 = vld [vmem:[#allocation3 + $0x12c] sm:$0xf]
        %v5753 = vld [vmem:[#allocation3 + $0x130] sm:$0xf]
        %v5754 = vld [vmem:[#allocation3 + $0x134] sm:$0xf]
        %v5755 = vld [vmem:[#allocation3 + $0x138] sm:$0xf]
        %v5756 = vld [vmem:[#allocation3 + $0x13c] sm:$0xf]
        %v5757 = vld [vmem:[#allocation3 + $0x140] sm:$0xf]
        %v5758 = vld [vmem:[#allocation3 + $0x144] sm:$0xf]
        %v5759 = vld [vmem:[#allocation3 + $0x148] sm:$0xf]
        %v5760 = vld [vmem:[#allocation3 + $0x14c] sm:$0xf]
        %v5761 = vld [vmem:[#allocation3 + $0x150] sm:$0xf]
        %v5762 = vld [vmem:[#allocation3 + $0x154] sm:$0xf]
        %v5763 = vld [vmem:[#allocation3 + $0x158] sm:$0xf]
        %v5764 = vld [vmem:[#allocation3 + $0x15c] sm:$0xf]
        %v5765 = vld [vmem:[#allocation3 + $0x160] sm:$0xf]
        %v5766 = vld [vmem:[#allocation3 + $0x164] sm:$0xf]
        %v5767 = vld [vmem:[#allocation3 + $0x168] sm:$0xf]
        %v5768 = vld [vmem:[#allocation3 + $0x16c] sm:$0xf]
        %v5769 = vld [vmem:[#allocation3 + $0x170] sm:$0xf]
        %v5770 = vld [vmem:[#allocation3 + $0x174] sm:$0xf]
        %v5771 = vld [vmem:[#allocation3 + $0x178] sm:$0xf]
        %v5772 = vld [vmem:[#allocation3 + $0x17c] sm:$0xf]
        %v5773 = vld [vmem:[#allocation3 + $0x180] sm:$0xf]
        %v5774 = vld [vmem:[#allocation3 + $0x184] sm:$0xf]
        %v5775 = vld [vmem:[#allocation3 + $0x188] sm:$0xf]
        %v5776 = vld [vmem:[#allocation3 + $0x18c] sm:$0xf]
        %v5777 = vld [vmem:[#allocation3 + $0x190] sm:$0xf]
        %v5778 = vld [vmem:[#allocation3 + $0x194] sm:$0xf]
        %v5779 = vld [vmem:[#allocation3 + $0x198] sm:$0xf]
        %v5780 = vld [vmem:[#allocation3 + $0x19c] sm:$0xf]
        %v5781 = vld [vmem:[#allocation3 + $0x1a0] sm:$0xf]
        %v5782 = vld [vmem:[#allocation3 + $0x1a4] sm:$0xf]
        %v5783 = vld [vmem:[#allocation3 + $0x1a8] sm:$0xf]
        %v5784 = vld [vmem:[#allocation3 + $0x1ac] sm:$0xf]
        %v5785 = vld [vmem:[#allocation3 + $0x1b0] sm:$0xf]
        %v5786 = vld [vmem:[#allocation3 + $0x1b4] sm:$0xf]
        %v5787 = vld [vmem:[#allocation3 + $0x1b8] sm:$0xf]
        %v5788 = vld [vmem:[#allocation3 + $0x1bc] sm:$0xf]
        %v5789 = vld [vmem:[#allocation3 + $0x1c0] sm:$0xf]
        %v5790 = vld [vmem:[#allocation3 + $0x1c4] sm:$0xf]
        %v5791 = vld [vmem:[#allocation3 + $0x1c8] sm:$0xf]
        %v5792 = vld [vmem:[#allocation3 + $0x1cc] sm:$0xf]
        %v5793 = vld [vmem:[#allocation3 + $0x1d0] sm:$0xf]
        %v5794 = vld [vmem:[#allocation3 + $0x1d4] sm:$0xf]
        %v5795 = vld [vmem:[#allocation3 + $0x1d8] sm:$0xf]
        %v5796 = vld [vmem:[#allocation3 + $0x1dc] sm:$0xf]
        %v5797 = vld [vmem:[#allocation3 + $0x1e0] sm:$0xf]
        %v5798 = vld [vmem:[#allocation3 + $0x1e4] sm:$0xf]
        %v5799 = vld [vmem:[#allocation3 + $0x1e8] sm:$0xf]
        %v5800 = vld [vmem:[#allocation3 + $0x1ec] sm:$0xf]
        %v5801 = vld [vmem:[#allocation3 + $0x1f0] sm:$0xf]
        %v5802 = vld [vmem:[#allocation3 + $0x1f4] sm:$0xf]
        %v5803 = vld [vmem:[#allocation3 + $0x1f8] sm:$0xf]
        %v5804 = vld [vmem:[#allocation3 + $0x1fc] sm:$0xf]
        %v5805 = vld [vmem:[#allocation3 + $0x200] sm:$0xf]
        %v5806 = vld [vmem:[#allocation3 + $0x204] sm:$0xf]
        %v5807 = vld [vmem:[#allocation3 + $0x208] sm:$0xf]
        %v5808 = vld [vmem:[#allocation3 + $0x20c] sm:$0xf]
        %v5809 = vld [vmem:[#allocation3 + $0x210] sm:$0xf]
        %v5810 = vld [vmem:[#allocation3 + $0x214] sm:$0xf]
        %v5811 = vld [vmem:[#allocation3 + $0x218] sm:$0xf]
        %v5812 = vld [vmem:[#allocation3 + $0x21c] sm:$0xf]
        %v5813 = vld [vmem:[#allocation3 + $0x220] sm:$0xf]
        %v5814 = vld [vmem:[#allocation3 + $0x224] sm:$0xf]
        %v5815 = vld [vmem:[#allocation3 + $0x228] sm:$0xf]
        %v5816 = vld [vmem:[#allocation3 + $0x22c] sm:$0xf]
        %v5817 = vld [vmem:[#allocation3 + $0x230] sm:$0xf]
        %v5818 = vld [vmem:[#allocation3 + $0x234] sm:$0xf]
        %v5819 = vld [vmem:[#allocation3 + $0x238] sm:$0xf]
        %v5820 = vld [vmem:[#allocation3 + $0x23c] sm:$0xf]
        %v5821 = vld [vmem:[%s303] sm:$0xf]
        %v5822 = vld [vmem:[%s303 + $0x4] sm:$0xf]
        %v5823 = vld [vmem:[%s303 + $0x8] sm:$0x1]
        %v5824 = vld [vmem:[%s303 + $0xc] sm:$0xf]
        %v5825 = vld [vmem:[%s303 + $0x10] sm:$0xf]
        %v5826 = vld [vmem:[%s303 + $0x14] sm:$0x1]
        %v5827 = vld [vmem:[%s303 + $0x18] sm:$0xf]
        %v5828 = vld [vmem:[%s303 + $0x1c] sm:$0xf]
        %v5829 = vld [vmem:[%s303 + $0x20] sm:$0x1]
        %v5830 = vld [vmem:[%s303 + $0x24] sm:$0xf]
        %v5831 = vld [vmem:[%s303 + $0x28] sm:$0xf]
        %v5832 = vld [vmem:[%s303 + $0x2c] sm:$0x1]
        %v5833 = vld [vmem:[%s303 + $0x30] sm:$0xf]
        %v5834 = vld [vmem:[%s303 + $0x34] sm:$0xf]
        %v5835 = vld [vmem:[%s303 + $0x38] sm:$0x1]
        %v5836 = vld [vmem:[%s303 + $0x3c] sm:$0xf]
        %v5837 = vld [vmem:[%s303 + $0x40] sm:$0xf]
        %v5838 = vld [vmem:[%s303 + $0x44] sm:$0x1]
        %v5839 = vld [vmem:[%s303 + $0x48] sm:$0xf]
        %v5840 = vld [vmem:[%s303 + $0x4c] sm:$0xf]
        %v5841 = vld [vmem:[%s303 + $0x50] sm:$0x1]
        %v5842 = vld [vmem:[%s303 + $0x54] sm:$0xf]
        %v5843 = vld [vmem:[%s303 + $0x58] sm:$0xf]
        %v5844 = vld [vmem:[%s303 + $0x5c] sm:$0x1]
        %v5845 = vld [vmem:[%s303 + $0x60] sm:$0xf]
        %v5846 = vld [vmem:[%s303 + $0x64] sm:$0xf]
        %v5847 = vld [vmem:[%s303 + $0x68] sm:$0x1]
        %v5848 = vld [vmem:[%s303 + $0x6c] sm:$0xf]
        %v5849 = vld [vmem:[%s303 + $0x70] sm:$0xf]
        %v5850 = vld [vmem:[%s303 + $0x74] sm:$0x1]
        %v5851 = vld [vmem:[%s303 + $0x78] sm:$0xf]
        %v5852 = vld [vmem:[%s303 + $0x7c] sm:$0xf]
        %v5853 = vld [vmem:[%s303 + $0x80] sm:$0x1]
        %v5854 = vld [vmem:[%s303 + $0x84] sm:$0xf]
        %v5855 = vld [vmem:[%s303 + $0x88] sm:$0xf]
        %v5856 = vld [vmem:[%s303 + $0x8c] sm:$0x1]
        %v5857 = vld [vmem:[%s303 + $0x90] sm:$0xf]
        %v5858 = vld [vmem:[%s303 + $0x94] sm:$0xf]
        %v5859 = vld [vmem:[%s303 + $0x98] sm:$0x1]
        %v5860 = vld [vmem:[%s303 + $0x9c] sm:$0xf]
        %v5861 = vld [vmem:[%s303 + $0xa0] sm:$0xf]
        %v5862 = vld [vmem:[%s303 + $0xa4] sm:$0x1]
        %v5863 = vld [vmem:[%s303 + $0xa8] sm:$0xf]
        %v5864 = vld [vmem:[%s303 + $0xac] sm:$0xf]
        %v5865 = vld [vmem:[%s303 + $0xb0] sm:$0x1]
        %v5866 = vld [vmem:[%s303 + $0xb4] sm:$0xf]
        %v5867 = vld [vmem:[%s303 + $0xb8] sm:$0xf]
        %v5868 = vld [vmem:[%s303 + $0xbc] sm:$0x1]
        %v5869 = vunpack.c.l.bf16 %v5821
        %v5870 = vunpack.c.l.bf16 %v5822
        %v5871 = vunpack.c.l.bf16 %v5823
        %v5872 = vunpack.c.l.bf16 %v5824
        %v5873 = vunpack.c.l.bf16 %v5825
        %v5874 = vunpack.c.l.bf16 %v5826
        %v5875 = vunpack.c.l.bf16 %v5827
        %v5876 = vunpack.c.l.bf16 %v5828
        %v5877 = vunpack.c.l.bf16 %v5829
        %v5878 = vunpack.c.l.bf16 %v5830
        %v5879 = vunpack.c.l.bf16 %v5831
        %v5880 = vunpack.c.l.bf16 %v5832
        %v5881 = vunpack.c.l.bf16 %v5833
        %v5882 = vunpack.c.l.bf16 %v5834
        %v5883 = vunpack.c.l.bf16 %v5835
        %v5884 = vunpack.c.l.bf16 %v5836
        %v5885 = vunpack.c.l.bf16 %v5837
        %v5886 = vunpack.c.l.bf16 %v5838
        %v5887 = vunpack.c.l.bf16 %v5839
        %v5888 = vunpack.c.l.bf16 %v5840
        %v5889 = vunpack.c.l.bf16 %v5841
        %v5890 = vunpack.c.l.bf16 %v5842
        %v5891 = vunpack.c.l.bf16 %v5843
        %v5892 = vunpack.c.l.bf16 %v5844
        %v5893 = vunpack.c.l.bf16 %v5845
        %v5894 = vunpack.c.l.bf16 %v5846
        %v5895 = vunpack.c.l.bf16 %v5847
        %v5896 = vunpack.c.l.bf16 %v5848
        %v5897 = vunpack.c.l.bf16 %v5849
        %v5898 = vunpack.c.l.bf16 %v5850
        %v5899 = vunpack.c.l.bf16 %v5851
        %v5900 = vunpack.c.l.bf16 %v5852
        %v5901 = vunpack.c.l.bf16 %v5853
        %v5902 = vunpack.c.l.bf16 %v5854
        %v5903 = vunpack.c.l.bf16 %v5855
        %v5904 = vunpack.c.l.bf16 %v5856
        %v5905 = vunpack.c.l.bf16 %v5857
        %v5906 = vunpack.c.l.bf16 %v5858
        %v5907 = vunpack.c.l.bf16 %v5859
        %v5908 = vunpack.c.l.bf16 %v5860
        %v5909 = vunpack.c.l.bf16 %v5861
        %v5910 = vunpack.c.l.bf16 %v5862
        %v5911 = vunpack.c.l.bf16 %v5863
        %v5912 = vunpack.c.l.bf16 %v5864
        %v5913 = vunpack.c.l.bf16 %v5865
        %v5914 = vunpack.c.l.bf16 %v5866
        %v5915 = vunpack.c.l.bf16 %v5867
        %v5916 = vunpack.c.l.bf16 %v5868
        %vm5965 = vcmask 1046528
        %v5966 = vrot.slane %v5869, 1
        %v5967 = vrot.slane %v5870, 1
        %v5968 = vsel %vm5965, %v5966, %v5967
        %v5969 = vrot.slane %v5871, 1
        %v5970 = vsel %vm5965, %v5967, %v5969
        %v5971 = vrot.slane %v5872, 1
        %v5972 = vrot.slane %v5873, 1
        %v5973 = vsel %vm5965, %v5971, %v5972
        %v5974 = vrot.slane %v5874, 1
        %v5975 = vsel %vm5965, %v5972, %v5974
        %v5976 = vrot.slane %v5875, 1
        %v5977 = vrot.slane %v5876, 1
        %v5978 = vsel %vm5965, %v5976, %v5977
        %v5979 = vrot.slane %v5877, 1
        %v5980 = vsel %vm5965, %v5977, %v5979
        %v5981 = vrot.slane %v5878, 1
        %v5982 = vrot.slane %v5879, 1
        %v5983 = vsel %vm5965, %v5981, %v5982
        %v5984 = vrot.slane %v5880, 1
        %v5985 = vsel %vm5965, %v5982, %v5984
        %v5986 = vrot.slane %v5881, 1
        %v5987 = vrot.slane %v5882, 1
        %v5988 = vsel %vm5965, %v5986, %v5987
        %v5989 = vrot.slane %v5883, 1
        %v5990 = vsel %vm5965, %v5987, %v5989
        %v5991 = vrot.slane %v5884, 1
        %v5992 = vrot.slane %v5885, 1
        %v5993 = vsel %vm5965, %v5991, %v5992
        %v5994 = vrot.slane %v5886, 1
        %v5995 = vsel %vm5965, %v5992, %v5994
        %v5996 = vrot.slane %v5887, 1
        %v5997 = vrot.slane %v5888, 1
        %v5998 = vsel %vm5965, %v5996, %v5997
        %v5999 = vrot.slane %v5889, 1
        %v6000 = vsel %vm5965, %v5997, %v5999
        %v6001 = vrot.slane %v5890, 1
        %v6002 = vrot.slane %v5891, 1
        %v6003 = vsel %vm5965, %v6001, %v6002
        %v6004 = vrot.slane %v5892, 1
        %v6005 = vsel %vm5965, %v6002, %v6004
        %v6006 = vrot.slane %v5893, 1
        %v6007 = vrot.slane %v5894, 1
        %v6008 = vsel %vm5965, %v6006, %v6007
        %v6009 = vrot.slane %v5895, 1
        %v6010 = vsel %vm5965, %v6007, %v6009
        %v6011 = vrot.slane %v5896, 1
        %v6012 = vrot.slane %v5897, 1
        %v6013 = vsel %vm5965, %v6011, %v6012
        %v6014 = vrot.slane %v5898, 1
        %v6015 = vsel %vm5965, %v6012, %v6014
        %v6016 = vrot.slane %v5899, 1
        %v6017 = vrot.slane %v5900, 1
        %v6018 = vsel %vm5965, %v6016, %v6017
        %v6019 = vrot.slane %v5901, 1
        %v6020 = vsel %vm5965, %v6017, %v6019
        %v6021 = vrot.slane %v5902, 1
        %v6022 = vrot.slane %v5903, 1
        %v6023 = vsel %vm5965, %v6021, %v6022
        %v6024 = vrot.slane %v5904, 1
        %v6025 = vsel %vm5965, %v6022, %v6024
        %v6026 = vrot.slane %v5905, 1
        %v6027 = vrot.slane %v5906, 1
        %v6028 = vsel %vm5965, %v6026, %v6027
        %v6029 = vrot.slane %v5907, 1
        %v6030 = vsel %vm5965, %v6027, %v6029
        %v6031 = vrot.slane %v5908, 1
        %v6032 = vrot.slane %v5909, 1
        %v6033 = vsel %vm5965, %v6031, %v6032
        %v6034 = vrot.slane %v5910, 1
        %v6035 = vsel %vm5965, %v6032, %v6034
        %v6036 = vrot.slane %v5911, 1
        %v6037 = vrot.slane %v5912, 1
        %v6038 = vsel %vm5965, %v6036, %v6037
        %v6039 = vrot.slane %v5913, 1
        %v6040 = vsel %vm5965, %v6037, %v6039
        %v6041 = vrot.slane %v5914, 1
        %v6042 = vrot.slane %v5915, 1
        %v6043 = vsel %vm5965, %v6041, %v6042
        %v6044 = vrot.slane %v5916, 1
        %v6045 = vsel %vm5965, %v6042, %v6044
        %v6078 = vld [vmem:[%s4] sm:$0x1]
        %v6080 = vlaneseq
        %v6081 = vshrl.u32 %v6080, 7
        %v6082 = vsub.s32 0, %v6081
        %v6083 = vrot.slane %v6078, %v6082
        %v6229 = vunpack.c.l.b16 %v5677
        %v6230 = vunpack.c.l.b16 %v5678
        %v6231 = vunpack.c.l.b16 %v5679
        %v6232 = vunpack.c.l.b16 %v5680
        %v6233 = vunpack.c.l.b16 %v5681
        %v6234 = vunpack.c.l.b16 %v5682
        %v6235 = vunpack.c.l.b16 %v5683
        %v6236 = vunpack.c.l.b16 %v5684
        %v6237 = vunpack.c.l.b16 %v5685
        %v6238 = vunpack.c.l.b16 %v5686
        %v6239 = vunpack.c.l.b16 %v5687
        %v6240 = vunpack.c.l.b16 %v5688
        %v6241 = vunpack.c.l.b16 %v5689
        %v6242 = vunpack.c.l.b16 %v5690
        %v6243 = vunpack.c.l.b16 %v5691
        %v6244 = vunpack.c.l.b16 %v5692
        %v6245 = vunpack.c.l.b16 %v5693
        %v6246 = vunpack.c.l.b16 %v5694
        %v6247 = vunpack.c.l.b16 %v5695
        %v6248 = vunpack.c.l.b16 %v5696
        %v6249 = vunpack.c.l.b16 %v5697
        %v6250 = vunpack.c.l.b16 %v5698
        %v6251 = vunpack.c.l.b16 %v5699
        %v6252 = vunpack.c.l.b16 %v5700
        %v6253 = vunpack.c.l.b16 %v5701
        %v6254 = vunpack.c.l.b16 %v5702
        %v6255 = vunpack.c.l.b16 %v5703
        %v6256 = vunpack.c.l.b16 %v5704
        %v6257 = vunpack.c.l.b16 %v5705
        %v6258 = vunpack.c.l.b16 %v5706
        %v6259 = vunpack.c.l.b16 %v5707
        %v6260 = vunpack.c.l.b16 %v5708
        %v6261 = vunpack.c.l.b16 %v5709
        %v6262 = vunpack.c.l.b16 %v5710
        %v6263 = vunpack.c.l.b16 %v5711
        %v6264 = vunpack.c.l.b16 %v5712
        %v6265 = vunpack.c.l.b16 %v5713
        %v6266 = vunpack.c.l.b16 %v5714
        %v6267 = vunpack.c.l.b16 %v5715
        %v6268 = vunpack.c.l.b16 %v5716
        %v6269 = vunpack.c.l.b16 %v5717
        %v6270 = vunpack.c.l.b16 %v5718
        %v6271 = vunpack.c.l.b16 %v5719
        %v6272 = vunpack.c.l.b16 %v5720
        %v6273 = vunpack.c.l.b16 %v5721
        %v6274 = vunpack.c.l.b16 %v5722
        %v6275 = vunpack.c.l.b16 %v5723
        %v6276 = vunpack.c.l.b16 %v5724
        %v6277 = vunpack.c.l.b16 %v5725
        %v6278 = vunpack.c.l.b16 %v5726
        %v6279 = vunpack.c.l.b16 %v5727
        %v6280 = vunpack.c.l.b16 %v5728
        %v6281 = vunpack.c.l.b16 %v5729
        %v6282 = vunpack.c.l.b16 %v5730
        %v6283 = vunpack.c.l.b16 %v5731
        %v6284 = vunpack.c.l.b16 %v5732
        %v6285 = vunpack.c.l.b16 %v5733
        %v6286 = vunpack.c.l.b16 %v5734
        %v6287 = vunpack.c.l.b16 %v5735
        %v6288 = vunpack.c.l.b16 %v5736
        %v6289 = vunpack.c.l.b16 %v5737
        %v6290 = vunpack.c.l.b16 %v5738
        %v6291 = vunpack.c.l.b16 %v5739
        %v6292 = vunpack.c.l.b16 %v5740
        %v6293 = vunpack.c.l.b16 %v5741
        %v6294 = vunpack.c.l.b16 %v5742
        %v6295 = vunpack.c.l.b16 %v5743
        %v6296 = vunpack.c.l.b16 %v5744
        %v6297 = vunpack.c.l.b16 %v5745
        %v6298 = vunpack.c.l.b16 %v5746
        %v6299 = vunpack.c.l.b16 %v5747
        %v6300 = vunpack.c.l.b16 %v5748
        %v6301 = vunpack.c.l.b16 %v5749
        %v6302 = vunpack.c.l.b16 %v5750
        %v6303 = vunpack.c.l.b16 %v5751
        %v6304 = vunpack.c.l.b16 %v5752
        %v6305 = vunpack.c.l.b16 %v5753
        %v6306 = vunpack.c.l.b16 %v5754
        %v6307 = vunpack.c.l.b16 %v5755
        %v6308 = vunpack.c.l.b16 %v5756
        %v6309 = vunpack.c.l.b16 %v5757
        %v6310 = vunpack.c.l.b16 %v5758
        %v6311 = vunpack.c.l.b16 %v5759
        %v6312 = vunpack.c.l.b16 %v5760
        %v6313 = vunpack.c.l.b16 %v5761
        %v6314 = vunpack.c.l.b16 %v5762
        %v6315 = vunpack.c.l.b16 %v5763
        %v6316 = vunpack.c.l.b16 %v5764
        %v6317 = vunpack.c.l.b16 %v5765
        %v6318 = vunpack.c.l.b16 %v5766
        %v6319 = vunpack.c.l.b16 %v5767
        %v6320 = vunpack.c.l.b16 %v5768
        %v6321 = vunpack.c.l.b16 %v5769
        %v6322 = vunpack.c.l.b16 %v5770
        %v6323 = vunpack.c.l.b16 %v5771
        %v6324 = vunpack.c.l.b16 %v5772
        %v6325 = vunpack.c.l.b16 %v5773
        %v6326 = vunpack.c.l.b16 %v5774
        %v6327 = vunpack.c.l.b16 %v5775
        %v6328 = vunpack.c.l.b16 %v5776
        %v6329 = vunpack.c.l.b16 %v5777
        %v6330 = vunpack.c.l.b16 %v5778
        %v6331 = vunpack.c.l.b16 %v5779
        %v6332 = vunpack.c.l.b16 %v5780
        %v6333 = vunpack.c.l.b16 %v5781
        %v6334 = vunpack.c.l.b16 %v5782
        %v6335 = vunpack.c.l.b16 %v5783
        %v6336 = vunpack.c.l.b16 %v5784
        %v6337 = vunpack.c.l.b16 %v5785
        %v6338 = vunpack.c.l.b16 %v5786
        %v6339 = vunpack.c.l.b16 %v5787
        %v6340 = vunpack.c.l.b16 %v5788
        %v6341 = vunpack.c.l.b16 %v5789
        %v6342 = vunpack.c.l.b16 %v5790
        %v6343 = vunpack.c.l.b16 %v5791
        %v6344 = vunpack.c.l.b16 %v5792
        %v6345 = vunpack.c.l.b16 %v5793
        %v6346 = vunpack.c.l.b16 %v5794
        %v6347 = vunpack.c.l.b16 %v5795
        %v6348 = vunpack.c.l.b16 %v5796
        %v6349 = vunpack.c.l.b16 %v5797
        %v6350 = vunpack.c.l.b16 %v5798
        %v6351 = vunpack.c.l.b16 %v5799
        %v6352 = vunpack.c.l.b16 %v5800
        %v6353 = vunpack.c.l.b16 %v5801
        %v6354 = vunpack.c.l.b16 %v5802
        %v6355 = vunpack.c.l.b16 %v5803
        %v6356 = vunpack.c.l.b16 %v5804
        %v6357 = vunpack.c.l.b16 %v5805
        %v6358 = vunpack.c.l.b16 %v5806
        %v6359 = vunpack.c.l.b16 %v5807
        %v6360 = vunpack.c.l.b16 %v5808
        %v6361 = vunpack.c.l.b16 %v5809
        %v6362 = vunpack.c.l.b16 %v5810
        %v6363 = vunpack.c.l.b16 %v5811
        %v6364 = vunpack.c.l.b16 %v5812
        %v6365 = vunpack.c.l.b16 %v5813
        %v6366 = vunpack.c.l.b16 %v5814
        %v6367 = vunpack.c.l.b16 %v5815
        %v6368 = vunpack.c.l.b16 %v5816
        %v6369 = vunpack.c.l.b16 %v5817
        %v6370 = vunpack.c.l.b16 %v5818
        %v6371 = vunpack.c.l.b16 %v5819
        %v6372 = vunpack.c.l.b16 %v5820
        %v6373 = vpack.c.b16 %v6230, %v6229
        %v6374 = vpack.c.b16 %v6232, %v6231
        %v6375 = vpack.c.b16 %v6234, %v6233
        %v6376 = vpack.c.b16 %v6236, %v6235
        %v6377 = vpack.c.b16 %v6238, %v6237
        %v6378 = vpack.c.b16 %v6240, %v6239
        %v6379 = vpack.c.b16 %v6242, %v6241
        %v6380 = vpack.c.b16 %v6244, %v6243
        %v6381 = vpack.c.b16 %v6246, %v6245
        %v6382 = vpack.c.b16 %v6248, %v6247
        %v6383 = vpack.c.b16 %v6250, %v6249
        %v6384 = vpack.c.b16 %v6252, %v6251
        %v6385 = vpack.c.b16 %v6254, %v6253
        %v6386 = vpack.c.b16 %v6256, %v6255
        %v6387 = vpack.c.b16 %v6258, %v6257
        %v6388 = vpack.c.b16 %v6260, %v6259
        %v6389 = vpack.c.b16 %v6262, %v6261
        %v6390 = vpack.c.b16 %v6264, %v6263
        %v6391 = vpack.c.b16 %v6266, %v6265
        %v6392 = vpack.c.b16 %v6268, %v6267
        %v6393 = vpack.c.b16 %v6270, %v6269
        %v6394 = vpack.c.b16 %v6272, %v6271
        %v6395 = vpack.c.b16 %v6274, %v6273
        %v6396 = vpack.c.b16 %v6276, %v6275
        %v6397 = vpack.c.b16 %v6278, %v6277
        %v6398 = vpack.c.b16 %v6280, %v6279
        %v6399 = vpack.c.b16 %v6282, %v6281
        %v6400 = vpack.c.b16 %v6284, %v6283
        %v6401 = vpack.c.b16 %v6286, %v6285
        %v6402 = vpack.c.b16 %v6288, %v6287
        %v6403 = vpack.c.b16 %v6290, %v6289
        %v6404 = vpack.c.b16 %v6292, %v6291
        %v6405 = vpack.c.b16 %v6294, %v6293
        %v6406 = vpack.c.b16 %v6296, %v6295
        %v6407 = vpack.c.b16 %v6298, %v6297
        %v6408 = vpack.c.b16 %v6300, %v6299
        %v6409 = vpack.c.b16 %v6302, %v6301
        %v6410 = vpack.c.b16 %v6304, %v6303
        %v6411 = vpack.c.b16 %v6306, %v6305
        %v6412 = vpack.c.b16 %v6308, %v6307
        %v6413 = vpack.c.b16 %v6310, %v6309
        %v6414 = vpack.c.b16 %v6312, %v6311
        %v6415 = vpack.c.b16 %v6314, %v6313
        %v6416 = vpack.c.b16 %v6316, %v6315
        %v6417 = vpack.c.b16 %v6318, %v6317
        %v6418 = vpack.c.b16 %v6320, %v6319
        %v6419 = vpack.c.b16 %v6322, %v6321
        %v6420 = vpack.c.b16 %v6324, %v6323
        %v6421 = vpack.c.b16 %v6326, %v6325
        %v6422 = vpack.c.b16 %v6328, %v6327
        %v6423 = vpack.c.b16 %v6330, %v6329
        %v6424 = vpack.c.b16 %v6332, %v6331
        %v6425 = vpack.c.b16 %v6334, %v6333
        %v6426 = vpack.c.b16 %v6336, %v6335
        %v6427 = vpack.c.b16 %v6338, %v6337
        %v6428 = vpack.c.b16 %v6340, %v6339
        %v6429 = vpack.c.b16 %v6342, %v6341
        %v6430 = vpack.c.b16 %v6344, %v6343
        %v6431 = vpack.c.b16 %v6346, %v6345
        %v6432 = vpack.c.b16 %v6348, %v6347
        %v6433 = vpack.c.b16 %v6350, %v6349
        %v6434 = vpack.c.b16 %v6352, %v6351
        %v6435 = vpack.c.b16 %v6354, %v6353
        %v6436 = vpack.c.b16 %v6356, %v6355
        %v6437 = vpack.c.b16 %v6358, %v6357
        %v6438 = vpack.c.b16 %v6360, %v6359
        %v6439 = vpack.c.b16 %v6362, %v6361
        %v6440 = vpack.c.b16 %v6364, %v6363
        %v6441 = vpack.c.b16 %v6366, %v6365
        %v6442 = vpack.c.b16 %v6368, %v6367
        %v6443 = vpack.c.b16 %v6370, %v6369
        %v6444 = vpack.c.b16 %v6372, %v6371
        %6517 = vmatprep.subr.bf16.mxu0 0
        %6518 = vmatpush1.bf16.msra.mxu0 %v6373
        %6519 = vmatprep.subr.bf16.mxu0 0
        %6520 = vmatpush1.bf16.msra.mxu0 %v6374
        %6521 = vmatprep.subr.bf16.mxu0 0
        %6522 = vmatpush1.bf16.msra.mxu0 %v6375
        %6523 = vmatprep.subr.bf16.mxu0 0
        %6524 = vmatpush1.bf16.msra.mxu0 %v6376
        %6525 = vmatprep.subr.bf16.mxu0 0
        %6526 = vmatpush1.bf16.msra.mxu0 %v6377
        %6527 = vmatprep.subr.bf16.mxu0 0
        %6528 = vmatpush1.bf16.msra.mxu0 %v6378
        %6529 = vmatprep.subr.bf16.mxu0 0
        %6530 = vmatpush1.bf16.msra.mxu0 %v6379
        %6531 = vmatprep.subr.bf16.mxu0 0
        %6532 = vmatpush1.bf16.msra.mxu0 %v6380
        %6533 = vmatprep.subr.bf16.mxu0 0
        %6534 = vmatpush1.bf16.msra.mxu0 %v6381
        %6535 = vmatprep.subr.bf16.mxu0 0
        %6536 = vmatpush1.bf16.msra.mxu0 %v6382
        %6537 = vmatprep.subr.bf16.mxu0 0
        %6538 = vmatpush1.bf16.msra.mxu0 %v6383
        %6539 = vmatprep.subr.bf16.mxu0 0
        %6540 = vmatpush1.bf16.msra.mxu0 %v6384
        %6541 = vmatprep.subr.bf16.mxu0 0
        %6542 = vmatpush1.bf16.msra.mxu0 %v6385
        %6543 = vmatprep.subr.bf16.mxu0 0
        %6544 = vmatpush1.bf16.msra.mxu0 %v6386
        %6545 = vmatprep.subr.bf16.mxu0 0
        %6546 = vmatpush1.bf16.msra.mxu0 %v6387
        %6547 = vmatprep.subr.bf16.mxu0 0
        %6548 = vmatpush1.bf16.msra.mxu0 %v6388
        %6549 = vmatprep.mubr.bf16.mxu0 %v4063
        %6550 = vmatmul.mubr.bf16.gmra.mrb[0].mxu0 %v4051
        %v6551 = vpop.f32.mrb[0].mxu0
        %v6552 = vadd.f32 %v6083, %v6551
        %v6553 = vpop.f32.mrb[0].mxu0
        %v6554 = vpop.f32.mrb[0].mxu0
        %v6555 = vadd.f32 %v6083, %v6554
        %v6556 = vpop.f32.mrb[0].mxu0
        %6557 = vmatprep.mubr.bf16.mxu0 %v4156
        %6558 = vmatmul.mubr.bf16.gmra.mrb[0].mxu0 %v4144
        %v6559 = vpop.f32.mrb[0].mxu0
        %v6560 = vadd.f32 %v6083, %v6559
        %v6561 = vpop.f32.mrb[0].mxu0
        %v6562 = vpop.f32.mrb[0].mxu0
        %v6563 = vadd.f32 %v6083, %v6562
        %v6564 = vpop.f32.mrb[0].mxu0
        %6565 = vmatprep.mubr.bf16.mxu0 %v4249
        %6566 = vmatmul.mubr.bf16.gmra.mrb[0].mxu0 %v4237
        %v6567 = vpop.f32.mrb[0].mxu0
        %v6568 = vadd.f32 %v6083, %v6567
        %v6569 = vpop.f32.mrb[0].mxu0
        %v6570 = vpop.f32.mrb[0].mxu0
        %v6571 = vadd.f32 %v6083, %v6570
        %v6572 = vpop.f32.mrb[0].mxu0
        %6573 = vmatprep.mubr.bf16.mxu0 %v4342
        %6574 = vmatmul.mubr.bf16.gmra.mrb[0].mxu0 %v4330
        %v6575 = vpop.f32.mrb[0].mxu0
        %v6576 = vadd.f32 %v6083, %v6575
        %v6577 = vpop.f32.mrb[0].mxu0
        %v6578 = vpop.f32.mrb[0].mxu0
        %v6579 = vadd.f32 %v6083, %v6578
        %v6580 = vpop.f32.mrb[0].mxu0
        %6581 = vmatprep.mubr.bf16.mxu0 %v4435
        %6582 = vmatmul.mubr.bf16.gmra.mrb[0].mxu0 %v4423
        %v6583 = vpop.f32.mrb[0].mxu0
        %v6584 = vadd.f32 %v6083, %v6583
        %v6585 = vpop.f32.mrb[0].mxu0
        %v6586 = vpop.f32.mrb[0].mxu0
        %v6587 = vadd.f32 %v6083, %v6586
        %v6588 = vpop.f32.mrb[0].mxu0
        %6589 = vmatprep.mubr.bf16.mxu0 %v4528
        %6590 = vmatmul.mubr.bf16.gmra.mrb[0].mxu0 %v4516
        %v6591 = vpop.f32.mrb[0].mxu0
        %v6592 = vadd.f32 %v6083, %v6591
        %v6593 = vpop.f32.mrb[0].mxu0
        %v6594 = vpop.f32.mrb[0].mxu0
        %v6595 = vadd.f32 %v6083, %v6594
        %v6596 = vpop.f32.mrb[0].mxu0
        %6597 = vmatprep.mubr.bf16.mxu0 %v4621
        %6598 = vmatmul.mubr.bf16.gmra.mrb[0].mxu0 %v4609
        %v6599 = vpop.f32.mrb[0].mxu0
        %v6600 = vadd.f32 %v6083, %v6599
        %v6601 = vpop.f32.mrb[0].mxu0
        %v6602 = vpop.f32.mrb[0].mxu0
        %v6603 = vadd.f32 %v6083, %v6602
        %v6604 = vpop.f32.mrb[0].mxu0
        %6605 = vmatprep.mubr.bf16.mxu0 %v4714
        %6606 = vmatmul.mubr.bf16.gmra.mrb[0].mxu0 %v4702
        %v6607 = vpop.f32.mrb[0].mxu0
        %v6608 = vadd.f32 %v6083, %v6607
        %v6609 = vpop.f32.mrb[0].mxu0
        %v6610 = vpop.f32.mrb[0].mxu0
        %v6611 = vadd.f32 %v6083, %v6610
        %v6612 = vpop.f32.mrb[0].mxu0
        %6613 = vmatprep.mubr.bf16.mxu0 %v4807
        %6614 = vmatmul.mubr.bf16.gmra.mrb[0].mxu0 %v4795
        %v6615 = vpop.f32.mrb[0].mxu0
        %v6616 = vadd.f32 %v6083, %v6615
        %v6617 = vpop.f32.mrb[0].mxu0
        %v6618 = vpop.f32.mrb[0].mxu0
        %v6619 = vadd.f32 %v6083, %v6618
        %v6620 = vpop.f32.mrb[0].mxu0
        %6621 = vmatprep.mubr.bf16.mxu0 %v4900
        %6622 = vmatmul.mubr.bf16.gmra.mrb[0].mxu0 %v4888
        %v6623 = vpop.f32.mrb[0].mxu0
        %v6624 = vadd.f32 %v6083, %v6623
        %v6625 = vpop.f32.mrb[0].mxu0
        %v6626 = vpop.f32.mrb[0].mxu0
        %v6627 = vadd.f32 %v6083, %v6626
        %v6628 = vpop.f32.mrb[0].mxu0
        %6629 = vmatprep.mubr.bf16.mxu0 %v4993
        %6630 = vmatmul.mubr.bf16.gmra.mrb[0].mxu0 %v4981
        %v6631 = vpop.f32.mrb[0].mxu0
        %v6632 = vadd.f32 %v6083, %v6631
        %v6633 = vpop.f32.mrb[0].mxu0
        %v6634 = vpop.f32.mrb[0].mxu0
        %v6635 = vadd.f32 %v6083, %v6634
        %v6636 = vpop.f32.mrb[0].mxu0
        %6637 = vmatprep.mubr.bf16.mxu0 %v5086
        %6638 = vmatmul.mubr.bf16.gmra.mrb[0].mxu0 %v5074
        %v6639 = vpop.f32.mrb[0].mxu0
        %v6640 = vadd.f32 %v6083, %v6639
        %v6641 = vpop.f32.mrb[0].mxu0
        %v6642 = vpop.f32.mrb[0].mxu0
        %v6643 = vadd.f32 %v6083, %v6642
        %v6644 = vpop.f32.mrb[0].mxu0
        %6645 = vmatprep.mubr.bf16.mxu0 %v5179
        %6646 = vmatmul.mubr.bf16.gmra.mrb[0].mxu0 %v5167
        %v6647 = vpop.f32.mrb[0].mxu0
        %v6648 = vadd.f32 %v6083, %v6647
        %v6649 = vpop.f32.mrb[0].mxu0
        %v6650 = vpop.f32.mrb[0].mxu0
        %v6651 = vadd.f32 %v6083, %v6650
        %v6652 = vpop.f32.mrb[0].mxu0
        %6653 = vmatprep.mubr.bf16.mxu0 %v5272
        %6654 = vmatmul.mubr.bf16.gmra.mrb[0].mxu0 %v5260
        %v6655 = vpop.f32.mrb[0].mxu0
        %v6656 = vadd.f32 %v6083, %v6655
        %v6657 = vpop.f32.mrb[0].mxu0
        %v6658 = vpop.f32.mrb[0].mxu0
        %v6659 = vadd.f32 %v6083, %v6658
        %v6660 = vpop.f32.mrb[0].mxu0
        %6661 = vmatprep.mubr.bf16.mxu0 %v5365
        %6662 = vmatmul.mubr.bf16.gmra.mrb[0].mxu0 %v5353
        %v6663 = vpop.f32.mrb[0].mxu0
        %v6664 = vadd.f32 %v6083, %v6663
        %v6665 = vpop.f32.mrb[0].mxu0
        %v6666 = vpop.f32.mrb[0].mxu0
        %v6667 = vadd.f32 %v6083, %v6666
        %v6668 = vpop.f32.mrb[0].mxu0
        %6669 = vmatprep.mubr.bf16.mxu0 %v5458
        %6670 = vmatmul.mubr.bf16.gmra.mrb[0].mxu0 %v5446
        %v6671 = vpop.f32.mrb[0].mxu0
        %v6672 = vadd.f32 %v6083, %v6671
        %v6673 = vpop.f32.mrb[0].mxu0
        %v6674 = vpop.f32.mrb[0].mxu0
        %v6675 = vadd.f32 %v6083, %v6674
        %v6676 = vpop.f32.mrb[0].mxu0
        %6677 = vdwg.mxu0
        %6678 = vmatprep.subr.bf16.mxu0 0
        %6679 = vmatpush1.bf16.msra.mxu0 %v6389
        %6680 = vmatprep.subr.bf16.mxu0 0
        %6681 = vmatpush1.bf16.msra.mxu0 %v6390
        %6682 = vmatprep.subr.bf16.mxu0 0
        %6683 = vmatpush1.bf16.msra.mxu0 %v6391
        %6684 = vmatprep.subr.bf16.mxu0 0
        %6685 = vmatpush1.bf16.msra.mxu0 %v6392
        %6686 = vmatprep.subr.bf16.mxu0 0
        %6687 = vmatpush1.bf16.msra.mxu0 %v6393
        %6688 = vmatprep.subr.bf16.mxu0 0
        %6689 = vmatpush1.bf16.msra.mxu0 %v6394
        %6690 = vmatprep.subr.bf16.mxu0 0
        %6691 = vmatpush1.bf16.msra.mxu0 %v6395
        %6692 = vmatprep.subr.bf16.mxu0 0
        %6693 = vmatpush1.bf16.msra.mxu0 %v6396
        %6694 = vmatprep.subr.bf16.mxu0 0
        %6695 = vmatpush1.bf16.msra.mxu0 %v6397
        %6696 = vmatprep.subr.bf16.mxu0 0
        %6697 = vmatpush1.bf16.msra.mxu0 %v6398
        %6698 = vmatprep.subr.bf16.mxu0 0
        %6699 = vmatpush1.bf16.msra.mxu0 %v6399
        %6700 = vmatprep.subr.bf16.mxu0 0
        %6701 = vmatpush1.bf16.msra.mxu0 %v6400
        %6702 = vmatprep.subr.bf16.mxu0 0
        %6703 = vmatpush1.bf16.msra.mxu0 %v6401
        %6704 = vmatprep.subr.bf16.mxu0 0
        %6705 = vmatpush1.bf16.msra.mxu0 %v6402
        %6706 = vmatprep.subr.bf16.mxu0 0
        %6707 = vmatpush1.bf16.msra.mxu0 %v6403
        %6708 = vmatprep.subr.bf16.mxu0 0
        %6709 = vmatpush1.bf16.msra.mxu0 %v6404
        %6710 = vmatprep.mubr.bf16.mxu0 %v4082
        %6711 = vmatmul.mubr.bf16.gmra.mrb[0].mxu0 %v4075
        %v6712 = vpop.f32.mrb[0].mxu0
        %v6713 = vadd.f32 %v6552, %v6712
        %v6714 = vpop.f32.mrb[0].mxu0
        %v6715 = vpop.f32.mrb[0].mxu0
        %v6716 = vadd.f32 %v6555, %v6715
        %v6717 = vpop.f32.mrb[0].mxu0
        %6718 = vmatprep.mubr.bf16.mxu0 %v4175
        %6719 = vmatmul.mubr.bf16.gmra.mrb[0].mxu0 %v4168
        %v6720 = vpop.f32.mrb[0].mxu0
        %v6721 = vadd.f32 %v6560, %v6720
        %v6722 = vpop.f32.mrb[0].mxu0
        %v6723 = vpop.f32.mrb[0].mxu0
        %v6724 = vadd.f32 %v6563, %v6723
        %v6725 = vpop.f32.mrb[0].mxu0
        %6726 = vmatprep.mubr.bf16.mxu0 %v4268
        %6727 = vmatmul.mubr.bf16.gmra.mrb[0].mxu0 %v4261
        %v6728 = vpop.f32.mrb[0].mxu0
        %v6729 = vadd.f32 %v6568, %v6728
        %v6730 = vpop.f32.mrb[0].mxu0
        %v6731 = vpop.f32.mrb[0].mxu0
        %v6732 = vadd.f32 %v6571, %v6731
        %v6733 = vpop.f32.mrb[0].mxu0
        %6734 = vmatprep.mubr.bf16.mxu0 %v4361
        %6735 = vmatmul.mubr.bf16.gmra.mrb[0].mxu0 %v4354
        %v6736 = vpop.f32.mrb[0].mxu0
        %v6737 = vadd.f32 %v6576, %v6736
        %v6738 = vpop.f32.mrb[0].mxu0
        %v6739 = vpop.f32.mrb[0].mxu0
        %v6740 = vadd.f32 %v6579, %v6739
        %v6741 = vpop.f32.mrb[0].mxu0
        %6742 = vmatprep.mubr.bf16.mxu0 %v4454
        %6743 = vmatmul.mubr.bf16.gmra.mrb[0].mxu0 %v4447
        %v6744 = vpop.f32.mrb[0].mxu0
        %v6745 = vadd.f32 %v6584, %v6744
        %v6746 = vpop.f32.mrb[0].mxu0
        %v6747 = vpop.f32.mrb[0].mxu0
        %v6748 = vadd.f32 %v6587, %v6747
        %v6749 = vpop.f32.mrb[0].mxu0
        %6750 = vmatprep.mubr.bf16.mxu0 %v4547
        %6751 = vmatmul.mubr.bf16.gmra.mrb[0].mxu0 %v4540
        %v6752 = vpop.f32.mrb[0].mxu0
        %v6753 = vadd.f32 %v6592, %v6752
        %v6754 = vpop.f32.mrb[0].mxu0
        %v6755 = vpop.f32.mrb[0].mxu0
        %v6756 = vadd.f32 %v6595, %v6755
        %v6757 = vpop.f32.mrb[0].mxu0
        %6758 = vmatprep.mubr.bf16.mxu0 %v4640
        %6759 = vmatmul.mubr.bf16.gmra.mrb[0].mxu0 %v4633
        %v6760 = vpop.f32.mrb[0].mxu0
        %v6761 = vadd.f32 %v6600, %v6760
        %v6762 = vpop.f32.mrb[0].mxu0
        %v6763 = vpop.f32.mrb[0].mxu0
        %v6764 = vadd.f32 %v6603, %v6763
        %v6765 = vpop.f32.mrb[0].mxu0
        %6766 = vmatprep.mubr.bf16.mxu0 %v4733
        %6767 = vmatmul.mubr.bf16.gmra.mrb[0].mxu0 %v4726
        %v6768 = vpop.f32.mrb[0].mxu0
        %v6769 = vadd.f32 %v6608, %v6768
        %v6770 = vpop.f32.mrb[0].mxu0
        %v6771 = vpop.f32.mrb[0].mxu0
        %v6772 = vadd.f32 %v6611, %v6771
        %v6773 = vpop.f32.mrb[0].mxu0
        %6774 = vmatprep.mubr.bf16.mxu0 %v4826
        %6775 = vmatmul.mubr.bf16.gmra.mrb[0].mxu0 %v4819
        %v6776 = vpop.f32.mrb[0].mxu0
        %v6777 = vadd.f32 %v6616, %v6776
        %v6778 = vpop.f32.mrb[0].mxu0
        %v6779 = vpop.f32.mrb[0].mxu0
        %v6780 = vadd.f32 %v6619, %v6779
        %v6781 = vpop.f32.mrb[0].mxu0
        %6782 = vmatprep.mubr.bf16.mxu0 %v4919
        %6783 = vmatmul.mubr.bf16.gmra.mrb[0].mxu0 %v4912
        %v6784 = vpop.f32.mrb[0].mxu0
        %v6785 = vadd.f32 %v6624, %v6784
        %v6786 = vpop.f32.mrb[0].mxu0
        %v6787 = vpop.f32.mrb[0].mxu0
        %v6788 = vadd.f32 %v6627, %v6787
        %v6789 = vpop.f32.mrb[0].mxu0
        %6790 = vmatprep.mubr.bf16.mxu0 %v5012
        %6791 = vmatmul.mubr.bf16.gmra.mrb[0].mxu0 %v5005
        %v6792 = vpop.f32.mrb[0].mxu0
        %v6793 = vadd.f32 %v6632, %v6792
        %v6794 = vpop.f32.mrb[0].mxu0
        %v6795 = vpop.f32.mrb[0].mxu0
        %v6796 = vadd.f32 %v6635, %v6795
        %v6797 = vpop.f32.mrb[0].mxu0
        %6798 = vmatprep.mubr.bf16.mxu0 %v5105
        %6799 = vmatmul.mubr.bf16.gmra.mrb[0].mxu0 %v5098
        %v6800 = vpop.f32.mrb[0].mxu0
        %v6801 = vadd.f32 %v6640, %v6800
        %v6802 = vpop.f32.mrb[0].mxu0
        %v6803 = vpop.f32.mrb[0].mxu0
        %v6804 = vadd.f32 %v6643, %v6803
        %v6805 = vpop.f32.mrb[0].mxu0
        %6806 = vmatprep.mubr.bf16.mxu0 %v5198
        %6807 = vmatmul.mubr.bf16.gmra.mrb[0].mxu0 %v5191
        %v6808 = vpop.f32.mrb[0].mxu0
        %v6809 = vadd.f32 %v6648, %v6808
        %v6810 = vpop.f32.mrb[0].mxu0
        %v6811 = vpop.f32.mrb[0].mxu0
        %v6812 = vadd.f32 %v6651, %v6811
        %v6813 = vpop.f32.mrb[0].mxu0
        %6814 = vmatprep.mubr.bf16.mxu0 %v5291
        %6815 = vmatmul.mubr.bf16.gmra.mrb[0].mxu0 %v5284
        %v6816 = vpop.f32.mrb[0].mxu0
        %v6817 = vadd.f32 %v6656, %v6816
        %v6818 = vpop.f32.mrb[0].mxu0
        %v6819 = vpop.f32.mrb[0].mxu0
        %v6820 = vadd.f32 %v6659, %v6819
        %v6821 = vpop.f32.mrb[0].mxu0
        %6822 = vmatprep.mubr.bf16.mxu0 %v5384
        %6823 = vmatmul.mubr.bf16.gmra.mrb[0].mxu0 %v5377
        %v6824 = vpop.f32.mrb[0].mxu0
        %v6825 = vadd.f32 %v6664, %v6824
        %v6826 = vpop.f32.mrb[0].mxu0
        %v6827 = vpop.f32.mrb[0].mxu0
        %v6828 = vadd.f32 %v6667, %v6827
        %v6829 = vpop.f32.mrb[0].mxu0
        %6830 = vmatprep.mubr.bf16.mxu0 %v5477
        %6831 = vmatmul.mubr.bf16.gmra.mrb[0].mxu0 %v5470
        %v6832 = vpop.f32.mrb[0].mxu0
        %v6833 = vadd.f32 %v6672, %v6832
        %v6834 = vpop.f32.mrb[0].mxu0
        %v6835 = vpop.f32.mrb[0].mxu0
        %v6836 = vadd.f32 %v6675, %v6835
        %v6837 = vpop.f32.mrb[0].mxu0
        %6838 = vdwg.mxu0
        %6839 = vmatprep.subr.bf16.mxu0 0
        %6840 = vmatpush1.bf16.msra.mxu0 %v6405
        %6841 = vmatprep.subr.bf16.mxu0 0
        %6842 = vmatpush1.bf16.msra.mxu0 %v6406
        %6843 = vmatprep.subr.bf16.mxu0 0
        %6844 = vmatpush1.bf16.msra.mxu0 %v6407
        %6845 = vmatprep.subr.bf16.mxu0 0
        %6846 = vmatpush1.bf16.msra.mxu0 %v6408
        %6847 = vmatprep.subr.bf16.mxu0 0
        %6848 = vmatpush1.bf16.msra.mxu0 %v6409
        %6849 = vmatprep.subr.bf16.mxu0 0
        %6850 = vmatpush1.bf16.msra.mxu0 %v6410
        %6851 = vmatprep.subr.bf16.mxu0 0
        %6852 = vmatpush1.bf16.msra.mxu0 %v6411
        %6853 = vmatprep.subr.bf16.mxu0 0
        %6854 = vmatpush1.bf16.msra.mxu0 %v6412
        %6855 = vmatprep.subr.bf16.mxu0 0
        %6856 = vmatpush1.bf16.msra.mxu0 %v6413
        %6857 = vmatprep.subr.bf16.mxu0 0
        %6858 = vmatpush1.bf16.msra.mxu0 %v6414
        %6859 = vmatprep.subr.bf16.mxu0 0
        %6860 = vmatpush1.bf16.msra.mxu0 %v6415
        %6861 = vmatprep.subr.bf16.mxu0 0
        %6862 = vmatpush1.bf16.msra.mxu0 %v6416
        %6863 = vmatprep.subr.bf16.mxu0 0
        %6864 = vmatpush1.bf16.msra.mxu0 %v6417
        %6865 = vmatprep.subr.bf16.mxu0 0
        %6866 = vmatpush1.bf16.msra.mxu0 %v6418
        %6867 = vmatprep.subr.bf16.mxu0 0
        %6868 = vmatpush1.bf16.msra.mxu0 %v6419
        %6869 = vmatprep.subr.bf16.mxu0 0
        %6870 = vmatpush1.bf16.msra.mxu0 %v6420
        %6871 = vmatprep.mubr.bf16.mxu0 %v4106
        %6872 = vmatmul.mubr.bf16.gmra.mrb[0].mxu0 %v4094
        %v6873 = vpop.f32.mrb[0].mxu0
        %v6874 = vadd.f32 %v6713, %v6873
        %v6875 = vpop.f32.mrb[0].mxu0
        %v6876 = vpop.f32.mrb[0].mxu0
        %v6877 = vadd.f32 %v6716, %v6876
        %v6878 = vpop.f32.mrb[0].mxu0
        %6879 = vmatprep.mubr.bf16.mxu0 %v4199
        %6880 = vmatmul.mubr.bf16.gmra.mrb[0].mxu0 %v4187
        %v6881 = vpop.f32.mrb[0].mxu0
        %v6882 = vadd.f32 %v6721, %v6881
        %v6883 = vpop.f32.mrb[0].mxu0
        %v6884 = vpop.f32.mrb[0].mxu0
        %v6885 = vadd.f32 %v6724, %v6884
        %v6886 = vpop.f32.mrb[0].mxu0
        %6887 = vmatprep.mubr.bf16.mxu0 %v4292
        %6888 = vmatmul.mubr.bf16.gmra.mrb[0].mxu0 %v4280
        %v6889 = vpop.f32.mrb[0].mxu0
        %v6890 = vadd.f32 %v6729, %v6889
        %v6891 = vpop.f32.mrb[0].mxu0
        %v6892 = vpop.f32.mrb[0].mxu0
        %v6893 = vadd.f32 %v6732, %v6892
        %v6894 = vpop.f32.mrb[0].mxu0
        %6895 = vmatprep.mubr.bf16.mxu0 %v4385
        %6896 = vmatmul.mubr.bf16.gmra.mrb[0].mxu0 %v4373
        %v6897 = vpop.f32.mrb[0].mxu0
        %v6898 = vadd.f32 %v6737, %v6897
        %v6899 = vpop.f32.mrb[0].mxu0
        %v6900 = vpop.f32.mrb[0].mxu0
        %v6901 = vadd.f32 %v6740, %v6900
        %v6902 = vpop.f32.mrb[0].mxu0
        %6903 = vmatprep.mubr.bf16.mxu0 %v4478
        %6904 = vmatmul.mubr.bf16.gmra.mrb[0].mxu0 %v4466
        %v6905 = vpop.f32.mrb[0].mxu0
        %v6906 = vadd.f32 %v6745, %v6905
        %v6907 = vpop.f32.mrb[0].mxu0
        %v6908 = vpop.f32.mrb[0].mxu0
        %v6909 = vadd.f32 %v6748, %v6908
        %v6910 = vpop.f32.mrb[0].mxu0
        %6911 = vmatprep.mubr.bf16.mxu0 %v4571
        %6912 = vmatmul.mubr.bf16.gmra.mrb[0].mxu0 %v4559
        %v6913 = vpop.f32.mrb[0].mxu0
        %v6914 = vadd.f32 %v6753, %v6913
        %v6915 = vpop.f32.mrb[0].mxu0
        %v6916 = vpop.f32.mrb[0].mxu0
        %v6917 = vadd.f32 %v6756, %v6916
        %v6918 = vpop.f32.mrb[0].mxu0
        %6919 = vmatprep.mubr.bf16.mxu0 %v4664
        %6920 = vmatmul.mubr.bf16.gmra.mrb[0].mxu0 %v4652
        %v6921 = vpop.f32.mrb[0].mxu0
        %v6922 = vadd.f32 %v6761, %v6921
        %v6923 = vpop.f32.mrb[0].mxu0
        %v6924 = vpop.f32.mrb[0].mxu0
        %v6925 = vadd.f32 %v6764, %v6924
        %v6926 = vpop.f32.mrb[0].mxu0
        %6927 = vmatprep.mubr.bf16.mxu0 %v4757
        %6928 = vmatmul.mubr.bf16.gmra.mrb[0].mxu0 %v4745
        %v6929 = vpop.f32.mrb[0].mxu0
        %v6930 = vadd.f32 %v6769, %v6929
        %v6931 = vpop.f32.mrb[0].mxu0
        %v6932 = vpop.f32.mrb[0].mxu0
        %v6933 = vadd.f32 %v6772, %v6932
        %v6934 = vpop.f32.mrb[0].mxu0
        %6935 = vmatprep.mubr.bf16.mxu0 %v4850
        %6936 = vmatmul.mubr.bf16.gmra.mrb[0].mxu0 %v4838
        %v6937 = vpop.f32.mrb[0].mxu0
        %v6938 = vadd.f32 %v6777, %v6937
        %v6939 = vpop.f32.mrb[0].mxu0
        %v6940 = vpop.f32.mrb[0].mxu0
        %v6941 = vadd.f32 %v6780, %v6940
        %v6942 = vpop.f32.mrb[0].mxu0
        %6943 = vmatprep.mubr.bf16.mxu0 %v4943
        %6944 = vmatmul.mubr.bf16.gmra.mrb[0].mxu0 %v4931
        %v6945 = vpop.f32.mrb[0].mxu0
        %v6946 = vadd.f32 %v6785, %v6945
        %v6947 = vpop.f32.mrb[0].mxu0
        %v6948 = vpop.f32.mrb[0].mxu0
        %v6949 = vadd.f32 %v6788, %v6948
        %v6950 = vpop.f32.mrb[0].mxu0
        %6951 = vmatprep.mubr.bf16.mxu0 %v5036
        %6952 = vmatmul.mubr.bf16.gmra.mrb[0].mxu0 %v5024
        %v6953 = vpop.f32.mrb[0].mxu0
        %v6954 = vadd.f32 %v6793, %v6953
        %v6955 = vpop.f32.mrb[0].mxu0
        %v6956 = vpop.f32.mrb[0].mxu0
        %v6957 = vadd.f32 %v6796, %v6956
        %v6958 = vpop.f32.mrb[0].mxu0
        %6959 = vmatprep.mubr.bf16.mxu0 %v5129
        %6960 = vmatmul.mubr.bf16.gmra.mrb[0].mxu0 %v5117
        %v6961 = vpop.f32.mrb[0].mxu0
        %v6962 = vadd.f32 %v6801, %v6961
        %v6963 = vpop.f32.mrb[0].mxu0
        %v6964 = vpop.f32.mrb[0].mxu0
        %v6965 = vadd.f32 %v6804, %v6964
        %v6966 = vpop.f32.mrb[0].mxu0
        %6967 = vmatprep.mubr.bf16.mxu0 %v5222
        %6968 = vmatmul.mubr.bf16.gmra.mrb[0].mxu0 %v5210
        %v6969 = vpop.f32.mrb[0].mxu0
        %v6970 = vadd.f32 %v6809, %v6969
        %v6971 = vpop.f32.mrb[0].mxu0
        %v6972 = vpop.f32.mrb[0].mxu0
        %v6973 = vadd.f32 %v6812, %v6972
        %v6974 = vpop.f32.mrb[0].mxu0
        %6975 = vmatprep.mubr.bf16.mxu0 %v5315
        %6976 = vmatmul.mubr.bf16.gmra.mrb[0].mxu0 %v5303
        %v6977 = vpop.f32.mrb[0].mxu0
        %v6978 = vadd.f32 %v6817, %v6977
        %v6979 = vpop.f32.mrb[0].mxu0
        %v6980 = vpop.f32.mrb[0].mxu0
        %v6981 = vadd.f32 %v6820, %v6980
        %v6982 = vpop.f32.mrb[0].mxu0
        %6983 = vmatprep.mubr.bf16.mxu0 %v5408
        %6984 = vmatmul.mubr.bf16.gmra.mrb[0].mxu0 %v5396
        %v6985 = vpop.f32.mrb[0].mxu0
        %v6986 = vadd.f32 %v6825, %v6985
        %v6987 = vpop.f32.mrb[0].mxu0
        %v6988 = vpop.f32.mrb[0].mxu0
        %v6989 = vadd.f32 %v6828, %v6988
        %v6990 = vpop.f32.mrb[0].mxu0
        %6991 = vmatprep.mubr.bf16.mxu0 %v5501
        %6992 = vmatmul.mubr.bf16.gmra.mrb[0].mxu0 %v5489
        %v6993 = vpop.f32.mrb[0].mxu0
        %v6994 = vadd.f32 %v6833, %v6993
        %v6995 = vpop.f32.mrb[0].mxu0
        %v6996 = vpop.f32.mrb[0].mxu0
        %v6997 = vadd.f32 %v6836, %v6996
        %v6998 = vpop.f32.mrb[0].mxu0
        %6999 = vdwg.mxu0
        %7000 = vmatprep.subr.bf16.mxu0 0
        %7001 = vmatpush1.bf16.msra.mxu0 %v6421
        %7002 = vmatprep.subr.bf16.mxu0 0
        %7003 = vmatpush1.bf16.msra.mxu0 %v6422
        %7004 = vmatprep.subr.bf16.mxu0 0
        %7005 = vmatpush1.bf16.msra.mxu0 %v6423
        %7006 = vmatprep.subr.bf16.mxu0 0
        %7007 = vmatpush1.bf16.msra.mxu0 %v6424
        %7008 = vmatprep.subr.bf16.mxu0 0
        %7009 = vmatpush1.bf16.msra.mxu0 %v6425
        %7010 = vmatprep.subr.bf16.mxu0 0
        %7011 = vmatpush1.bf16.msra.mxu0 %v6426
        %7012 = vmatprep.subr.bf16.mxu0 0
        %7013 = vmatpush1.bf16.msra.mxu0 %v6427
        %7014 = vmatprep.subr.bf16.mxu0 0
        %7015 = vmatpush1.bf16.msra.mxu0 %v6428
        %7016 = vmatprep.subr.bf16.mxu0 0
        %7017 = vmatpush1.bf16.msra.mxu0 %v6429
        %7018 = vmatprep.subr.bf16.mxu0 0
        %7019 = vmatpush1.bf16.msra.mxu0 %v6430
        %7020 = vmatprep.subr.bf16.mxu0 0
        %7021 = vmatpush1.bf16.msra.mxu0 %v6431
        %7022 = vmatprep.subr.bf16.mxu0 0
        %7023 = vmatpush1.bf16.msra.mxu0 %v6432
        %7024 = vmatprep.subr.bf16.mxu0 0
        %7025 = vmatpush1.bf16.msra.mxu0 %v6433
        %7026 = vmatprep.subr.bf16.mxu0 0
        %7027 = vmatpush1.bf16.msra.mxu0 %v6434
        %7028 = vmatprep.subr.bf16.mxu0 0
        %7029 = vmatpush1.bf16.msra.mxu0 %v6435
        %7030 = vmatprep.subr.bf16.mxu0 0
        %7031 = vmatpush1.bf16.msra.mxu0 %v6436
        %7032 = vmatprep.mubr.bf16.mxu0 %v4125
        %7033 = vmatmul.mubr.bf16.gmra.mrb[0].mxu0 %v4113
        %v7034 = vpop.f32.mrb[0].mxu0
        %v7035 = vadd.f32 %v6874, %v7034
        %v7036 = vpop.f32.mrb[0].mxu0
        %v7037 = vpop.f32.mrb[0].mxu0
        %v7038 = vadd.f32 %v6877, %v7037
        %v7039 = vpop.f32.mrb[0].mxu0
        %7040 = vmatprep.mubr.bf16.mxu0 %v4218
        %7041 = vmatmul.mubr.bf16.gmra.mrb[0].mxu0 %v4206
        %v7042 = vpop.f32.mrb[0].mxu0
        %v7043 = vadd.f32 %v6882, %v7042
        %v7044 = vpop.f32.mrb[0].mxu0
        %v7045 = vpop.f32.mrb[0].mxu0
        %v7046 = vadd.f32 %v6885, %v7045
        %v7047 = vpop.f32.mrb[0].mxu0
        %7048 = vmatprep.mubr.bf16.mxu0 %v4311
        %7049 = vmatmul.mubr.bf16.gmra.mrb[0].mxu0 %v4299
        %v7050 = vpop.f32.mrb[0].mxu0
        %v7051 = vadd.f32 %v6890, %v7050
        %v7052 = vpop.f32.mrb[0].mxu0
        %v7053 = vpop.f32.mrb[0].mxu0
        %v7054 = vadd.f32 %v6893, %v7053
        %v7055 = vpop.f32.mrb[0].mxu0
        %7056 = vmatprep.mubr.bf16.mxu0 %v4404
        %7057 = vmatmul.mubr.bf16.gmra.mrb[0].mxu0 %v4392
        %v7058 = vpop.f32.mrb[0].mxu0
        %v7059 = vadd.f32 %v6898, %v7058
        %v7060 = vpop.f32.mrb[0].mxu0
        %v7061 = vpop.f32.mrb[0].mxu0
        %v7062 = vadd.f32 %v6901, %v7061
        %v7063 = vpop.f32.mrb[0].mxu0
        %7064 = vmatprep.mubr.bf16.mxu0 %v4497
        %7065 = vmatmul.mubr.bf16.gmra.mrb[0].mxu0 %v4485
        %v7066 = vpop.f32.mrb[0].mxu0
        %v7067 = vadd.f32 %v6906, %v7066
        %v7068 = vpop.f32.mrb[0].mxu0
        %v7069 = vpop.f32.mrb[0].mxu0
        %v7070 = vadd.f32 %v6909, %v7069
        %v7071 = vpop.f32.mrb[0].mxu0
        %7072 = vmatprep.mubr.bf16.mxu0 %v4590
        %7073 = vmatmul.mubr.bf16.gmra.mrb[0].mxu0 %v4578
        %v7074 = vpop.f32.mrb[0].mxu0
        %v7075 = vadd.f32 %v6914, %v7074
        %v7076 = vpop.f32.mrb[0].mxu0
        %v7077 = vpop.f32.mrb[0].mxu0
        %v7078 = vadd.f32 %v6917, %v7077
        %v7079 = vpop.f32.mrb[0].mxu0
        %7080 = vmatprep.mubr.bf16.mxu0 %v4683
        %7081 = vmatmul.mubr.bf16.gmra.mrb[0].mxu0 %v4671
        %v7082 = vpop.f32.mrb[0].mxu0
        %v7083 = vadd.f32 %v6922, %v7082
        %v7084 = vpop.f32.mrb[0].mxu0
        %v7085 = vpop.f32.mrb[0].mxu0
        %v7086 = vadd.f32 %v6925, %v7085
        %v7087 = vpop.f32.mrb[0].mxu0
        %7088 = vmatprep.mubr.bf16.mxu0 %v4776
        %7089 = vmatmul.mubr.bf16.gmra.mrb[0].mxu0 %v4764
        %v7090 = vpop.f32.mrb[0].mxu0
        %v7091 = vadd.f32 %v6930, %v7090
        %v7092 = vpop.f32.mrb[0].mxu0
        %v7093 = vpop.f32.mrb[0].mxu0
        %v7094 = vadd.f32 %v6933, %v7093
        %v7095 = vpop.f32.mrb[0].mxu0
        %7096 = vmatprep.mubr.bf16.mxu0 %v4869
        %7097 = vmatmul.mubr.bf16.gmra.mrb[0].mxu0 %v4857
        %v7098 = vpop.f32.mrb[0].mxu0
        %v7099 = vadd.f32 %v6938, %v7098
        %v7100 = vpop.f32.mrb[0].mxu0
        %v7101 = vpop.f32.mrb[0].mxu0
        %v7102 = vadd.f32 %v6941, %v7101
        %v7103 = vpop.f32.mrb[0].mxu0
        %7104 = vmatprep.mubr.bf16.mxu0 %v4962
        %7105 = vmatmul.mubr.bf16.gmra.mrb[0].mxu0 %v4950
        %v7106 = vpop.f32.mrb[0].mxu0
        %v7107 = vadd.f32 %v6946, %v7106
        %v7108 = vpop.f32.mrb[0].mxu0
        %v7109 = vpop.f32.mrb[0].mxu0
        %v7110 = vadd.f32 %v6949, %v7109
        %v7111 = vpop.f32.mrb[0].mxu0
        %7112 = vmatprep.mubr.bf16.mxu0 %v5055
        %7113 = vmatmul.mubr.bf16.gmra.mrb[0].mxu0 %v5043
        %v7114 = vpop.f32.mrb[0].mxu0
        %v7115 = vadd.f32 %v6954, %v7114
        %v7116 = vpop.f32.mrb[0].mxu0
        %v7117 = vpop.f32.mrb[0].mxu0
        %v7118 = vadd.f32 %v6957, %v7117
        %v7119 = vpop.f32.mrb[0].mxu0
        %7120 = vmatprep.mubr.bf16.mxu0 %v5148
        %7121 = vmatmul.mubr.bf16.gmra.mrb[0].mxu0 %v5136
        %v7122 = vpop.f32.mrb[0].mxu0
        %v7123 = vadd.f32 %v6962, %v7122
        %v7124 = vpop.f32.mrb[0].mxu0
        %v7125 = vpop.f32.mrb[0].mxu0
        %v7126 = vadd.f32 %v6965, %v7125
        %v7127 = vpop.f32.mrb[0].mxu0
        %7128 = vmatprep.mubr.bf16.mxu0 %v5241
        %7129 = vmatmul.mubr.bf16.gmra.mrb[0].mxu0 %v5229
        %v7130 = vpop.f32.mrb[0].mxu0
        %v7131 = vadd.f32 %v6970, %v7130
        %v7132 = vpop.f32.mrb[0].mxu0
        %v7133 = vpop.f32.mrb[0].mxu0
        %v7134 = vadd.f32 %v6973, %v7133
        %v7135 = vpop.f32.mrb[0].mxu0
        %7136 = vmatprep.mubr.bf16.mxu0 %v5334
        %7137 = vmatmul.mubr.bf16.gmra.mrb[0].mxu0 %v5322
        %v7138 = vpop.f32.mrb[0].mxu0
        %v7139 = vadd.f32 %v6978, %v7138
        %v7140 = vpop.f32.mrb[0].mxu0
        %v7141 = vpop.f32.mrb[0].mxu0
        %v7142 = vadd.f32 %v6981, %v7141
        %v7143 = vpop.f32.mrb[0].mxu0
        %7144 = vmatprep.mubr.bf16.mxu0 %v5427
        %7145 = vmatmul.mubr.bf16.gmra.mrb[0].mxu0 %v5415
        %v7146 = vpop.f32.mrb[0].mxu0
        %v7147 = vadd.f32 %v6986, %v7146
        %v7148 = vpop.f32.mrb[0].mxu0
        %v7149 = vpop.f32.mrb[0].mxu0
        %v7150 = vadd.f32 %v6989, %v7149
        %v7151 = vpop.f32.mrb[0].mxu0
        %7152 = vmatprep.mubr.bf16.mxu0 %v5520
        %7153 = vmatmul.mubr.bf16.gmra.mrb[0].mxu0 %v5508
        %v7154 = vpop.f32.mrb[0].mxu0
        %v7155 = vadd.f32 %v6994, %v7154
        %v7156 = vpop.f32.mrb[0].mxu0
        %v7157 = vpop.f32.mrb[0].mxu0
        %v7158 = vadd.f32 %v6997, %v7157
        %v7159 = vpop.f32.mrb[0].mxu0
        %7160 = vdwg.mxu0
        %7161 = vmatprep.subr.bf16.mxu0 0
        %7162 = vmatpush1.bf16.msra.mxu0 %v6437
        %7163 = vmatprep.subr.bf16.mxu0 0
        %7164 = vmatpush1.bf16.msra.mxu0 %v6438
        %7165 = vmatprep.subr.bf16.mxu0 0
        %7166 = vmatpush1.bf16.msra.mxu0 %v6439
        %7167 = vmatprep.subr.bf16.mxu0 0
        %7168 = vmatpush1.bf16.msra.mxu0 %v6440
        %7169 = vmatprep.subr.bf16.mxu0 0
        %7170 = vmatpush1.bf16.msra.mxu0 %v6441
        %7171 = vmatprep.subr.bf16.mxu0 0
        %7172 = vmatpush1.bf16.msra.mxu0 %v6442
        %7173 = vmatprep.subr.bf16.mxu0 0
        %7174 = vmatpush1.bf16.msra.mxu0 %v6443
        %7175 = vmatprep.subr.bf16.mxu0 0
        %7176 = vmatpush1.bf16.msra.mxu0 %v6444
        %7177 = vmatprep.subr.bf16.mxu0 0
        %7178 = vmatpush1.bf16.msra.mxu0 0
        %7179 = vmatprep.subr.bf16.mxu0 0
        %7180 = vmatpush1.bf16.msra.mxu0 0
        %7181 = vmatprep.subr.bf16.mxu0 0
        %7182 = vmatpush1.bf16.msra.mxu0 0
        %7183 = vmatprep.subr.bf16.mxu0 0
        %7184 = vmatpush1.bf16.msra.mxu0 0
        %7185 = vmatprep.subr.bf16.mxu0 0
        %7186 = vmatpush1.bf16.msra.mxu0 0
        %7187 = vmatprep.subr.bf16.mxu0 0
        %7188 = vmatpush1.bf16.msra.mxu0 0
        %7189 = vmatprep.subr.bf16.mxu0 0
        %7190 = vmatpush1.bf16.msra.mxu0 0
        %7191 = vmatprep.subr.bf16.mxu0 0
        %7192 = vmatpush1.bf16.msra.mxu0 0
        %7193 = vmatprep.mubr.bf16.mxu0 0
        %7194 = vmatmul.mubr.bf16.gmra.mrb[0].mxu0 %v4137
        %v7195 = vpop.f32.mrb[0].mxu0
        %v7196 = vadd.f32 %v7035, %v7195
        %v7197 = vpop.f32.mrb[0].mxu0
        %v7198 = vpop.f32.mrb[0].mxu0
        %v7199 = vadd.f32 %v7038, %v7198
        %v7200 = vpop.f32.mrb[0].mxu0
        %7201 = vmatprep.mubr.bf16.mxu0 0
        %7202 = vmatmul.mubr.bf16.gmra.mrb[0].mxu0 %v4230
        %v7203 = vpop.f32.mrb[0].mxu0
        %v7204 = vadd.f32 %v7043, %v7203
        %v7205 = vpop.f32.mrb[0].mxu0
        %v7206 = vpop.f32.mrb[0].mxu0
        %v7207 = vadd.f32 %v7046, %v7206
        %v7208 = vpop.f32.mrb[0].mxu0
        %7209 = vmatprep.mubr.bf16.mxu0 0
        %7210 = vmatmul.mubr.bf16.gmra.mrb[0].mxu0 %v4323
        %v7211 = vpop.f32.mrb[0].mxu0
        %v7212 = vadd.f32 %v7051, %v7211
        %v7213 = vpop.f32.mrb[0].mxu0
        %v7214 = vpop.f32.mrb[0].mxu0
        %v7215 = vadd.f32 %v7054, %v7214
        %v7216 = vpop.f32.mrb[0].mxu0
        %7217 = vmatprep.mubr.bf16.mxu0 0
        %7218 = vmatmul.mubr.bf16.gmra.mrb[0].mxu0 %v4416
        %v7219 = vpop.f32.mrb[0].mxu0
        %v7220 = vadd.f32 %v7059, %v7219
        %v7221 = vpop.f32.mrb[0].mxu0
        %v7222 = vpop.f32.mrb[0].mxu0
        %v7223 = vadd.f32 %v7062, %v7222
        %v7224 = vpop.f32.mrb[0].mxu0
        %7225 = vmatprep.mubr.bf16.mxu0 0
        %7226 = vmatmul.mubr.bf16.gmra.mrb[0].mxu0 %v4509
        %v7227 = vpop.f32.mrb[0].mxu0
        %v7228 = vadd.f32 %v7067, %v7227
        %v7229 = vpop.f32.mrb[0].mxu0
        %v7230 = vpop.f32.mrb[0].mxu0
        %v7231 = vadd.f32 %v7070, %v7230
        %v7232 = vpop.f32.mrb[0].mxu0
        %7233 = vmatprep.mubr.bf16.mxu0 0
        %7234 = vmatmul.mubr.bf16.gmra.mrb[0].mxu0 %v4602
        %v7235 = vpop.f32.mrb[0].mxu0
        %v7236 = vadd.f32 %v7075, %v7235
        %v7237 = vpop.f32.mrb[0].mxu0
        %v7238 = vpop.f32.mrb[0].mxu0
        %v7239 = vadd.f32 %v7078, %v7238
        %v7240 = vpop.f32.mrb[0].mxu0
        %7241 = vmatprep.mubr.bf16.mxu0 0
        %7242 = vmatmul.mubr.bf16.gmra.mrb[0].mxu0 %v4695
        %v7243 = vpop.f32.mrb[0].mxu0
        %v7244 = vadd.f32 %v7083, %v7243
        %v7245 = vpop.f32.mrb[0].mxu0
        %v7246 = vpop.f32.mrb[0].mxu0
        %v7247 = vadd.f32 %v7086, %v7246
        %v7248 = vpop.f32.mrb[0].mxu0
        %7249 = vmatprep.mubr.bf16.mxu0 0
        %7250 = vmatmul.mubr.bf16.gmra.mrb[0].mxu0 %v4788
        %v7251 = vpop.f32.mrb[0].mxu0
        %v7252 = vadd.f32 %v7091, %v7251
        %v7253 = vpop.f32.mrb[0].mxu0
        %v7254 = vpop.f32.mrb[0].mxu0
        %v7255 = vadd.f32 %v7094, %v7254
        %v7256 = vpop.f32.mrb[0].mxu0
        %7257 = vmatprep.mubr.bf16.mxu0 0
        %7258 = vmatmul.mubr.bf16.gmra.mrb[0].mxu0 %v4881
        %v7259 = vpop.f32.mrb[0].mxu0
        %v7260 = vadd.f32 %v7099, %v7259
        %v7261 = vpop.f32.mrb[0].mxu0
        %v7262 = vpop.f32.mrb[0].mxu0
        %v7263 = vadd.f32 %v7102, %v7262
        %v7264 = vpop.f32.mrb[0].mxu0
        %7265 = vmatprep.mubr.bf16.mxu0 0
        %7266 = vmatmul.mubr.bf16.gmra.mrb[0].mxu0 %v4974
        %v7267 = vpop.f32.mrb[0].mxu0
        %v7268 = vadd.f32 %v7107, %v7267
        %v7269 = vpop.f32.mrb[0].mxu0
        %v7270 = vpop.f32.mrb[0].mxu0
        %v7271 = vadd.f32 %v7110, %v7270
        %v7272 = vpop.f32.mrb[0].mxu0
        %7273 = vmatprep.mubr.bf16.mxu0 0
        %7274 = vmatmul.mubr.bf16.gmra.mrb[0].mxu0 %v5067
        %v7275 = vpop.f32.mrb[0].mxu0
        %v7276 = vadd.f32 %v7115, %v7275
        %v7277 = vpop.f32.mrb[0].mxu0
        %v7278 = vpop.f32.mrb[0].mxu0
        %v7279 = vadd.f32 %v7118, %v7278
        %v7280 = vpop.f32.mrb[0].mxu0
        %7281 = vmatprep.mubr.bf16.mxu0 0
        %7282 = vmatmul.mubr.bf16.gmra.mrb[0].mxu0 %v5160
        %v7283 = vpop.f32.mrb[0].mxu0
        %v7284 = vadd.f32 %v7123, %v7283
        %v7285 = vpop.f32.mrb[0].mxu0
        %v7286 = vpop.f32.mrb[0].mxu0
        %v7287 = vadd.f32 %v7126, %v7286
        %v7288 = vpop.f32.mrb[0].mxu0
        %7289 = vmatprep.mubr.bf16.mxu0 0
        %7290 = vmatmul.mubr.bf16.gmra.mrb[0].mxu0 %v5253
        %v7291 = vpop.f32.mrb[0].mxu0
        %v7292 = vadd.f32 %v7131, %v7291
        %v7293 = vpop.f32.mrb[0].mxu0
        %v7294 = vpop.f32.mrb[0].mxu0
        %v7295 = vadd.f32 %v7134, %v7294
        %v7296 = vpop.f32.mrb[0].mxu0
        %7297 = vmatprep.mubr.bf16.mxu0 0
        %7298 = vmatmul.mubr.bf16.gmra.mrb[0].mxu0 %v5346
        %v7299 = vpop.f32.mrb[0].mxu0
        %v7300 = vadd.f32 %v7139, %v7299
        %v7301 = vpop.f32.mrb[0].mxu0
        %v7302 = vpop.f32.mrb[0].mxu0
        %v7303 = vadd.f32 %v7142, %v7302
        %v7304 = vpop.f32.mrb[0].mxu0
        %7305 = vmatprep.mubr.bf16.mxu0 0
        %7306 = vmatmul.mubr.bf16.gmra.mrb[0].mxu0 %v5439
        %v7307 = vpop.f32.mrb[0].mxu0
        %v7308 = vadd.f32 %v7147, %v7307
        %v7309 = vpop.f32.mrb[0].mxu0
        %v7310 = vpop.f32.mrb[0].mxu0
        %v7311 = vadd.f32 %v7150, %v7310
        %v7312 = vpop.f32.mrb[0].mxu0
        %7313 = vmatprep.mubr.bf16.mxu0 0
        %7314 = vmatmul.mubr.bf16.gmra.mrb[0].mxu0 %v5532
        %v7315 = vpop.f32.mrb[0].mxu0
        %v7316 = vadd.f32 %v7155, %v7315
        %v7317 = vpop.f32.mrb[0].mxu0
        %v7318 = vpop.f32.mrb[0].mxu0
        %v7319 = vadd.f32 %v7158, %v7318
        %v7320 = vpop.f32.mrb[0].mxu0
        %7321 = vdwg.mxu0
        %v7322 = vadd.f32 %v7196, %v5968
        %v7323 = vadd.f32 %v7199, %v5970
        %v7324 = vadd.f32 %v7204, %v5973
        %v7325 = vadd.f32 %v7207, %v5975
        %v7326 = vadd.f32 %v7212, %v5978
        %v7327 = vadd.f32 %v7215, %v5980
        %v7328 = vadd.f32 %v7220, %v5983
        %v7329 = vadd.f32 %v7223, %v5985
        %v7330 = vadd.f32 %v7228, %v5988
        %v7331 = vadd.f32 %v7231, %v5990
        %v7332 = vadd.f32 %v7236, %v5993
        %v7333 = vadd.f32 %v7239, %v5995
        %v7334 = vadd.f32 %v7244, %v5998
        %v7335 = vadd.f32 %v7247, %v6000
        %v7336 = vadd.f32 %v7252, %v6003
        %v7337 = vadd.f32 %v7255, %v6005
        %v7338 = vadd.f32 %v7260, %v6008
        %v7339 = vadd.f32 %v7263, %v6010
        %v7340 = vadd.f32 %v7268, %v6013
        %v7341 = vadd.f32 %v7271, %v6015
        %v7342 = vadd.f32 %v7276, %v6018
        %v7343 = vadd.f32 %v7279, %v6020
        %v7344 = vadd.f32 %v7284, %v6023
        %v7345 = vadd.f32 %v7287, %v6025
        %v7346 = vadd.f32 %v7292, %v6028
        %v7347 = vadd.f32 %v7295, %v6030
        %v7348 = vadd.f32 %v7300, %v6033
        %v7349 = vadd.f32 %v7303, %v6035
        %v7350 = vadd.f32 %v7308, %v6038
        %v7351 = vadd.f32 %v7311, %v6040
        %v7352 = vadd.f32 %v7316, %v6043
        %v7353 = vadd.f32 %v7319, %v6045
        %v7354 = vmax.f32 %v7322, 0.0
        %v7355 = vmax.f32 %v7323, 0.0
        %v7356 = vmax.f32 %v7324, 0.0
        %v7357 = vmax.f32 %v7325, 0.0
        %v7358 = vmax.f32 %v7326, 0.0
        %v7359 = vmax.f32 %v7327, 0.0
        %v7360 = vmax.f32 %v7328, 0.0
        %v7361 = vmax.f32 %v7329, 0.0
        %v7362 = vmax.f32 %v7330, 0.0
        %v7363 = vmax.f32 %v7331, 0.0
        %v7364 = vmax.f32 %v7332, 0.0
        %v7365 = vmax.f32 %v7333, 0.0
        %v7366 = vmax.f32 %v7334, 0.0
        %v7367 = vmax.f32 %v7335, 0.0
        %v7368 = vmax.f32 %v7336, 0.0
        %v7369 = vmax.f32 %v7337, 0.0
        %v7370 = vmax.f32 %v7338, 0.0
        %v7371 = vmax.f32 %v7339, 0.0
        %v7372 = vmax.f32 %v7340, 0.0
        %v7373 = vmax.f32 %v7341, 0.0
        %v7374 = vmax.f32 %v7342, 0.0
        %v7375 = vmax.f32 %v7343, 0.0
        %v7376 = vmax.f32 %v7344, 0.0
        %v7377 = vmax.f32 %v7345, 0.0
        %v7378 = vmax.f32 %v7346, 0.0
        %v7379 = vmax.f32 %v7347, 0.0
        %v7380 = vmax.f32 %v7348, 0.0
        %v7381 = vmax.f32 %v7349, 0.0
        %v7382 = vmax.f32 %v7350, 0.0
        %v7383 = vmax.f32 %v7351, 0.0
        %v7384 = vmax.f32 %v7352, 0.0
        %v7385 = vmax.f32 %v7353, 0.0
        %v7386 = vpack.c.bf16 %v7355, %v7354
        %v7387 = vpack.c.bf16 %v7357, %v7356
        %v7388 = vpack.c.bf16 %v7359, %v7358
        %v7389 = vpack.c.bf16 %v7361, %v7360
        %v7390 = vpack.c.bf16 %v7363, %v7362
        %v7391 = vpack.c.bf16 %v7365, %v7364
        %v7392 = vpack.c.bf16 %v7367, %v7366
        %v7393 = vpack.c.bf16 %v7369, %v7368
        %v7394 = vpack.c.bf16 %v7371, %v7370
        %v7395 = vpack.c.bf16 %v7373, %v7372
        %v7396 = vpack.c.bf16 %v7375, %v7374
        %v7397 = vpack.c.bf16 %v7377, %v7376
        %v7398 = vpack.c.bf16 %v7379, %v7378
        %v7399 = vpack.c.bf16 %v7381, %v7380
        %v7400 = vpack.c.bf16 %v7383, %v7382
        %v7401 = vpack.c.bf16 %v7385, %v7384
        %v7418 = vunpack.c.l.b16 %v7386
        %v7419 = vunpack.c.h.b16 %v7386
        %v7420 = vunpack.c.l.b16 %v7387
        %v7421 = vunpack.c.h.b16 %v7387
        %v7422 = vunpack.c.l.b16 %v7388
        %v7423 = vunpack.c.h.b16 %v7388
        %v7424 = vunpack.c.l.b16 %v7389
        %v7425 = vunpack.c.h.b16 %v7389
        %v7426 = vunpack.c.l.b16 %v7390
        %v7427 = vunpack.c.h.b16 %v7390
        %v7428 = vunpack.c.l.b16 %v7391
        %v7429 = vunpack.c.h.b16 %v7391
        %v7430 = vunpack.c.l.b16 %v7392
        %v7431 = vunpack.c.h.b16 %v7392
        %v7432 = vunpack.c.l.b16 %v7393
        %v7433 = vunpack.c.h.b16 %v7393
        %v7434 = vunpack.c.l.b16 %v7394
        %v7435 = vunpack.c.h.b16 %v7394
        %v7436 = vunpack.c.l.b16 %v7395
        %v7437 = vunpack.c.h.b16 %v7395
        %v7438 = vunpack.c.l.b16 %v7396
        %v7439 = vunpack.c.h.b16 %v7396
        %v7440 = vunpack.c.l.b16 %v7397
        %v7441 = vunpack.c.h.b16 %v7397
        %v7442 = vunpack.c.l.b16 %v7398
        %v7443 = vunpack.c.h.b16 %v7398
        %v7444 = vunpack.c.l.b16 %v7399
        %v7445 = vunpack.c.h.b16 %v7399
        %v7446 = vunpack.c.l.b16 %v7400
        %v7447 = vunpack.c.h.b16 %v7400
        %v7448 = vunpack.c.l.b16 %v7401
        %v7449 = vunpack.c.h.b16 %v7401
        %v7450 = vpack.c.b16 %v7418, %v7418
        %v7451 = vpack.c.b16 %v7419, %v7419
        %v7452 = vpack.c.b16 %v7420, %v7420
        %v7453 = vpack.c.b16 %v7421, %v7421
        %v7454 = vpack.c.b16 %v7422, %v7422
        %v7455 = vpack.c.b16 %v7423, %v7423
        %v7456 = vpack.c.b16 %v7424, %v7424
        %v7457 = vpack.c.b16 %v7425, %v7425
        %v7458 = vpack.c.b16 %v7426, %v7426
        %v7459 = vpack.c.b16 %v7427, %v7427
        %v7460 = vpack.c.b16 %v7428, %v7428
        %v7461 = vpack.c.b16 %v7429, %v7429
        %v7462 = vpack.c.b16 %v7430, %v7430
        %v7463 = vpack.c.b16 %v7431, %v7431
        %v7464 = vpack.c.b16 %v7432, %v7432
        %v7465 = vpack.c.b16 %v7433, %v7433
        %v7466 = vpack.c.b16 %v7434, %v7434
        %v7467 = vpack.c.b16 %v7435, %v7435
        %v7468 = vpack.c.b16 %v7436, %v7436
        %v7469 = vpack.c.b16 %v7437, %v7437
        %v7470 = vpack.c.b16 %v7438, %v7438
        %v7471 = vpack.c.b16 %v7439, %v7439
        %v7472 = vpack.c.b16 %v7440, %v7440
        %v7473 = vpack.c.b16 %v7441, %v7441
        %v7474 = vpack.c.b16 %v7442, %v7442
        %v7475 = vpack.c.b16 %v7443, %v7443
        %v7476 = vpack.c.b16 %v7444, %v7444
        %v7477 = vpack.c.b16 %v7445, %v7445
        %v7478 = vpack.c.b16 %v7446, %v7446
        %v7479 = vpack.c.b16 %v7447, %v7447
        %v7480 = vpack.c.b16 %v7448, %v7448
        %v7481 = vpack.c.b16 %v7449, %v7449
        %7514 = vst [vmem:[%s232] sm:$0xf] %v7450
        %7515 = vst [vmem:[%s232 + $0x4] sm:$0xf] %v7451
        %7516 = vst [vmem:[%s232 + $0x8] sm:$0xf] %v7452
        %7517 = vst [vmem:[%s232 + $0xc] sm:$0xf] %v7453
        %7518 = vst [vmem:[%s232 + $0x10] sm:$0xf] %v7454
        %7519 = vst [vmem:[%s232 + $0x14] sm:$0xf] %v7455
        %7520 = vst [vmem:[%s232 + $0x18] sm:$0xf] %v7456
        %7521 = vst [vmem:[%s232 + $0x1c] sm:$0xf] %v7457
        %7522 = vst [vmem:[%s232 + $0x20] sm:$0xf] %v7458
        %7523 = vst [vmem:[%s232 + $0x24] sm:$0xf] %v7459
        %7524 = vst [vmem:[%s232 + $0x28] sm:$0xf] %v7460
        %7525 = vst [vmem:[%s232 + $0x2c] sm:$0xf] %v7461
        %7526 = vst [vmem:[%s232 + $0x30] sm:$0xf] %v7462
        %7527 = vst [vmem:[%s232 + $0x34] sm:$0xf] %v7463
        %7528 = vst [vmem:[%s232 + $0x38] sm:$0xf] %v7464
        %7529 = vst [vmem:[%s232 + $0x3c] sm:$0xf] %v7465
        %7530 = vst [vmem:[%s232 + $0x40] sm:$0xf] %v7466
        %7531 = vst [vmem:[%s232 + $0x44] sm:$0xf] %v7467
        %7532 = vst [vmem:[%s232 + $0x48] sm:$0xf] %v7468
        %7533 = vst [vmem:[%s232 + $0x4c] sm:$0xf] %v7469
        %7534 = vst [vmem:[%s232 + $0x50] sm:$0xf] %v7470
        %7535 = vst [vmem:[%s232 + $0x54] sm:$0xf] %v7471
        %7536 = vst [vmem:[%s232 + $0x58] sm:$0xf] %v7472
        %7537 = vst [vmem:[%s232 + $0x5c] sm:$0xf] %v7473
        %7538 = vst [vmem:[%s232 + $0x60] sm:$0xf] %v7474
        %7539 = vst [vmem:[%s232 + $0x64] sm:$0xf] %v7475
        %7540 = vst [vmem:[%s232 + $0x68] sm:$0xf] %v7476
        %7541 = vst [vmem:[%s232 + $0x6c] sm:$0xf] %v7477
        %7542 = vst [vmem:[%s232 + $0x70] sm:$0xf] %v7478
        %7543 = vst [vmem:[%s232 + $0x74] sm:$0xf] %v7479
        %7544 = vst [vmem:[%s232 + $0x78] sm:$0xf] %v7480
        %7545 = vst [vmem:[%s232 + $0x7c] sm:$0xf] %v7481
        %s7546 = sand.u32 %s138, 1
        %s7547 = scalar_lea.sflag [#allocation5], %s7546
        %s7548 = sand.u32 %s138, 1
        %s7549 = smul.addr %s7548, 128
        %s7550 = scalar_lea.vmem [#allocation6], %s7549
        // Predicated region
        $region45: #{tpu_custom_call.1} parent=39 // pred_check
          %p7551 = pneg %p148
        $region46: #{tpu_custom_call.1} parent=39 // pred_check_branch
          %7553 = sbr.rel (%p7551) target = $region48
        $region47: #{tpu_custom_call.1} parent=39 // pred_region
          %s7555 = ssub.s32 2048, 2048
          %7556 = vsyncadd %s7547, %s7555
          %s7557 = smul.addr %s20, 32
          %s7558 = smul.addr %s7557, 64
          %s7559 = scalar_lea.hbm %s5, %s7558
          %s7560 = sshll.u32 %s7550, 4
          %s7561 = int_to_ptr.vmem [resolvable:$true] %s7560
          %7566 = dma.vmem_to_hbm [thread:$0]  %s7561, 2048, %s7559, %s7547, 64, 64, 4
        $region48: #{tpu_custom_call.1} parent=39 // pred_fallthru
          _
      $region40: #{tpu_custom_call.1} parent=5 // pred_fallthru
        _
      %p7567 = scmp.le.s32.totalorder 2, %s15
      // Predicated region
      $region49: #{tpu_custom_call.1} parent=5 // pred_check
        %p7568 = pneg %p7567
      $region50: #{tpu_custom_call.1} parent=5 // pred_check_branch
        %7570 = sbr.rel (%p7568) target = $region52
      $region51: #{tpu_custom_call.1} parent=5 // pred_region
        %s7571 = ssub.s32 %s15, 2
        // Predicated region
        $region53: #{tpu_custom_call.1} parent=51 // pred_check
          %p7572 = pneg %p154
        $region54: #{tpu_custom_call.1} parent=51 // pred_check_branch
          %7574 = sbr.rel (%p7572) target = $region56
        $region55: #{tpu_custom_call.1} parent=51 // pred_region
          %s7575 = sand.u32 %s139, 1
          %s7576 = scalar_lea.sflag [#allocation5], %s7575
          %s7577 = sand.u32 %s139, 1
          %s7578 = smul.addr %s7577, 128
          %s7579 = scalar_lea.vmem [#allocation6], %s7578
          %7580 = dma.done %s7576, 2048
        $region56: #{tpu_custom_call.1} parent=51 // pred_fallthru
          _
      $region52: #{tpu_custom_call.1} parent=5 // pred_fallthru
        _
    $region6: #{tpu_custom_call.1} parent=1 // loop_footer
      %s19 = sadd.s32 1, %s15
    $region7: #{tpu_custom_call.1} parent=1 // loop_footer_branch
      %14 = sbr.rel target = $region3
    $region8: #{tpu_custom_call.1} parent=1 // loop_exit
      _
    %7581 = vsyncpa [#allocation4], 1
    %s7582 = scalar_lea.sflag [#allocation4], 1
    %7583 = vsyncpa %s7582, 1
    %7584 = vsyncpa [#allocation5], 1
    %s7585 = scalar_lea.sflag [#allocation5], 1
    %7586 = vsyncpa %s7585, 1

</llo_original>
